<compile_context>
chip_gen: v6e
topology: v6e:2x2x1
jax: 0.10.0
libtpu: 0.0.40
codegen_flags: <defaults>
</compile_context>

<pallas_src>
import math

import jax
import jax.numpy as jnp
import numpy as np
from jax import lax
from jax.experimental import pallas as pl
from jax.experimental.pallas import tpu as pltpu

# ----------------- synthetic (small) ANI-style hyper-parameters --------------
M = 2                      # molecules (batch)
A = 8                      # atoms per molecule
N = M * A                  # flattened atom rows
S = 4                      # chemical species (e.g. H, C, N, O)

TILE_N = 8                 # atom rows per grid step (>= 8, multiple of A)
assert TILE_N % 8 == 0 and TILE_N % A == 0 and N % TILE_N == 0
NUM_TILES = N // TILE_N
MOLS_PER_TILE = TILE_N // A
assert MOLS_PER_TILE <= 8

# radial AEV parameters
ETA_R = 16.0
RC_R = 5.2
SHF_R = (0.9, 2.1, 3.3, 4.5)
NR = len(SHF_R)

# angular AEV parameters
ETA_A = 8.0
RC_A = 3.5
SHF_A = (0.9, 2.2)
SHF_Z = (math.pi / 4.0, 3.0 * math.pi / 4.0)
NA = len(SHF_A)
NZ = len(SHF_Z)
NPAIR = S * (S + 1) // 2                     # 10 unordered species pairs
RAD_DIM = NR * S                             # 16
ANG_DIM = NZ * NA * NPAIR                    # 40
AEV_DIM = RAD_DIM + ANG_DIM                  # 56

# per-species neural networks (ensemble)
E = 2                      # ensemble size
H1 = 32
H2 = 16
CELU_ALPHA = 0.1
SAE = (-0.600953, -38.083817, -54.707778, -75.194466)   # per-species self energies

# MXU operand dtype for the MLP matmuls (exact-layout 0/1 glue and geometry
# stay in f32; v5e keeps all VPU/EUP math in f32 as well).
MXU_DT = jnp.bfloat16


# ------------------------------ constant glue ---------------------------------
def _pair_map():
    """(S, S, NPAIR) symmetric one-hot map from ordered species pair -> pair index."""
    pm = np.zeros((S, S, NPAIR), dtype=np.float32)
    p = 0
    for a in range(S):
        for b in range(a, S):
            pm[a, b, p] = 1.0
            pm[b, a, p] = 1.0
            p += 1
    return jnp.asarray(pm)


def _molsel():
    """(8, TILE_N) molecule selector: row r picks the atoms of tile-local molecule r."""
    m = np.zeros((8, TILE_N), dtype=np.float32)
    for r in range(MOLS_PER_TILE):
        m[r, r * A:(r + 1) * A] = 1.0
    return jnp.asarray(m)


PM = _pair_map()
MOLSEL = _molsel()
NEQ_JK = jnp.asarray(1.0 - np.eye(N, dtype=np.float32).reshape(N * N))


# --------------------------------- kernel math --------------------------------
def _cutoff(dist, rc):
    f = 0.5 * jnp.cos(jnp.pi * dist / rc) + 0.5
    return jnp.where(dist < rc, f, 0.0)


def _celu(x):
    return jnp.where(
        x > 0.0,
        x,
        CELU_ALPHA * (jnp.exp(jnp.minimum(x, 0.0) / CELU_ALPHA) - 1.0),
    )


def _contract0(lhs, rhs):
    """sum over dim 0 of both operands: (K, T) x (K, P) -> (T, P)."""
    return lax.dot_general(lhs, rhs, (((0,), (0,)), ((), ())),
                           preferred_element_type=jnp.float32)


def fused_ani_kernel(ct_ref, pm_ref, sel_ref,              # row-tiled inputs
                     call_ref, oh_ref, poh_ref, molsel_ref,  # full-block glue
                     w1_ref, b1_ref, w2_ref, b2_ref, w3_ref, b3_ref,
                     out_ref):
    # ct   (8, T)    lane-major tile coords (rows 0..2 = x,y,z, rest zero pad)
    # pm   (N, T)    pair mask [neighbour j (sublane), tile atom i (lane)]
    # sel  (T, E*S)  per-atom ensemble/species selector
    # call (N, 3)    all-atom coords (sublane-major)
    # oh   (N, S)    neighbour species one-hot          (radial RHS)
    # poh  (N*N, NPAIR) ordered-pair species one-hot    (angular RHS, j!=k rows only)
    # w1 (56, 256), w2 (256,128) block-diag, w3 (128, 8) block-diag; b3 has SAE folded in
    # out  (8, 128)  lane-dense per-tile molecule energies
    f32 = jnp.float32

    # ---- pairwise geometry: neighbours j on sublanes, tile atoms i on lanes ----
    dv = []
    d2 = jnp.zeros((N, TILE_N), f32)
    for d in range(3):
        dvd = call_ref[:, d:d + 1] - ct_ref[d:d + 1, :]       # (N, T): (r_j - r_i)_d
        dv.append(dvd)
        d2 = d2 + dvd * dvd
    dist = jnp.sqrt(d2)                                       # 0 on self pairs (masked)
    pm = pm_ref[...]
    fc_r = _cutoff(dist, RC_R) * pm
    fc_a = _cutoff(dist, RC_A) * pm

    # ---- radial sub-AEV: NR small contractions against the species one-hot ----
    oh = oh_ref[...]
    aev_parts = []
    for k in range(NR):
        g = 0.25 * jnp.exp(-ETA_R * (dist - SHF_R[k]) ** 2) * fc_r    # (N, T)
        aev_parts.append(_contract0(g, oh))                           # (T, S)

    # ---- angular sub-AEV: pair axis expanded on sublanes (free reshapes) ----
    def rep_j(x):   # (N, T) -> (N*N, T): row j*N+k holds x[j]
        return jnp.broadcast_to(x[:, None, :], (N, N, TILE_N)).reshape(N * N, TILE_N)

    def rep_k(x):   # (N, T) -> (N*N, T): row j*N+k holds x[k]
        return jnp.broadcast_to(x[None, :, :], (N, N, TILE_N)).reshape(N * N, TILE_N)

    dist_ij = rep_j(dist)
    dist_ik = rep_k(dist)
    w = rep_j(fc_a) * rep_k(fc_a)                 # j != k handled by zeroed poh rows
    dotp = (rep_j(dv[0]) * rep_k(dv[0])
            + rep_j(dv[1]) * rep_k(dv[1])
            + rep_j(dv[2]) * rep_k(dv[2]))        # (r_j - r_i) . (r_k - r_i)
    # 0.95 is TorchANI's global numerical guard on the cosine (applies to every
    # triplet); the epsilon keeps coincident atoms (dist == 0) from producing NaN.
    cos_t = 0.95 * dotp / (dist_ij * dist_ik + 1e-6)
    sin_t = jnp.sqrt(1.0 - cos_t * cos_t)         # |cos_t| <= ~0.95 -> argument > 0
    avg_d = 0.5 * (dist_ij + dist_ik)
    # f2 does not depend on the angle shift: hoist w * f2 out of the zeta loop.
    wf2 = [w * jnp.exp(-ETA_A * (avg_d - SHF_A[ai]) ** 2) for ai in range(NA)]

    poh = poh_ref[...]
    for zi in range(NZ):
        cz = math.cos(SHF_Z[zi])
        sz = math.sin(SHF_Z[zi])
        f1 = 0.5 * (1.0 + cos_t * cz + sin_t * sz)
        f1 = f1 * f1
        f1 = f1 * f1
        f1 = f1 * f1                              # zeta = 8
        for ai in range(NA):
            term = f1 * wf2[ai]                   # consumed immediately by its matmul
            aev_parts.append(_contract0(term, poh))                   # (T, NPAIR)

    # ---- all E*S per-species MLPs: three block(-diagonal) bf16 matmuls ----
    aev = jnp.concatenate(aev_parts, axis=1)                          # (T, 56)
    z1 = jnp.dot(aev.astype(MXU_DT), w1_ref[...],
                 preferred_element_type=f32) + b1_ref[...]            # (T, 256)
    h1 = _celu(z1)
    z2 = jnp.dot(h1.astype(MXU_DT), w2_ref[...],
                 preferred_element_type=f32) + b2_ref[...]            # (T, 128)
    h2 = _celu(z2)
    y = jnp.dot(h2.astype(MXU_DT), w3_ref[...],
                preferred_element_type=f32) + b3_ref[...]             # (T, E*S), SAE folded in

    # species-net selection + ensemble average (+ SAE already in b3)
    atomic = jnp.sum(y * sel_ref[...], axis=1, keepdims=True) * (1.0 / E)  # (T, 1)
    # molecule reduction as a dense matmul -> full (8, 128) unmasked store
    out_ref[...] = jnp.dot(molsel_ref[...],
                           jnp.broadcast_to(atomic, (TILE_N, 128)),
                           preferred_element_type=f32)


# --------------------------------- wrappers -----------------------------------
def ani_forward_pallas(ct, pmask_tiled, sel, coords, oh, poh, packed):
    args = (ct, pmask_tiled, sel, coords, oh, poh, MOLSEL,
            packed["w1"], packed["b1"], packed["w2"], packed["b2"],
            packed["w3"], packed["b3"])

    def tiled(shape):
        return pl.BlockSpec(shape, lambda i: (i, 0))

    def full(shape):
        return pl.BlockSpec(shape, lambda i: (0, 0))

    in_specs = [
        tiled((8, TILE_N)),                  # lane-major tile coords
        tiled((N, TILE_N)),                  # pair mask (neighbours x tile atoms)
        tiled((TILE_N, E * S)),              # species / ensemble selector
        full((N, 3)),                        # all-atom coords
        full((N, S)),                        # species one-hot
        full((N * N, NPAIR)),                # pair one-hot
        full((8, TILE_N)),                   # molecule selector
        full((AEV_DIM, E * S * H1)),         # w1
        full((1, E * S * H1)),               # b1
        full((E * S * H1, E * S * H2)),      # w2
        full((1, E * S * H2)),               # b2
        full((E * S * H2, E * S)),           # w3
        full((1, E * S)),                    # b3 (+ SAE)
    ]

    out = pl.pallas_call(
        fused_ani_kernel,
        out_shape=jax.ShapeDtypeStruct((NUM_TILES * 8, 128), jnp.float32),
        grid=(NUM_TILES,),
        in_specs=in_specs,
        out_specs=pl.BlockSpec((8, 128), lambda i: (i, 0)),
        compiler_params=pltpu.CompilerParams(
            dimension_semantics=("parallel",),
            # sized well under v7x's 64 MiB; constants are single-block so the
            # pipeline never needs large double buffers at this working set.
            vmem_limit_bytes=32 * 1024 * 1024,
        ),
        cost_estimate=pl.CostEstimate(
            flops=4_000_000, transcendentals=20_000, bytes_accessed=150_000),
    )(*args)

    # Each tile broadcast its MOLS_PER_TILE molecule energies across a dense
    # (8, 128) block: take row r, lane 0 for molecule r of each tile.
    out = out.reshape(NUM_TILES, 8, 128)[:, :MOLS_PER_TILE, 0]
    return out.reshape(M)


def _block_diag(blocks):
    nb = len(blocks)
    r, c = blocks[0].shape
    out = jnp.zeros((nb * r, nb * c), blocks[0].dtype)
    for i, b in enumerate(blocks):
        out = out.at[i * r:(i + 1) * r, i * c:(i + 1) * c].set(b)
    return out


def init_params(key):
    """Deterministic synthetic per-network weights for the ensemble of MLPs."""
    ks = jax.random.split(key, 6)
    return dict(
        w1=0.1 * jax.random.normal(ks[0], (E * S, AEV_DIM, H1), jnp.float32),
        b1=0.1 * jax.random.normal(ks[1], (E * S, 1, H1), jnp.float32),
        w2=0.1 * jax.random.normal(ks[2], (E * S, H1, H2), jnp.float32),
        b2=0.1 * jax.random.normal(ks[3], (E * S, 1, H2), jnp.float32),
        w3=0.1 * jax.random.normal(ks[4], (E * S, H2, 1), jnp.float32),
        b3=0.1 * jax.random.normal(ks[5], (E * S, 1, 1), jnp.float32),
        sae=jnp.asarray(SAE, jnp.float32).reshape(1, S),
    )


def pack_params(raw):
    """One-time packing: per-net MLPs -> block(-diagonal) matrices, SAE folded into b3.

    NOTE: flat net index n is assumed to handle species n % S (matches the
    `sel = tile(oh, (1, E))` selector); real TorchANI parameter packing must be
    ordered to match this convention.
    """
    es = E * S
    w1 = jnp.transpose(raw["w1"], (1, 0, 2)).reshape(AEV_DIM, es * H1)
    b3 = raw["b3"].reshape(1, es) + jnp.tile(raw["sae"], (1, E))
    return dict(
        w1=w1.astype(MXU_DT),
        b1=raw["b1"].reshape(1, es * H1).astype(jnp.float32),
        w2=_block_diag([raw["w2"][i] for i in range(es)]).astype(MXU_DT),
        b2=raw["b2"].reshape(1, es * H2).astype(jnp.float32),
        w3=_block_diag([raw["w3"][i] for i in range(es)]).astype(MXU_DT),
        b3=b3.astype(jnp.float32),
    )


def builtin_models_forward(species, coordinates, raw_params):
    """Pallas equivalent of BuiltinModels.forward((species, coordinates)).

    Returns (species, molecular_energies) like TorchANI's SpeciesEnergies tuple.
    For repeated calls with static species the one-hot / mask / pair glue below
    can be hoisted and reused.
    """
    sp = species.reshape(N)
    coords = coordinates.reshape(N, 3).astype(jnp.float32)

    # species == -1 padding: padded atoms get zero one-hot rows / masks, so they
    # neither act as AEV neighbours nor contribute any (MLP or SAE) energy.
    valid = (sp >= 0)
    vmaskf = valid.astype(jnp.float32)
    oh = jax.nn.one_hot(jnp.where(valid, sp, 0), S, dtype=jnp.float32) * vmaskf[:, None]
    sel = jnp.tile(oh, (1, E))                                       # (N, E*S)

    # same-molecule / i != j / validity pair mask, laid out per row tile:
    # rows [t*N : (t+1)*N] hold mask[j, i_local] for tile t.
    mol_id = jnp.repeat(jnp.arange(M, dtype=jnp.int32), A)
    same_mol = (mol_id[:, None] == mol_id[None, :]).astype(jnp.float32)
    pmask = same_mol * (1.0 - jnp.eye(N, dtype=jnp.float32))
    pmask = pmask * vmaskf[:, None] * vmaskf[None, :]
    pmask_tiled = pmask.reshape(N, NUM_TILES, TILE_N).transpose(1, 0, 2)
    pmask_tiled = pmask_tiled.reshape(NUM_TILES * N, TILE_N)

    # lane-major tile coordinates: rows [t*8 + d] = coordinate d of tile-t atoms.
    ct = coords.reshape(NUM_TILES, TILE_N, 3).transpose(0, 2, 1)     # (tiles, 3, T)
    ct = jnp.concatenate(
        [ct, jnp.zeros((NUM_TILES, 5, TILE_N), jnp.float32)], axis=1)
    ct = ct.reshape(NUM_TILES * 8, TILE_N)

    # unordered-species-pair one-hot over ordered (j, k) pairs; j == k rows zeroed.
    poh = jnp.einsum("js,stp,kt->jkp", oh, PM, oh).reshape(N * N, NPAIR)
    poh = poh * NEQ_JK[:, None]

    packed = pack_params(raw_params)
    energies = ani_forward_pallas(ct, pmask_tiled, sel, coords, oh, poh, packed)
    return species, energies


if __name__ == "__main__":
    key = jax.random.PRNGKey(0)
    k_sp, k_co, k_par = jax.random.split(key, 3)
    species = jax.random.randint(k_sp, (M, A), 0, S, dtype=jnp.int32)
    coordinates = 2.0 * jax.random.normal(k_co, (M, A, 3), jnp.float32)
    raw_params = init_params(k_par)

    sp_out, energies = builtin_models_forward(species, coordinates, raw_params)
    jax.block_until_ready(energies)

    assert energies.shape == (M,)
    assert energies.dtype == jnp.float32
    assert bool(jnp.all(jnp.isfinite(energies)))
    print("KERNEL_OK")
</pallas_src>

<mosaic_0001>
module attributes {stable_mosaic.version = 11 : i64} {
  func.func @fused_ani_kernel(%arg0: i32, %arg1: memref<8x8xf32, #tpu.memory_space<vmem>>, %arg2: memref<16x8xf32, #tpu.memory_space<vmem>>, %arg3: memref<8x8xf32, #tpu.memory_space<vmem>>, %arg4: memref<16x3xf32, #tpu.memory_space<vmem>>, %arg5: memref<16x4xf32, #tpu.memory_space<vmem>>, %arg6: memref<256x10xf32, #tpu.memory_space<vmem>>, %arg7: memref<8x8xf32, #tpu.memory_space<vmem>>, %arg8: memref<56x256xbf16, #tpu.memory_space<vmem>>, %arg9: memref<1x256xf32, #tpu.memory_space<vmem>>, %arg10: memref<256x128xbf16, #tpu.memory_space<vmem>>, %arg11: memref<1x128xf32, #tpu.memory_space<vmem>>, %arg12: memref<128x8xbf16, #tpu.memory_space<vmem>>, %arg13: memref<1x8xf32, #tpu.memory_space<vmem>>, %arg14: memref<8x128xf32, #tpu.memory_space<vmem>>) attributes {dimension_semantics = [#tpu.dimension_semantics<parallel>], iteration_bounds = array<i64: 2>, scalar_prefetch = 0 : i64, scratch_operands = 0 : i64, tpu.core_type = #tpu.core_type<tc>, window_params = [{transform_indices = @transform_0, window_bounds = array<i64: 8, 8>}, {transform_indices = @transform_1, window_bounds = array<i64: 16, 8>}, {transform_indices = @transform_2, window_bounds = array<i64: 8, 8>}, {pipeline_mode = #tpu.pipeline_mode<synchronous>, transform_indices = @transform_3, window_bounds = array<i64: 16, 3>}, {pipeline_mode = #tpu.pipeline_mode<synchronous>, transform_indices = @transform_4, window_bounds = array<i64: 16, 4>}, {pipeline_mode = #tpu.pipeline_mode<synchronous>, transform_indices = @transform_5, window_bounds = array<i64: 256, 10>}, {pipeline_mode = #tpu.pipeline_mode<synchronous>, transform_indices = @transform_6, window_bounds = array<i64: 8, 8>}, {pipeline_mode = #tpu.pipeline_mode<synchronous>, transform_indices = @transform_7, window_bounds = array<i64: 56, 256>}, {pipeline_mode = #tpu.pipeline_mode<synchronous>, transform_indices = @transform_8, window_bounds = array<i64: 1, 256>}, {pipeline_mode = #tpu.pipeline_mode<synchronous>, transform_indices = @transform_9, window_bounds = array<i64: 256, 128>}, {pipeline_mode = #tpu.pipeline_mode<synchronous>, transform_indices = @transform_10, window_bounds = array<i64: 1, 128>}, {pipeline_mode = #tpu.pipeline_mode<synchronous>, transform_indices = @transform_11, window_bounds = array<i64: 128, 8>}, {pipeline_mode = #tpu.pipeline_mode<synchronous>, transform_indices = @transform_12, window_bounds = array<i64: 1, 8>}, {transform_indices = @transform_13, window_bounds = array<i64: 8, 128>}]} {
    %cst = arith.constant 0.000000e+00 : f32
    %0 = vector.broadcast %cst : f32 to vector<16x8xf32>
    %c0 = arith.constant 0 : index
    %c0_0 = arith.constant 0 : index
    %1 = vector.load %arg4[%c0, %c0_0] : memref<16x3xf32, #tpu.memory_space<vmem>>, vector<16x1xf32>
    %c0_1 = arith.constant 0 : index
    %c0_2 = arith.constant 0 : index
    %2 = vector.load %arg1[%c0_1, %c0_2] : memref<8x8xf32, #tpu.memory_space<vmem>>, vector<1x8xf32>
    %3 = vector.broadcast %1 : vector<16x1xf32> to vector<16x8xf32>
    %4 = vector.broadcast %2 : vector<1x8xf32> to vector<16x8xf32>
    %5 = arith.subf %3, %4 : vector<16x8xf32>
    %6 = arith.mulf %5, %5 : vector<16x8xf32>
    %7 = arith.addf %0, %6 : vector<16x8xf32>
    %c0_3 = arith.constant 0 : index
    %c1 = arith.constant 1 : index
    %8 = vector.load %arg4[%c0_3, %c1] : memref<16x3xf32, #tpu.memory_space<vmem>>, vector<16x1xf32>
    %c1_4 = arith.constant 1 : index
    %c0_5 = arith.constant 0 : index
    %9 = vector.load %arg1[%c1_4, %c0_5] : memref<8x8xf32, #tpu.memory_space<vmem>>, vector<1x8xf32>
    %10 = vector.broadcast %8 : vector<16x1xf32> to vector<16x8xf32>
    %11 = vector.broadcast %9 : vector<1x8xf32> to vector<16x8xf32>
    %12 = arith.subf %10, %11 : vector<16x8xf32>
    %13 = arith.mulf %12, %12 : vector<16x8xf32>
    %14 = arith.addf %7, %13 : vector<16x8xf32>
    %c0_6 = arith.constant 0 : index
    %c2 = arith.constant 2 : index
    %15 = vector.load %arg4[%c0_6, %c2] : memref<16x3xf32, #tpu.memory_space<vmem>>, vector<16x1xf32>
    %c2_7 = arith.constant 2 : index
    %c0_8 = arith.constant 0 : index
    %16 = vector.load %arg1[%c2_7, %c0_8] : memref<8x8xf32, #tpu.memory_space<vmem>>, vector<1x8xf32>
    %17 = vector.broadcast %15 : vector<16x1xf32> to vector<16x8xf32>
    %18 = vector.broadcast %16 : vector<1x8xf32> to vector<16x8xf32>
    %19 = arith.subf %17, %18 : vector<16x8xf32>
    %20 = arith.mulf %19, %19 : vector<16x8xf32>
    %21 = arith.addf %14, %20 : vector<16x8xf32>
    %22 = math.sqrt %21 : vector<16x8xf32>
    %c0_9 = arith.constant 0 : index
    %c0_10 = arith.constant 0 : index
    %23 = vector.load %arg2[%c0_9, %c0_10] : memref<16x8xf32, #tpu.memory_space<vmem>>, vector<16x8xf32>
    %cst_11 = arith.constant 3.14159274 : f32
    %24 = vector.broadcast %cst_11 : f32 to vector<16x8xf32>
    %25 = arith.mulf %24, %22 : vector<16x8xf32>
    %cst_12 = arith.constant 5.200000e+00 : f32
    %26 = vector.broadcast %cst_12 : f32 to vector<16x8xf32>
    %27 = arith.divf %25, %26 : vector<16x8xf32>
    %28 = math.cos %27 : vector<16x8xf32>
    %cst_13 = arith.constant 5.000000e-01 : f32
    %29 = vector.broadcast %cst_13 : f32 to vector<16x8xf32>
    %30 = arith.mulf %29, %28 : vector<16x8xf32>
    %cst_14 = arith.constant 5.000000e-01 : f32
    %31 = vector.broadcast %cst_14 : f32 to vector<16x8xf32>
    %32 = arith.addf %30, %31 : vector<16x8xf32>
    %cst_15 = arith.constant 5.200000e+00 : f32
    %33 = vector.broadcast %cst_15 : f32 to vector<16x8xf32>
    %34 = arith.cmpf olt, %22, %33 : vector<16x8xf32>
    %cst_16 = arith.constant 0.000000e+00 : f32
    %35 = vector.broadcast %cst_16 : f32 to vector<16x8xf32>
    %36 = arith.select %34, %32, %35 : vector<16x8xi1>, vector<16x8xf32>
    %37 = arith.mulf %36, %23 : vector<16x8xf32>
    %cst_17 = arith.constant 3.14159274 : f32
    %38 = vector.broadcast %cst_17 : f32 to vector<16x8xf32>
    %39 = arith.mulf %38, %22 : vector<16x8xf32>
    %cst_18 = arith.constant 3.500000e+00 : f32
    %40 = vector.broadcast %cst_18 : f32 to vector<16x8xf32>
    %41 = arith.divf %39, %40 : vector<16x8xf32>
    %42 = math.cos %41 : vector<16x8xf32>
    %cst_19 = arith.constant 5.000000e-01 : f32
    %43 = vector.broadcast %cst_19 : f32 to vector<16x8xf32>
    %44 = arith.mulf %43, %42 : vector<16x8xf32>
    %cst_20 = arith.constant 5.000000e-01 : f32
    %45 = vector.broadcast %cst_20 : f32 to vector<16x8xf32>
    %46 = arith.addf %44, %45 : vector<16x8xf32>
    %cst_21 = arith.constant 3.500000e+00 : f32
    %47 = vector.broadcast %cst_21 : f32 to vector<16x8xf32>
    %48 = arith.cmpf olt, %22, %47 : vector<16x8xf32>
    %cst_22 = arith.constant 0.000000e+00 : f32
    %49 = vector.broadcast %cst_22 : f32 to vector<16x8xf32>
    %50 = arith.select %48, %46, %49 : vector<16x8xi1>, vector<16x8xf32>
    %51 = arith.mulf %50, %23 : vector<16x8xf32>
    %c0_23 = arith.constant 0 : index
    %c0_24 = arith.constant 0 : index
    %52 = vector.load %arg5[%c0_23, %c0_24] : memref<16x4xf32, #tpu.memory_space<vmem>>, vector<16x4xf32>
    %cst_25 = arith.constant 0.899999976 : f32
    %53 = vector.broadcast %cst_25 : f32 to vector<16x8xf32>
    %54 = arith.subf %22, %53 : vector<16x8xf32>
    %55 = arith.mulf %54, %54 : vector<16x8xf32>
    %cst_26 = arith.constant -1.600000e+01 : f32
    %56 = vector.broadcast %cst_26 : f32 to vector<16x8xf32>
    %57 = arith.mulf %56, %55 : vector<16x8xf32>
    %58 = math.exp %57 : vector<16x8xf32>
    %cst_27 = arith.constant 2.500000e-01 : f32
    %59 = vector.broadcast %cst_27 : f32 to vector<16x8xf32>
    %60 = arith.mulf %59, %58 : vector<16x8xf32>
    %61 = arith.mulf %60, %37 : vector<16x8xf32>
    %cst_28 = arith.constant dense<0.000000e+00> : vector<8x4xf32>
    %62 = tpu.matmul %61, %52, %cst_28 {dimension_numbers = #tpu.dot_dimension_numbers<[0], [0], [1], [1], [0, 1, 1, 1], [], []>} : vector<16x8xf32>, vector<16x4xf32>, vector<8x4xf32> -> vector<8x4xf32>
    %cst_29 = arith.constant 2.100000e+00 : f32
    %63 = vector.broadcast %cst_29 : f32 to vector<16x8xf32>
    %64 = arith.subf %22, %63 : vector<16x8xf32>
    %65 = arith.mulf %64, %64 : vector<16x8xf32>
    %cst_30 = arith.constant -1.600000e+01 : f32
    %66 = vector.broadcast %cst_30 : f32 to vector<16x8xf32>
    %67 = arith.mulf %66, %65 : vector<16x8xf32>
    %68 = math.exp %67 : vector<16x8xf32>
    %cst_31 = arith.constant 2.500000e-01 : f32
    %69 = vector.broadcast %cst_31 : f32 to vector<16x8xf32>
    %70 = arith.mulf %69, %68 : vector<16x8xf32>
    %71 = arith.mulf %70, %37 : vector<16x8xf32>
    %cst_32 = arith.constant dense<0.000000e+00> : vector<8x4xf32>
    %72 = tpu.matmul %71, %52, %cst_32 {dimension_numbers = #tpu.dot_dimension_numbers<[0], [0], [1], [1], [0, 1, 1, 1], [], []>} : vector<16x8xf32>, vector<16x4xf32>, vector<8x4xf32> -> vector<8x4xf32>
    %cst_33 = arith.constant 3.300000e+00 : f32
    %73 = vector.broadcast %cst_33 : f32 to vector<16x8xf32>
    %74 = arith.subf %22, %73 : vector<16x8xf32>
    %75 = arith.mulf %74, %74 : vector<16x8xf32>
    %cst_34 = arith.constant -1.600000e+01 : f32
    %76 = vector.broadcast %cst_34 : f32 to vector<16x8xf32>
    %77 = arith.mulf %76, %75 : vector<16x8xf32>
    %78 = math.exp %77 : vector<16x8xf32>
    %cst_35 = arith.constant 2.500000e-01 : f32
    %79 = vector.broadcast %cst_35 : f32 to vector<16x8xf32>
    %80 = arith.mulf %79, %78 : vector<16x8xf32>
    %81 = arith.mulf %80, %37 : vector<16x8xf32>
    %cst_36 = arith.constant dense<0.000000e+00> : vector<8x4xf32>
    %82 = tpu.matmul %81, %52, %cst_36 {dimension_numbers = #tpu.dot_dimension_numbers<[0], [0], [1], [1], [0, 1, 1, 1], [], []>} : vector<16x8xf32>, vector<16x4xf32>, vector<8x4xf32> -> vector<8x4xf32>
    %cst_37 = arith.constant 4.500000e+00 : f32
    %83 = vector.broadcast %cst_37 : f32 to vector<16x8xf32>
    %84 = arith.subf %22, %83 : vector<16x8xf32>
    %85 = arith.mulf %84, %84 : vector<16x8xf32>
    %cst_38 = arith.constant -1.600000e+01 : f32
    %86 = vector.broadcast %cst_38 : f32 to vector<16x8xf32>
    %87 = arith.mulf %86, %85 : vector<16x8xf32>
    %88 = math.exp %87 : vector<16x8xf32>
    %cst_39 = arith.constant 2.500000e-01 : f32
    %89 = vector.broadcast %cst_39 : f32 to vector<16x8xf32>
    %90 = arith.mulf %89, %88 : vector<16x8xf32>
    %91 = arith.mulf %90, %37 : vector<16x8xf32>
    %cst_40 = arith.constant dense<0.000000e+00> : vector<8x4xf32>
    %92 = tpu.matmul %91, %52, %cst_40 {dimension_numbers = #tpu.dot_dimension_numbers<[0], [0], [1], [1], [0, 1, 1, 1], [], []>} : vector<16x8xf32>, vector<16x4xf32>, vector<8x4xf32> -> vector<8x4xf32>
    %93 = vector.shape_cast %22 : vector<16x8xf32> to vector<16x1x8xf32>
    %94 = vector.shape_cast %93 : vector<16x1x8xf32> to vector<16x1x8xf32>
    %95 = vector.broadcast %94 : vector<16x1x8xf32> to vector<16x16x8xf32>
    %96 = vector.shape_cast %95 : vector<16x16x8xf32> to vector<256x8xf32>
    %97 = vector.shape_cast %22 : vector<16x8xf32> to vector<1x16x8xf32>
    %98 = vector.shape_cast %97 : vector<1x16x8xf32> to vector<1x16x8xf32>
    %99 = vector.broadcast %98 : vector<1x16x8xf32> to vector<16x16x8xf32>
    %100 = vector.shape_cast %99 : vector<16x16x8xf32> to vector<256x8xf32>
    %101 = vector.shape_cast %51 : vector<16x8xf32> to vector<16x1x8xf32>
    %102 = vector.shape_cast %101 : vector<16x1x8xf32> to vector<16x1x8xf32>
    %103 = vector.broadcast %102 : vector<16x1x8xf32> to vector<16x16x8xf32>
    %104 = vector.shape_cast %103 : vector<16x16x8xf32> to vector<256x8xf32>
    %105 = vector.shape_cast %51 : vector<16x8xf32> to vector<1x16x8xf32>
    %106 = vector.shape_cast %105 : vector<1x16x8xf32> to vector<1x16x8xf32>
    %107 = vector.broadcast %106 : vector<1x16x8xf32> to vector<16x16x8xf32>
    %108 = vector.shape_cast %107 : vector<16x16x8xf32> to vector<256x8xf32>
    %109 = arith.mulf %104, %108 : vector<256x8xf32>
    %110 = vector.shape_cast %5 : vector<16x8xf32> to vector<16x1x8xf32>
    %111 = vector.shape_cast %110 : vector<16x1x8xf32> to vector<16x1x8xf32>
    %112 = vector.broadcast %111 : vector<16x1x8xf32> to vector<16x16x8xf32>
    %113 = vector.shape_cast %112 : vector<16x16x8xf32> to vector<256x8xf32>
    %114 = vector.shape_cast %5 : vector<16x8xf32> to vector<1x16x8xf32>
    %115 = vector.shape_cast %114 : vector<1x16x8xf32> to vector<1x16x8xf32>
    %116 = vector.broadcast %115 : vector<1x16x8xf32> to vector<16x16x8xf32>
    %117 = vector.shape_cast %116 : vector<16x16x8xf32> to vector<256x8xf32>
    %118 = arith.mulf %113, %117 : vector<256x8xf32>
    %119 = vector.shape_cast %12 : vector<16x8xf32> to vector<16x1x8xf32>
    %120 = vector.shape_cast %119 : vector<16x1x8xf32> to vector<16x1x8xf32>
    %121 = vector.broadcast %120 : vector<16x1x8xf32> to vector<16x16x8xf32>
    %122 = vector.shape_cast %121 : vector<16x16x8xf32> to vector<256x8xf32>
    %123 = vector.shape_cast %12 : vector<16x8xf32> to vector<1x16x8xf32>
    %124 = vector.shape_cast %123 : vector<1x16x8xf32> to vector<1x16x8xf32>
    %125 = vector.broadcast %124 : vector<1x16x8xf32> to vector<16x16x8xf32>
    %126 = vector.shape_cast %125 : vector<16x16x8xf32> to vector<256x8xf32>
    %127 = arith.mulf %122, %126 : vector<256x8xf32>
    %128 = arith.addf %118, %127 : vector<256x8xf32>
    %129 = vector.shape_cast %19 : vector<16x8xf32> to vector<16x1x8xf32>
    %130 = vector.shape_cast %129 : vector<16x1x8xf32> to vector<16x1x8xf32>
    %131 = vector.broadcast %130 : vector<16x1x8xf32> to vector<16x16x8xf32>
    %132 = vector.shape_cast %131 : vector<16x16x8xf32> to vector<256x8xf32>
    %133 = vector.shape_cast %19 : vector<16x8xf32> to vector<1x16x8xf32>
    %134 = vector.shape_cast %133 : vector<1x16x8xf32> to vector<1x16x8xf32>
    %135 = vector.broadcast %134 : vector<1x16x8xf32> to vector<16x16x8xf32>
    %136 = vector.shape_cast %135 : vector<16x16x8xf32> to vector<256x8xf32>
    %137 = arith.mulf %132, %136 : vector<256x8xf32>
    %138 = arith.addf %128, %137 : vector<256x8xf32>
    %cst_41 = arith.constant 0.949999988 : f32
    %139 = vector.broadcast %cst_41 : f32 to vector<256x8xf32>
    %140 = arith.mulf %139, %138 : vector<256x8xf32>
    %141 = arith.mulf %96, %100 : vector<256x8xf32>
    %cst_42 = arith.constant 9.99999997E-7 : f32
    %142 = vector.broadcast %cst_42 : f32 to vector<256x8xf32>
    %143 = arith.addf %141, %142 : vector<256x8xf32>
    %144 = arith.divf %140, %143 : vector<256x8xf32>
    %145 = arith.mulf %144, %144 : vector<256x8xf32>
    %cst_43 = arith.constant 1.000000e+00 : f32
    %146 = vector.broadcast %cst_43 : f32 to vector<256x8xf32>
    %147 = arith.subf %146, %145 : vector<256x8xf32>
    %148 = math.sqrt %147 : vector<256x8xf32>
    %149 = arith.addf %96, %100 : vector<256x8xf32>
    %cst_44 = arith.constant 5.000000e-01 : f32
    %150 = vector.broadcast %cst_44 : f32 to vector<256x8xf32>
    %151 = arith.mulf %150, %149 : vector<256x8xf32>
    %cst_45 = arith.constant 0.899999976 : f32
    %152 = vector.broadcast %cst_45 : f32 to vector<256x8xf32>
    %153 = arith.subf %151, %152 : vector<256x8xf32>
    %154 = arith.mulf %153, %153 : vector<256x8xf32>
    %cst_46 = arith.constant -8.000000e+00 : f32
    %155 = vector.broadcast %cst_46 : f32 to vector<256x8xf32>
    %156 = arith.mulf %155, %154 : vector<256x8xf32>
    %157 = math.exp %156 : vector<256x8xf32>
    %158 = arith.mulf %109, %157 : vector<256x8xf32>
    %cst_47 = arith.constant 2.200000e+00 : f32
    %159 = vector.broadcast %cst_47 : f32 to vector<256x8xf32>
    %160 = arith.subf %151, %159 : vector<256x8xf32>
    %161 = arith.mulf %160, %160 : vector<256x8xf32>
    %cst_48 = arith.constant -8.000000e+00 : f32
    %162 = vector.broadcast %cst_48 : f32 to vector<256x8xf32>
    %163 = arith.mulf %162, %161 : vector<256x8xf32>
    %164 = math.exp %163 : vector<256x8xf32>
    %165 = arith.mulf %109, %164 : vector<256x8xf32>
    %c0_49 = arith.constant 0 : index
    %c0_50 = arith.constant 0 : index
    %166 = vector.load %arg6[%c0_49, %c0_50] : memref<256x10xf32, #tpu.memory_space<vmem>>, vector<256x10xf32>
    %cst_51 = arith.constant 0.707106769 : f32
    %167 = vector.broadcast %cst_51 : f32 to vector<256x8xf32>
    %168 = arith.mulf %144, %167 : vector<256x8xf32>
    %cst_52 = arith.constant 1.000000e+00 : f32
    %169 = vector.broadcast %cst_52 : f32 to vector<256x8xf32>
    %170 = arith.addf %169, %168 : vector<256x8xf32>
    %cst_53 = arith.constant 0.707106769 : f32
    %171 = vector.broadcast %cst_53 : f32 to vector<256x8xf32>
    %172 = arith.mulf %148, %171 : vector<256x8xf32>
    %173 = arith.addf %170, %172 : vector<256x8xf32>
    %cst_54 = arith.constant 5.000000e-01 : f32
    %174 = vector.broadcast %cst_54 : f32 to vector<256x8xf32>
    %175 = arith.mulf %174, %173 : vector<256x8xf32>
    %176 = arith.mulf %175, %175 : vector<256x8xf32>
    %177 = arith.mulf %176, %176 : vector<256x8xf32>
    %178 = arith.mulf %177, %177 : vector<256x8xf32>
    %179 = arith.mulf %178, %158 : vector<256x8xf32>
    %cst_55 = arith.constant dense<0.000000e+00> : vector<8x10xf32>
    %180 = tpu.matmul %179, %166, %cst_55 {dimension_numbers = #tpu.dot_dimension_numbers<[0], [0], [1], [1], [0, 1, 1, 1], [], []>} : vector<256x8xf32>, vector<256x10xf32>, vector<8x10xf32> -> vector<8x10xf32>
    %181 = arith.mulf %178, %165 : vector<256x8xf32>
    %cst_56 = arith.constant dense<0.000000e+00> : vector<8x10xf32>
    %182 = tpu.matmul %181, %166, %cst_56 {dimension_numbers = #tpu.dot_dimension_numbers<[0], [0], [1], [1], [0, 1, 1, 1], [], []>} : vector<256x8xf32>, vector<256x10xf32>, vector<8x10xf32> -> vector<8x10xf32>
    %cst_57 = arith.constant -0.707106769 : f32
    %183 = vector.broadcast %cst_57 : f32 to vector<256x8xf32>
    %184 = arith.mulf %144, %183 : vector<256x8xf32>
    %cst_58 = arith.constant 1.000000e+00 : f32
    %185 = vector.broadcast %cst_58 : f32 to vector<256x8xf32>
    %186 = arith.addf %185, %184 : vector<256x8xf32>
    %cst_59 = arith.constant 0.707106769 : f32
    %187 = vector.broadcast %cst_59 : f32 to vector<256x8xf32>
    %188 = arith.mulf %148, %187 : vector<256x8xf32>
    %189 = arith.addf %186, %188 : vector<256x8xf32>
    %cst_60 = arith.constant 5.000000e-01 : f32
    %190 = vector.broadcast %cst_60 : f32 to vector<256x8xf32>
    %191 = arith.mulf %190, %189 : vector<256x8xf32>
    %192 = arith.mulf %191, %191 : vector<256x8xf32>
    %193 = arith.mulf %192, %192 : vector<256x8xf32>
    %194 = arith.mulf %193, %193 : vector<256x8xf32>
    %195 = arith.mulf %194, %158 : vector<256x8xf32>
    %cst_61 = arith.constant dense<0.000000e+00> : vector<8x10xf32>
    %196 = tpu.matmul %195, %166, %cst_61 {dimension_numbers = #tpu.dot_dimension_numbers<[0], [0], [1], [1], [0, 1, 1, 1], [], []>} : vector<256x8xf32>, vector<256x10xf32>, vector<8x10xf32> -> vector<8x10xf32>
    %197 = arith.mulf %194, %165 : vector<256x8xf32>
    %cst_62 = arith.constant dense<0.000000e+00> : vector<8x10xf32>
    %198 = tpu.matmul %197, %166, %cst_62 {dimension_numbers = #tpu.dot_dimension_numbers<[0], [0], [1], [1], [0, 1, 1, 1], [], []>} : vector<256x8xf32>, vector<256x10xf32>, vector<8x10xf32> -> vector<8x10xf32>
    %199 = tpu.concatenate %62, %72, %82, %92, %180, %182, %196, %198 in 1 : vector<8x4xf32>, vector<8x4xf32>, vector<8x4xf32>, vector<8x4xf32>, vector<8x10xf32>, vector<8x10xf32>, vector<8x10xf32>, vector<8x10xf32> -> vector<8x56xf32>
    %200 = arith.truncf %199 : vector<8x56xf32> to vector<8x56xbf16>
    %c0_63 = arith.constant 0 : index
    %c0_64 = arith.constant 0 : index
    %201 = vector.load %arg8[%c0_63, %c0_64] : memref<56x256xbf16, #tpu.memory_space<vmem>>, vector<56x256xbf16>
    %cst_65 = arith.constant dense<0.000000e+00> : vector<8x256xf32>
    %202 = tpu.matmul %200, %201, %cst_65 {dimension_numbers = #tpu.dot_dimension_numbers<[1], [0], [0], [1], [0, 0, 1, 1], [], []>} : vector<8x56xbf16>, vector<56x256xbf16>, vector<8x256xf32> -> vector<8x256xf32>
    %c0_66 = arith.constant 0 : index
    %c0_67 = arith.constant 0 : index
    %203 = vector.load %arg9[%c0_66, %c0_67] : memref<1x256xf32, #tpu.memory_space<vmem>>, vector<1x256xf32>
    %204 = vector.broadcast %203 : vector<1x256xf32> to vector<8x256xf32>
    %205 = arith.addf %202, %204 : vector<8x256xf32>
    %cst_68 = arith.constant 0.000000e+00 : f32
    %206 = vector.broadcast %cst_68 : f32 to vector<8x256xf32>
    %207 = arith.cmpf ogt, %205, %206 : vector<8x256xf32>
    %cst_69 = arith.constant 0.000000e+00 : f32
    %208 = vector.broadcast %cst_69 : f32 to vector<8x256xf32>
    %209 = arith.minimumf %205, %208 : vector<8x256xf32>
    %cst_70 = arith.constant 1.000000e-01 : f32
    %210 = vector.broadcast %cst_70 : f32 to vector<8x256xf32>
    %211 = arith.divf %209, %210 : vector<8x256xf32>
    %212 = math.exp %211 : vector<8x256xf32>
    %cst_71 = arith.constant 1.000000e+00 : f32
    %213 = vector.broadcast %cst_71 : f32 to vector<8x256xf32>
    %214 = arith.subf %212, %213 : vector<8x256xf32>
    %cst_72 = arith.constant 1.000000e-01 : f32
    %215 = vector.broadcast %cst_72 : f32 to vector<8x256xf32>
    %216 = arith.mulf %215, %214 : vector<8x256xf32>
    %217 = arith.select %207, %205, %216 : vector<8x256xi1>, vector<8x256xf32>
    %218 = arith.truncf %217 : vector<8x256xf32> to vector<8x256xbf16>
    %c0_73 = arith.constant 0 : index
    %c0_74 = arith.constant 0 : index
    %219 = vector.load %arg10[%c0_73, %c0_74] : memref<256x128xbf16, #tpu.memory_space<vmem>>, vector<256x128xbf16>
    %cst_75 = arith.constant dense<0.000000e+00> : vector<8x128xf32>
    %220 = tpu.matmul %218, %219, %cst_75 {dimension_numbers = #tpu.dot_dimension_numbers<[1], [0], [0], [1], [0, 0, 1, 1], [], []>} : vector<8x256xbf16>, vector<256x128xbf16>, vector<8x128xf32> -> vector<8x128xf32>
    %c0_76 = arith.constant 0 : index
    %c0_77 = arith.constant 0 : index
    %221 = vector.load %arg11[%c0_76, %c0_77] : memref<1x128xf32, #tpu.memory_space<vmem>>, vector<1x128xf32>
    %222 = vector.broadcast %221 : vector<1x128xf32> to vector<8x128xf32>
    %223 = arith.addf %220, %222 : vector<8x128xf32>
    %cst_78 = arith.constant 0.000000e+00 : f32
    %224 = vector.broadcast %cst_78 : f32 to vector<8x128xf32>
    %225 = arith.cmpf ogt, %223, %224 : vector<8x128xf32>
    %cst_79 = arith.constant 0.000000e+00 : f32
    %226 = vector.broadcast %cst_79 : f32 to vector<8x128xf32>
    %227 = arith.minimumf %223, %226 : vector<8x128xf32>
    %cst_80 = arith.constant 1.000000e-01 : f32
    %228 = vector.broadcast %cst_80 : f32 to vector<8x128xf32>
    %229 = arith.divf %227, %228 : vector<8x128xf32>
    %230 = math.exp %229 : vector<8x128xf32>
    %cst_81 = arith.constant 1.000000e+00 : f32
    %231 = vector.broadcast %cst_81 : f32 to vector<8x128xf32>
    %232 = arith.subf %230, %231 : vector<8x128xf32>
    %cst_82 = arith.constant 1.000000e-01 : f32
    %233 = vector.broadcast %cst_82 : f32 to vector<8x128xf32>
    %234 = arith.mulf %233, %232 : vector<8x128xf32>
    %235 = arith.select %225, %223, %234 : vector<8x128xi1>, vector<8x128xf32>
    %236 = arith.truncf %235 : vector<8x128xf32> to vector<8x128xbf16>
    %c0_83 = arith.constant 0 : index
    %c0_84 = arith.constant 0 : index
    %237 = vector.load %arg12[%c0_83, %c0_84] : memref<128x8xbf16, #tpu.memory_space<vmem>>, vector<128x8xbf16>
    %cst_85 = arith.constant dense<0.000000e+00> : vector<8x8xf32>
    %238 = tpu.matmul %236, %237, %cst_85 {dimension_numbers = #tpu.dot_dimension_numbers<[1], [0], [0], [1], [0, 0, 1, 1], [], []>} : vector<8x128xbf16>, vector<128x8xbf16>, vector<8x8xf32> -> vector<8x8xf32>
    %c0_86 = arith.constant 0 : index
    %c0_87 = arith.constant 0 : index
    %239 = vector.load %arg13[%c0_86, %c0_87] : memref<1x8xf32, #tpu.memory_space<vmem>>, vector<1x8xf32>
    %240 = vector.broadcast %239 : vector<1x8xf32> to vector<8x8xf32>
    %241 = arith.addf %238, %240 : vector<8x8xf32>
    %c0_88 = arith.constant 0 : index
    %c0_89 = arith.constant 0 : index
    %242 = vector.load %arg3[%c0_88, %c0_89] : memref<8x8xf32, #tpu.memory_space<vmem>>, vector<8x8xf32>
    %243 = arith.mulf %241, %242 : vector<8x8xf32>
    %cst_90 = arith.constant dense<0.000000e+00> : vector<8xf32>
    %244 = vector.multi_reduction <add>, %243, %cst_90 [1] : vector<8x8xf32> to vector<8xf32>
    %245 = vector.shape_cast %244 : vector<8xf32> to vector<8x1xf32>
    %cst_91 = arith.constant 5.000000e-01 : f32
    %246 = vector.broadcast %cst_91 : f32 to vector<8x1xf32>
    %247 = arith.mulf %245, %246 : vector<8x1xf32>
    %c0_92 = arith.constant 0 : index
    %c0_93 = arith.constant 0 : index
    %248 = vector.load %arg7[%c0_92, %c0_93] : memref<8x8xf32, #tpu.memory_space<vmem>>, vector<8x8xf32>
    %249 = vector.shape_cast %247 : vector<8x1xf32> to vector<8x1xf32>
    %250 = vector.broadcast %249 : vector<8x1xf32> to vector<8x128xf32>
    %cst_94 = arith.constant dense<0.000000e+00> : vector<8x128xf32>
    %251 = tpu.matmul %248, %250, %cst_94 {dimension_numbers = #tpu.dot_dimension_numbers<[1], [0], [0], [1], [0, 0, 1, 1], [], []>} : vector<8x8xf32>, vector<8x128xf32>, vector<8x128xf32> -> vector<8x128xf32>
    %c0_95 = arith.constant 0 : index
    %c0_96 = arith.constant 0 : index
    %252 = vector.load %arg14[%c0_95, %c0_96] : memref<8x128xf32, #tpu.memory_space<vmem>>, vector<8x128xf32>
    tpu.vector_store %arg14[%c0_95, %c0_96], %251 {strides = array<i32>} : memref<8x128xf32, #tpu.memory_space<vmem>>, vector<8x128xf32>,
    return
  }
  func.func @transform_0(%arg0: i32) -> (i32, i32) {
    %c0_i32 = arith.constant 0 : i32
    %c0_i32_0 = arith.constant 0 : i32
    return %arg0, %c0_i32 : i32, i32
  }
  func.func @transform_1(%arg0: i32) -> (i32, i32) {
    %c0_i32 = arith.constant 0 : i32
    %c0_i32_0 = arith.constant 0 : i32
    return %arg0, %c0_i32 : i32, i32
  }
  func.func @transform_2(%arg0: i32) -> (i32, i32) {
    %c0_i32 = arith.constant 0 : i32
    %c0_i32_0 = arith.constant 0 : i32
    return %arg0, %c0_i32 : i32, i32
  }
  func.func @transform_3(%arg0: i32) -> (i32, i32) {
    %c0_i32 = arith.constant 0 : i32
    %c0_i32_0 = arith.constant 0 : i32
    %c0_i32_1 = arith.constant 0 : i32
    return %c0_i32, %c0_i32_0 : i32, i32
  }
  func.func @transform_4(%arg0: i32) -> (i32, i32) {
    %c0_i32 = arith.constant 0 : i32
    %c0_i32_0 = arith.constant 0 : i32
    %c0_i32_1 = arith.constant 0 : i32
    return %c0_i32, %c0_i32_0 : i32, i32
  }
  func.func @transform_5(%arg0: i32) -> (i32, i32) {
    %c0_i32 = arith.constant 0 : i32
    %c0_i32_0 = arith.constant 0 : i32
    %c0_i32_1 = arith.constant 0 : i32
    return %c0_i32, %c0_i32_0 : i32, i32
  }
  func.func @transform_6(%arg0: i32) -> (i32, i32) {
    %c0_i32 = arith.constant 0 : i32
    %c0_i32_0 = arith.constant 0 : i32
    %c0_i32_1 = arith.constant 0 : i32
    return %c0_i32, %c0_i32_0 : i32, i32
  }
  func.func @transform_7(%arg0: i32) -> (i32, i32) {
    %c0_i32 = arith.constant 0 : i32
    %c0_i32_0 = arith.constant 0 : i32
    %c0_i32_1 = arith.constant 0 : i32
    return %c0_i32, %c0_i32_0 : i32, i32
  }
  func.func @transform_8(%arg0: i32) -> (i32, i32) {
    %c0_i32 = arith.constant 0 : i32
    %c0_i32_0 = arith.constant 0 : i32
    %c0_i32_1 = arith.constant 0 : i32
    return %c0_i32, %c0_i32_0 : i32, i32
  }
  func.func @transform_9(%arg0: i32) -> (i32, i32) {
    %c0_i32 = arith.constant 0 : i32
    %c0_i32_0 = arith.constant 0 : i32
    %c0_i32_1 = arith.constant 0 : i32
    return %c0_i32, %c0_i32_0 : i32, i32
  }
  func.func @transform_10(%arg0: i32) -> (i32, i32) {
    %c0_i32 = arith.constant 0 : i32
    %c0_i32_0 = arith.constant 0 : i32
    %c0_i32_1 = arith.constant 0 : i32
    return %c0_i32, %c0_i32_0 : i32, i32
  }
  func.func @transform_11(%arg0: i32) -> (i32, i32) {
    %c0_i32 = arith.constant 0 : i32
    %c0_i32_0 = arith.constant 0 : i32
    %c0_i32_1 = arith.constant 0 : i32
    return %c0_i32, %c0_i32_0 : i32, i32
  }
  func.func @transform_12(%arg0: i32) -> (i32, i32) {
    %c0_i32 = arith.constant 0 : i32
    %c0_i32_0 = arith.constant 0 : i32
    %c0_i32_1 = arith.constant 0 : i32
    return %c0_i32, %c0_i32_0 : i32, i32
  }
  func.func @transform_13(%arg0: i32) -> (i32, i32) {
    %c0_i32 = arith.constant 0 : i32
    %c0_i32_0 = arith.constant 0 : i32
    return %arg0, %c0_i32 : i32, i32
  }
}

</mosaic_0001>

<llo_original>
// kernel: tpu_custom_call.1
$region0: #{tpu_custom_call.1}
  #allocation0 [shape = 'u32[]', space=smem, size = 0x4, offset = 0x4, fixed_abs, tag = 'smem constant byte address 0x4 - core index']
  #allocation1 [shape = 'u32[144,128]{1,0:T(1,128)}', space=vmem, size = 0x12000, scoped, tag = 'internal scratch']
  %s0 = inlined_call_operand.vmem [shape: f32[16,8], index: 0, kind: input, shape index: {}]
  %s1 = inlined_call_operand.vmem [shape: f32[32,8], index: 1, kind: input, shape index: {}]
  %s2 = inlined_call_operand.vmem [shape: f32[16,8], index: 2, kind: input, shape index: {}]
  %s3 = inlined_call_operand.vmem [shape: f32[16,3], index: 3, kind: input, shape index: {}]
  %s4 = inlined_call_operand.vmem [shape: f32[16,4], index: 4, kind: input, shape index: {}]
  %s5 = inlined_call_operand.vmem [shape: f32[256,10], index: 5, kind: input, shape index: {}]
  %s6 = inlined_call_operand.vmem [shape: f32[8,8], index: 6, kind: input, shape index: {}]
  %s7 = inlined_call_operand.vmem [shape: bf16[56,256], index: 7, kind: input, shape index: {}]
  %s8 = inlined_call_operand.vmem [shape: f32[1,256], index: 8, kind: input, shape index: {}]
  %s9 = inlined_call_operand.vmem [shape: bf16[256,128], index: 9, kind: input, shape index: {}]
  %s10 = inlined_call_operand.vmem [shape: f32[1,128], index: 10, kind: input, shape index: {}]
  %s11 = inlined_call_operand.vmem [shape: bf16[128,8], index: 11, kind: input, shape index: {}]
  %s12 = inlined_call_operand.vmem [shape: f32[1,8], index: 12, kind: input, shape index: {}]
  %s13 = inlined_call_operand.hbm [shape: f32[16,128], index: 13, kind: output, shape index: {}]
  %s14 = sld [smem:[#allocation0]]
  $region85: #{tpu_custom_call.1} parent=0
    _
  %s16 = ssub.s32 1, %s14
  %s17 = scalar_select 0, %s16, %s14
  $region1: #{tpu_custom_call.1} parent=0
    #allocation2 [shape = 'u8[8192]{0}', space=vmem, size = 0x2000, scoped, tag = 'output window, operand 0']
    #allocation3 [shape = 's32[2]{0}', space=sflag, size = 0x8, scoped, tag = 'scoped memory for tpu_custom_call.1']
    %18 = vsyncpa [#allocation3], 0
    %s19 = scalar_lea.sflag [#allocation3], 1
    %20 = vsyncpa %s19, 0
    loop: start=0, step=1, limit=4
    $region2: #{tpu_custom_call.1} parent=1 // loop_pre_header
      _
    $region3: #{tpu_custom_call.1} parent=1 // loop_header
      %s22 = sphi 0, %s26
      %p23 = scmp.ge.s32.totalorder %s22, 4
      %s32 = sphi 0, %s34
      %s35 = sphi 0, %s32
      %s36 = sphi 0, %s35
      %s52 = sphi 0, %s36
      %s58 = sphi 0, %s60
      %s61 = sphi 0, %s58
      %s62 = sphi 0, %s61
      %s78 = sphi 0, %s62
      %s84 = sphi 0, %s86
      %s87 = sphi 0, %s84
      %s88 = sphi 0, %s87
      %s104 = sphi 0, %s88
      %s108 = sphi 0, %s108
      %s110 = sphi 0, %s108
      %s111 = sphi 0, %s110
      %s125 = sphi 0, %s111
      %s129 = sphi 0, %s129
      %s131 = sphi 0, %s129
      %s132 = sphi 0, %s131
      %s146 = sphi 0, %s132
      %s150 = sphi 0, %s150
      %s152 = sphi 0, %s150
      %s153 = sphi 0, %s152
      %s167 = sphi 0, %s153
      %s171 = sphi 0, %s171
      %s173 = sphi 0, %s171
      %s174 = sphi 0, %s173
      %s188 = sphi 0, %s174
      %s192 = sphi 0, %s192
      %s194 = sphi 0, %s192
      %s195 = sphi 0, %s194
      %s209 = sphi 0, %s195
      %s213 = sphi 0, %s213
      %s215 = sphi 0, %s213
      %s216 = sphi 0, %s215
      %s230 = sphi 0, %s216
      %s234 = sphi 0, %s234
      %s236 = sphi 0, %s234
      %s237 = sphi 0, %s236
      %s251 = sphi 0, %s237
      %s255 = sphi 0, %s255
      %s257 = sphi 0, %s255
      %s258 = sphi 0, %s257
      %s272 = sphi 0, %s258
      %s276 = sphi 0, %s276
      %s278 = sphi 0, %s276
      %s279 = sphi 0, %s278
      %s293 = sphi 0, %s279
      %s297 = sphi 0, %s297
      %s299 = sphi 0, %s297
      %s300 = sphi 0, %s299
      %s314 = sphi 0, %s300
      %s320 = sphi 0, %s322
      %s323 = sphi 0, %s320
      %s324 = sphi 0, %s323
      %s340 = sphi 0, %s324
    $region4: #{tpu_custom_call.1} parent=1 // loop_header_branch
      %25 = sbr.rel (%p23) target = $region8
    $region5: #{tpu_custom_call.1} parent=1 // loop_body
      %s27 = ssub.s32 %s22, 1
      %s28 = ssub.s32 %s22, 2
      %s29 = sadd.s32 %s22, 1
      %s30 = ssub.s32 %s22, %s29
      %p31 = scmp.eq.s32.totalorder %s30, 0
      %s33 = sadd.s32 %s32, 1
      %s34 = scalar_select %p31, %s32, %s33
      %p37 = pneg %p31
      %p38 = scmp.eq.s32.totalorder %s22, 1
      %p39 = por %p37, %p38
      %p40 = scmp.ne.s32.totalorder %s32, %s35
      %p41 = scmp.eq.s32.totalorder %s22, 0
      %p42 = por %p40, %p41
      %p43 = scmp.ne.s32.totalorder %s32, %s35
      %p44 = scmp.eq.s32.totalorder %s27, 1
      %p45 = por %p43, %p44
      %p46 = scmp.ne.s32.totalorder %s35, %s36
      %p47 = scmp.eq.s32.totalorder %s27, 0
      %p48 = por %p46, %p47
      %p49 = scmp.ne.s32.totalorder %s35, %s36
      %p50 = scmp.eq.s32.totalorder %s28, 1
      %p51 = por %p49, %p50
      %p53 = scmp.ne.s32.totalorder %s36, %s52
      %p54 = scmp.eq.s32.totalorder %s28, 0
      %p55 = por %p53, %p54
      %s56 = ssub.s32 %s22, %s29
      %p57 = scmp.eq.s32.totalorder %s56, 0
      %s59 = sadd.s32 %s58, 1
      %s60 = scalar_select %p57, %s58, %s59
      %p63 = pneg %p57
      %p64 = scmp.eq.s32.totalorder %s22, 1
      %p65 = por %p63, %p64
      %p66 = scmp.ne.s32.totalorder %s58, %s61
      %p67 = scmp.eq.s32.totalorder %s22, 0
      %p68 = por %p66, %p67
      %p69 = scmp.ne.s32.totalorder %s58, %s61
      %p70 = scmp.eq.s32.totalorder %s27, 1
      %p71 = por %p69, %p70
      %p72 = scmp.ne.s32.totalorder %s61, %s62
      %p73 = scmp.eq.s32.totalorder %s27, 0
      %p74 = por %p72, %p73
      %p75 = scmp.ne.s32.totalorder %s61, %s62
      %p76 = scmp.eq.s32.totalorder %s28, 1
      %p77 = por %p75, %p76
      %p79 = scmp.ne.s32.totalorder %s62, %s78
      %p80 = scmp.eq.s32.totalorder %s28, 0
      %p81 = por %p79, %p80
      %s82 = ssub.s32 %s22, %s29
      %p83 = scmp.eq.s32.totalorder %s82, 0
      %s85 = sadd.s32 %s84, 1
      %s86 = scalar_select %p83, %s84, %s85
      %p89 = pneg %p83
      %p90 = scmp.eq.s32.totalorder %s22, 1
      %p91 = por %p89, %p90
      %p92 = scmp.ne.s32.totalorder %s84, %s87
      %p93 = scmp.eq.s32.totalorder %s22, 0
      %p94 = por %p92, %p93
      %p95 = scmp.ne.s32.totalorder %s84, %s87
      %p96 = scmp.eq.s32.totalorder %s27, 1
      %p97 = por %p95, %p96
      %p98 = scmp.ne.s32.totalorder %s87, %s88
      %p99 = scmp.eq.s32.totalorder %s27, 0
      %p100 = por %p98, %p99
      %p101 = scmp.ne.s32.totalorder %s87, %s88
      %p102 = scmp.eq.s32.totalorder %s28, 1
      %p103 = por %p101, %p102
      %p105 = scmp.ne.s32.totalorder %s88, %s104
      %p106 = scmp.eq.s32.totalorder %s28, 0
      %p107 = por %p105, %p106
      %s109 = sadd.s32 %s108, 1
      %p112 = scmp.eq.s32.totalorder %s22, 1
      %p113 = scmp.ne.s32.totalorder %s108, %s110
      %p114 = scmp.eq.s32.totalorder %s22, 0
      %p115 = por %p113, %p114
      %p116 = scmp.ne.s32.totalorder %s108, %s110
      %p117 = scmp.eq.s32.totalorder %s27, 1
      %p118 = por %p116, %p117
      %p119 = scmp.ne.s32.totalorder %s110, %s111
      %p120 = scmp.eq.s32.totalorder %s27, 0
      %p121 = por %p119, %p120
      %p122 = scmp.ne.s32.totalorder %s110, %s111
      %p123 = scmp.eq.s32.totalorder %s28, 1
      %p124 = por %p122, %p123
      %p126 = scmp.ne.s32.totalorder %s111, %s125
      %p127 = scmp.eq.s32.totalorder %s28, 0
      %p128 = por %p126, %p127
      %s130 = sadd.s32 %s129, 1
      %p133 = scmp.eq.s32.totalorder %s22, 1
      %p134 = scmp.ne.s32.totalorder %s129, %s131
      %p135 = scmp.eq.s32.totalorder %s22, 0
      %p136 = por %p134, %p135
      %p137 = scmp.ne.s32.totalorder %s129, %s131
      %p138 = scmp.eq.s32.totalorder %s27, 1
      %p139 = por %p137, %p138
      %p140 = scmp.ne.s32.totalorder %s131, %s132
      %p141 = scmp.eq.s32.totalorder %s27, 0
      %p142 = por %p140, %p141
      %p143 = scmp.ne.s32.totalorder %s131, %s132
      %p144 = scmp.eq.s32.totalorder %s28, 1
      %p145 = por %p143, %p144
      %p147 = scmp.ne.s32.totalorder %s132, %s146
      %p148 = scmp.eq.s32.totalorder %s28, 0
      %p149 = por %p147, %p148
      %s151 = sadd.s32 %s150, 1
      %p154 = scmp.eq.s32.totalorder %s22, 1
      %p155 = scmp.ne.s32.totalorder %s150, %s152
      %p156 = scmp.eq.s32.totalorder %s22, 0
      %p157 = por %p155, %p156
      %p158 = scmp.ne.s32.totalorder %s150, %s152
      %p159 = scmp.eq.s32.totalorder %s27, 1
      %p160 = por %p158, %p159
      %p161 = scmp.ne.s32.totalorder %s152, %s153
      %p162 = scmp.eq.s32.totalorder %s27, 0
      %p163 = por %p161, %p162
      %p164 = scmp.ne.s32.totalorder %s152, %s153
      %p165 = scmp.eq.s32.totalorder %s28, 1
      %p166 = por %p164, %p165
      %p168 = scmp.ne.s32.totalorder %s153, %s167
      %p169 = scmp.eq.s32.totalorder %s28, 0
      %p170 = por %p168, %p169
      %s172 = sadd.s32 %s171, 1
      %p175 = scmp.eq.s32.totalorder %s22, 1
      %p176 = scmp.ne.s32.totalorder %s171, %s173
      %p177 = scmp.eq.s32.totalorder %s22, 0
      %p178 = por %p176, %p177
      %p179 = scmp.ne.s32.totalorder %s171, %s173
      %p180 = scmp.eq.s32.totalorder %s27, 1
      %p181 = por %p179, %p180
      %p182 = scmp.ne.s32.totalorder %s173, %s174
      %p183 = scmp.eq.s32.totalorder %s27, 0
      %p184 = por %p182, %p183
      %p185 = scmp.ne.s32.totalorder %s173, %s174
      %p186 = scmp.eq.s32.totalorder %s28, 1
      %p187 = por %p185, %p186
      %p189 = scmp.ne.s32.totalorder %s174, %s188
      %p190 = scmp.eq.s32.totalorder %s28, 0
      %p191 = por %p189, %p190
      %s193 = sadd.s32 %s192, 1
      %p196 = scmp.eq.s32.totalorder %s22, 1
      %p197 = scmp.ne.s32.totalorder %s192, %s194
      %p198 = scmp.eq.s32.totalorder %s22, 0
      %p199 = por %p197, %p198
      %p200 = scmp.ne.s32.totalorder %s192, %s194
      %p201 = scmp.eq.s32.totalorder %s27, 1
      %p202 = por %p200, %p201
      %p203 = scmp.ne.s32.totalorder %s194, %s195
      %p204 = scmp.eq.s32.totalorder %s27, 0
      %p205 = por %p203, %p204
      %p206 = scmp.ne.s32.totalorder %s194, %s195
      %p207 = scmp.eq.s32.totalorder %s28, 1
      %p208 = por %p206, %p207
      %p210 = scmp.ne.s32.totalorder %s195, %s209
      %p211 = scmp.eq.s32.totalorder %s28, 0
      %p212 = por %p210, %p211
      %s214 = sadd.s32 %s213, 1
      %p217 = scmp.eq.s32.totalorder %s22, 1
      %p218 = scmp.ne.s32.totalorder %s213, %s215
      %p219 = scmp.eq.s32.totalorder %s22, 0
      %p220 = por %p218, %p219
      %p221 = scmp.ne.s32.totalorder %s213, %s215
      %p222 = scmp.eq.s32.totalorder %s27, 1
      %p223 = por %p221, %p222
      %p224 = scmp.ne.s32.totalorder %s215, %s216
      %p225 = scmp.eq.s32.totalorder %s27, 0
      %p226 = por %p224, %p225
      %p227 = scmp.ne.s32.totalorder %s215, %s216
      %p228 = scmp.eq.s32.totalorder %s28, 1
      %p229 = por %p227, %p228
      %p231 = scmp.ne.s32.totalorder %s216, %s230
      %p232 = scmp.eq.s32.totalorder %s28, 0
      %p233 = por %p231, %p232
      %s235 = sadd.s32 %s234, 1
      %p238 = scmp.eq.s32.totalorder %s22, 1
      %p239 = scmp.ne.s32.totalorder %s234, %s236
      %p240 = scmp.eq.s32.totalorder %s22, 0
      %p241 = por %p239, %p240
      %p242 = scmp.ne.s32.totalorder %s234, %s236
      %p243 = scmp.eq.s32.totalorder %s27, 1
      %p244 = por %p242, %p243
      %p245 = scmp.ne.s32.totalorder %s236, %s237
      %p246 = scmp.eq.s32.totalorder %s27, 0
      %p247 = por %p245, %p246
      %p248 = scmp.ne.s32.totalorder %s236, %s237
      %p249 = scmp.eq.s32.totalorder %s28, 1
      %p250 = por %p248, %p249
      %p252 = scmp.ne.s32.totalorder %s237, %s251
      %p253 = scmp.eq.s32.totalorder %s28, 0
      %p254 = por %p252, %p253
      %s256 = sadd.s32 %s255, 1
      %p259 = scmp.eq.s32.totalorder %s22, 1
      %p260 = scmp.ne.s32.totalorder %s255, %s257
      %p261 = scmp.eq.s32.totalorder %s22, 0
      %p262 = por %p260, %p261
      %p263 = scmp.ne.s32.totalorder %s255, %s257
      %p264 = scmp.eq.s32.totalorder %s27, 1
      %p265 = por %p263, %p264
      %p266 = scmp.ne.s32.totalorder %s257, %s258
      %p267 = scmp.eq.s32.totalorder %s27, 0
      %p268 = por %p266, %p267
      %p269 = scmp.ne.s32.totalorder %s257, %s258
      %p270 = scmp.eq.s32.totalorder %s28, 1
      %p271 = por %p269, %p270
      %p273 = scmp.ne.s32.totalorder %s258, %s272
      %p274 = scmp.eq.s32.totalorder %s28, 0
      %p275 = por %p273, %p274
      %s277 = sadd.s32 %s276, 1
      %p280 = scmp.eq.s32.totalorder %s22, 1
      %p281 = scmp.ne.s32.totalorder %s276, %s278
      %p282 = scmp.eq.s32.totalorder %s22, 0
      %p283 = por %p281, %p282
      %p284 = scmp.ne.s32.totalorder %s276, %s278
      %p285 = scmp.eq.s32.totalorder %s27, 1
      %p286 = por %p284, %p285
      %p287 = scmp.ne.s32.totalorder %s278, %s279
      %p288 = scmp.eq.s32.totalorder %s27, 0
      %p289 = por %p287, %p288
      %p290 = scmp.ne.s32.totalorder %s278, %s279
      %p291 = scmp.eq.s32.totalorder %s28, 1
      %p292 = por %p290, %p291
      %p294 = scmp.ne.s32.totalorder %s279, %s293
      %p295 = scmp.eq.s32.totalorder %s28, 0
      %p296 = por %p294, %p295
      %s298 = sadd.s32 %s297, 1
      %p301 = scmp.eq.s32.totalorder %s22, 1
      %p302 = scmp.ne.s32.totalorder %s297, %s299
      %p303 = scmp.eq.s32.totalorder %s22, 0
      %p304 = por %p302, %p303
      %p305 = scmp.ne.s32.totalorder %s297, %s299
      %p306 = scmp.eq.s32.totalorder %s27, 1
      %p307 = por %p305, %p306
      %p308 = scmp.ne.s32.totalorder %s299, %s300
      %p309 = scmp.eq.s32.totalorder %s27, 0
      %p310 = por %p308, %p309
      %p311 = scmp.ne.s32.totalorder %s299, %s300
      %p312 = scmp.eq.s32.totalorder %s28, 1
      %p313 = por %p311, %p312
      %p315 = scmp.ne.s32.totalorder %s300, %s314
      %p316 = scmp.eq.s32.totalorder %s28, 0
      %p317 = por %p315, %p316
      %s318 = ssub.s32 %s22, %s29
      %p319 = scmp.eq.s32.totalorder %s318, 0
      %s321 = sadd.s32 %s320, 1
      %s322 = scalar_select %p319, %s320, %s321
      %p325 = pneg %p319
      %p326 = scmp.eq.s32.totalorder %s22, 1
      %p327 = por %p325, %p326
      %p328 = scmp.ne.s32.totalorder %s320, %s323
      %p329 = scmp.eq.s32.totalorder %s22, 0
      %p330 = por %p328, %p329
      %p331 = scmp.ne.s32.totalorder %s320, %s323
      %p332 = scmp.eq.s32.totalorder %s27, 1
      %p333 = por %p331, %p332
      %p334 = scmp.ne.s32.totalorder %s323, %s324
      %p335 = scmp.eq.s32.totalorder %s27, 0
      %p336 = por %p334, %p335
      %p337 = scmp.ne.s32.totalorder %s323, %s324
      %p338 = scmp.eq.s32.totalorder %s28, 1
      %p339 = por %p337, %p338
      %p341 = scmp.ne.s32.totalorder %s324, %s340
      %p342 = scmp.eq.s32.totalorder %s28, 0
      %p343 = por %p341, %p342
      %p344 = scmp.le.s32.totalorder 1, %s22
      %p345 = scmp.lt.s32.totalorder %s22, 3
      %p346 = pnand %p344, %p345
      %p347 = pneg %p346
      // Predicated region
      $region9: #{tpu_custom_call.1} parent=5 // pred_check
        _
      $region10: #{tpu_custom_call.1} parent=5 // pred_check_branch
        %349 = sbr.rel (%p346) target = $region12
      $region11: #{tpu_custom_call.1} parent=5 // pred_region
        %s350 = ssub.s32 %s22, 1
        // Predicated region
        $region13: #{tpu_custom_call.1} parent=11 // pred_check
          %p351 = pneg %p121
        $region14: #{tpu_custom_call.1} parent=11 // pred_check_branch
          %353 = sbr.rel (%p351) target = $region16
        $region15: #{tpu_custom_call.1} parent=11 // pred_region
          _
        $region16: #{tpu_custom_call.1} parent=11 // pred_fallthru
          _
        // Predicated region
        $region17: #{tpu_custom_call.1} parent=11 // pred_check
          %p354 = pneg %p142
        $region18: #{tpu_custom_call.1} parent=11 // pred_check_branch
          %356 = sbr.rel (%p354) target = $region20
        $region19: #{tpu_custom_call.1} parent=11 // pred_region
          _
        $region20: #{tpu_custom_call.1} parent=11 // pred_fallthru
          _
        // Predicated region
        $region21: #{tpu_custom_call.1} parent=11 // pred_check
          %p357 = pneg %p163
        $region22: #{tpu_custom_call.1} parent=11 // pred_check_branch
          %359 = sbr.rel (%p357) target = $region24
        $region23: #{tpu_custom_call.1} parent=11 // pred_region
          _
        $region24: #{tpu_custom_call.1} parent=11 // pred_fallthru
          _
        // Predicated region
        $region25: #{tpu_custom_call.1} parent=11 // pred_check
          %p360 = pneg %p184
        $region26: #{tpu_custom_call.1} parent=11 // pred_check_branch
          %362 = sbr.rel (%p360) target = $region28
        $region27: #{tpu_custom_call.1} parent=11 // pred_region
          _
        $region28: #{tpu_custom_call.1} parent=11 // pred_fallthru
          _
        // Predicated region
        $region29: #{tpu_custom_call.1} parent=11 // pred_check
          %p363 = pneg %p205
        $region30: #{tpu_custom_call.1} parent=11 // pred_check_branch
          %365 = sbr.rel (%p363) target = $region32
        $region31: #{tpu_custom_call.1} parent=11 // pred_region
          _
        $region32: #{tpu_custom_call.1} parent=11 // pred_fallthru
          _
        // Predicated region
        $region33: #{tpu_custom_call.1} parent=11 // pred_check
          %p366 = pneg %p226
        $region34: #{tpu_custom_call.1} parent=11 // pred_check_branch
          %368 = sbr.rel (%p366) target = $region36
        $region35: #{tpu_custom_call.1} parent=11 // pred_region
          _
        $region36: #{tpu_custom_call.1} parent=11 // pred_fallthru
          _
        // Predicated region
        $region37: #{tpu_custom_call.1} parent=11 // pred_check
          %p369 = pneg %p247
        $region38: #{tpu_custom_call.1} parent=11 // pred_check_branch
          %371 = sbr.rel (%p369) target = $region40
        $region39: #{tpu_custom_call.1} parent=11 // pred_region
          _
        $region40: #{tpu_custom_call.1} parent=11 // pred_fallthru
          _
        // Predicated region
        $region41: #{tpu_custom_call.1} parent=11 // pred_check
          %p372 = pneg %p268
        $region42: #{tpu_custom_call.1} parent=11 // pred_check_branch
          %374 = sbr.rel (%p372) target = $region44
        $region43: #{tpu_custom_call.1} parent=11 // pred_region
          _
        $region44: #{tpu_custom_call.1} parent=11 // pred_fallthru
          _
        // Predicated region
        $region45: #{tpu_custom_call.1} parent=11 // pred_check
          %p375 = pneg %p289
        $region46: #{tpu_custom_call.1} parent=11 // pred_check_branch
          %377 = sbr.rel (%p375) target = $region48
        $region47: #{tpu_custom_call.1} parent=11 // pred_region
          _
        $region48: #{tpu_custom_call.1} parent=11 // pred_fallthru
          _
        // Predicated region
        $region49: #{tpu_custom_call.1} parent=11 // pred_check
          %p378 = pneg %p310
        $region50: #{tpu_custom_call.1} parent=11 // pred_check_branch
          %380 = sbr.rel (%p378) target = $region52
        $region51: #{tpu_custom_call.1} parent=11 // pred_region
          _
        $region52: #{tpu_custom_call.1} parent=11 // pred_fallthru
          _
      $region12: #{tpu_custom_call.1} parent=5 // pred_fallthru
        _
      %p381 = scmp.lt.s32.totalorder %s22, 2
      // Predicated region
      $region53: #{tpu_custom_call.1} parent=5 // pred_check
        %p382 = pneg %p381
      $region54: #{tpu_custom_call.1} parent=5 // pred_check_branch
        %384 = sbr.rel (%p382) target = $region56
      $region55: #{tpu_custom_call.1} parent=5 // pred_region
        // Predicated region
        $region57: #{tpu_custom_call.1} parent=55 // pred_check
          %p385 = pneg %p42
        $region58: #{tpu_custom_call.1} parent=55 // pred_check_branch
          %387 = sbr.rel (%p385) target = $region60
        $region59: #{tpu_custom_call.1} parent=55 // pred_region
          %p388 = scmp.lt.s32.totalorder %s22, 1
          %s389 = scalar_select %p388, %s22, 1
          %s390 = smul.addr %s389, 8
          %s391 = scalar_lea.vmem %s0, %s390
        $region60: #{tpu_custom_call.1} parent=55 // pred_fallthru
          _
        // Predicated region
        $region61: #{tpu_custom_call.1} parent=55 // pred_check
          %p392 = pneg %p68
        $region62: #{tpu_custom_call.1} parent=55 // pred_check_branch
          %394 = sbr.rel (%p392) target = $region64
        $region63: #{tpu_custom_call.1} parent=55 // pred_region
          %s395 = smul.u32 2, %s22
          %p396 = scmp.lt.s32.totalorder %s395, 3
          %s397 = scalar_select %p396, %s395, 3
          %s398 = smul.addr %s397, 8
          %s399 = scalar_lea.vmem %s1, %s398
          %s400 = smul.u32 2, %s22
        $region64: #{tpu_custom_call.1} parent=55 // pred_fallthru
          _
        // Predicated region
        $region65: #{tpu_custom_call.1} parent=55 // pred_check
          %p401 = pneg %p94
        $region66: #{tpu_custom_call.1} parent=55 // pred_check_branch
          %403 = sbr.rel (%p401) target = $region68
        $region67: #{tpu_custom_call.1} parent=55 // pred_region
          %p404 = scmp.lt.s32.totalorder %s22, 1
          %s405 = scalar_select %p404, %s22, 1
          %s406 = smul.addr %s405, 8
          %s407 = scalar_lea.vmem %s2, %s406
        $region68: #{tpu_custom_call.1} parent=55 // pred_fallthru
          _
      $region56: #{tpu_custom_call.1} parent=5 // pred_fallthru
        _
      %p408 = scmp.le.s32.totalorder 1, %s22
      %p409 = scmp.lt.s32.totalorder %s22, 3
      %p410 = pnand %p408, %p409
      %p411 = pneg %p410
      // Predicated region
      $region69: #{tpu_custom_call.1} parent=5 // pred_check
        _
      $region70: #{tpu_custom_call.1} parent=5 // pred_check_branch
        %413 = sbr.rel (%p410) target = $region72
      $region71: #{tpu_custom_call.1} parent=5 // pred_region
        %s414 = ssub.s32 %s22, 1
        %p415 = scmp.lt.s32.totalorder %s27, 1
        %s416 = scalar_select %p415, %s27, 1
        %s417 = smul.addr %s416, 8
        %s418 = scalar_lea.vmem %s0, %s417
        %p419 = pneg %p48
        %p420 = pneg %p45
        %s421 = smul.u32 2, %s27
        %p422 = scmp.lt.s32.totalorder %s421, 3
        %s423 = scalar_select %p422, %s421, 3
        %s424 = smul.addr %s423, 8
        %s425 = scalar_lea.vmem %s1, %s424
        %p426 = pneg %p74
        %p427 = pneg %p71
        %p428 = scmp.lt.s32.totalorder %s27, 1
        %s429 = scalar_select %p428, %s27, 1
        %s430 = smul.addr %s429, 8
        %s431 = scalar_lea.vmem %s2, %s430
        %p432 = pneg %p100
        %p433 = pneg %p97
        %p434 = pneg %p121
        %p435 = pneg %p118
        %p436 = pneg %p142
        %p437 = pneg %p139
        %p438 = pneg %p163
        %p439 = pneg %p160
        %p440 = pneg %p184
        %p441 = pneg %p181
        %p442 = pneg %p205
        %p443 = pneg %p202
        %p444 = pneg %p226
        %p445 = pneg %p223
        %p446 = pneg %p247
        %p447 = pneg %p244
        %p448 = pneg %p268
        %p449 = pneg %p265
        %p450 = pneg %p289
        %p451 = pneg %p286
        %p452 = pneg %p310
        %p453 = pneg %p307
        %p454 = pneg %p336
        %p455 = pneg %p333
        %s456 = sand.u32 %s323, 1
        %s457 = scalar_lea.sflag [#allocation3], %s456
        %s458 = sand.u32 %s323, 1
        %s459 = smul.addr %s458, 8
        %s460 = scalar_lea.vmem [#allocation2], %s459
        %p461 = scmp.lt.s32.totalorder %s27, 1
        %s462 = scalar_select %p461, %s27, 1
        %s463 = smul.addr %s462, 8
        %s464 = scalar_lea.vmem %s0, %s463
        %s465 = smul.u32 2, %s27
        %p466 = scmp.lt.s32.totalorder %s465, 3
        %s467 = scalar_select %p466, %s465, 3
        %s468 = smul.addr %s467, 8
        %s469 = scalar_lea.vmem %s1, %s468
        %s470 = smul.u32 2, %s27
        %p471 = scmp.lt.s32.totalorder %s27, 1
        %s472 = scalar_select %p471, %s27, 1
        %s473 = smul.addr %s472, 8
        %s474 = scalar_lea.vmem %s2, %s473
        %v476 = vld [vmem:[%s3] sm:$0xff]
        %v477 = vld [vmem:[%s3 + $0x8] sm:$0xff]
        %v478 = vld [vmem:[%s464] sm:$0x1]
        %480 = vset.pattern.permute.xlu0 0
        %481 = vperm.xlu0 %480, %v476
        %v482 = vpop.permute.xlu0 %481
        %485 = vset.pattern.permute.xlu0 0
        %486 = vperm.xlu0 %485, %v477
        %v487 = vpop.permute.xlu0 %486
        %v489 = vlaneseq
        %v490 = vshrl.u32 %v489, 7
        %v491 = vsub.s32 0, %v490
        %v492 = vrot.slane %v478, %v491
        %v493 = vsub.f32 %v482, %v492
        %v494 = vsub.f32 %v487, %v492
        %v495 = vmul.f32 %v493, %v493
        %v496 = vmul.f32 %v494, %v494
        %v497 = vadd.f32 %v495, 0.0
        %v498 = vadd.f32 %v496, 0.0
        %v499 = vld [vmem:[%s464 + $0x1] sm:$0x1]
        %500 = vset.pattern.permute.xlu0 1
        %501 = vperm.xlu0 %500, %v476
        %v502 = vpop.permute.xlu0 %501
        %504 = vset.pattern.permute.xlu0 1
        %505 = vperm.xlu0 %504, %v477
        %v506 = vpop.permute.xlu0 %505
        %v508 = vlaneseq
        %v509 = vshrl.u32 %v508, 7
        %v510 = vsub.s32 0, %v509
        %v511 = vrot.slane %v499, %v510
        %v512 = vsub.f32 %v502, %v511
        %v513 = vsub.f32 %v506, %v511
        %v514 = vmul.f32 %v512, %v512
        %v515 = vmul.f32 %v513, %v513
        %v516 = vadd.f32 %v497, %v514
        %v517 = vadd.f32 %v498, %v515
        %v518 = vld [vmem:[%s464 + $0x2] sm:$0x1]
        %519 = vset.pattern.permute.xlu0 2
        %520 = vperm.xlu0 %519, %v476
        %v521 = vpop.permute.xlu0 %520
        %523 = vset.pattern.permute.xlu0 2
        %524 = vperm.xlu0 %523, %v477
        %v525 = vpop.permute.xlu0 %524
        %v527 = vlaneseq
        %v528 = vshrl.u32 %v527, 7
        %v529 = vsub.s32 0, %v528
        %v530 = vrot.slane %v518, %v529
        %v531 = vsub.f32 %v521, %v530
        %v532 = vsub.f32 %v525, %v530
        %v533 = vmul.f32 %v531, %v531
        %v534 = vmul.f32 %v532, %v532
        %v535 = vadd.f32 %v516, %v533
        %v536 = vadd.f32 %v517, %v534
        %v537 = vrsqrt.pop %v535
        %v538 = vmul.f32 %v535, %v537
        %vm539 = vcmp.eq.f32.partialorder %v535, inf
        %v540 = vsel %vm539, %v535, %v538
        %vm541 = vcmp.eq.f32.partialorder %v535, 0.0
        %v542 = vand.u32 %v535, 2147483648
        %v543 = vsel %vm541, %v542, %v540
        %v544 = vrsqrt.pop %v536
        %v545 = vmul.f32 %v536, %v544
        %vm546 = vcmp.eq.f32.partialorder %v536, inf
        %v547 = vsel %vm546, %v536, %v545
        %vm548 = vcmp.eq.f32.partialorder %v536, 0.0
        %v549 = vand.u32 %v536, 2147483648
        %v550 = vsel %vm548, %v549, %v547
        %v551 = vld [vmem:[%s469] sm:$0xff]
        %v552 = vld [vmem:[%s469 + $0x8] sm:$0xff]
        %v553 = vmul.f32 %v543, 3.1415927
        %v554 = vmul.f32 %v550, 3.1415927
        %v555 = vrcp.pop 5.2
        %v556 = vmul.f32 %v553, %v555
        %v557 = vmul.f32 %v554, %v555
        %v558 = vand.u32 2147483647, %v556
        %vm559 = vcmp.le.f32.partialorder %v558, 0.7853982
        %vm560 = vcmp.lt.s32.totalorder %v556, 0
        %v561 = vand.u32 %v556, 2139095040
        %v562 = vshrl.u32 %v561, 23
        %v563 = vsub.s32 %v562, 127
        %v564 = vand.u32 2147483647, %v556
        %v565 = vand.u32 %v564, 8388607
        %v566 = vor.u32 %v565, 8388608
        %v567 = vsub.s32 0, %v566
        %v568 = vadd.s32 %v563, 1
        %vm569 = vcmp.gt.s32.totalorder %v568, 0
        %v570 = vsel %vm569, %v568, 0
        %v571 = vshrl.u32 %v570, 5
        %v572 = vand.u32 %v570, 31
        %v573 = vsub.s32 32, %v572
        %v574 = vshrl.u32 683565275, %v573
        %v575 = vshll.u32 683565275, %v572
        %v576 = vshrl.u32 2475754826, %v573
        %v577 = vor.u32 %v575, %v576
        %v578 = vshll.u32 2475754826, %v572
        %v579 = vshrl.u32 2131351028, %v573
        %v580 = vor.u32 %v578, %v579
        %v581 = vshll.u32 2131351028, %v572
        %v582 = vshrl.u32 2102212464, %v573
        %v583 = vor.u32 %v581, %v582
        %v584 = vshll.u32 2102212464, %v572
        %v585 = vshrl.u32 920167782, %v573
        %v586 = vor.u32 %v584, %v585
        %v587 = vshll.u32 920167782, %v572
        %v588 = vshrl.u32 1326507024, %v573
        %v589 = vor.u32 %v587, %v588
        %vm590 = vcmp.lt.s32.totalorder %v571, 1
        %vm591 = vcmp.lt.s32.totalorder %v571, 2
        %vm592 = vcmp.lt.s32.totalorder %v571, 3
        %vm593 = vcmp.lt.s32.totalorder %v571, 4
        %v594 = vsel %vm590, %v574, %v577
        %v595 = vsel %vm593, %v583, 2102212464
        %v596 = vsel %vm592, %v580, %v595
        %v597 = vsel %vm591, %v594, %v596
        %v598 = vsel %vm590, %v577, %v580
        %v599 = vsel %vm593, %v586, 920167782
        %v600 = vsel %vm592, %v583, %v599
        %v601 = vsel %vm591, %v598, %v600
        %v602 = vsel %vm590, %v580, %v583
        %v603 = vsel %vm593, %v589, 1326507024
        %v604 = vsel %vm592, %v586, %v603
        %v605 = vsel %vm591, %v602, %v604
        %v606 = vshll.u32 %v566, 8
        %v607 = vmul.u32.u64.compose %v606, %v605
        %v608 = vextract.low.u32 %v607
        %v609 = vextract.high.u32 %v607
        %v610 = vmul.u32.u64.compose %v606, %v601
        %v611 = vextract.low.u32 %v610
        %v612 = vextract.high.u32 %v610
        %v613 = vmul.u32 %v606, %v597
        %v614 = vadd.s32 %v609, %v611
        %vm615 = vc.u32 %v609, %v611
        %v616 = vadd.s32 %v612, 1
        %v617 = vsel %vm615, %v616, %v612
        %v618 = vadd.s32 %v613, %v617
        %v619 = vadd.s32 %v618, 536870912
        %v620 = vshrl.u32 %v619, 30
        %v621 = vshll.u32 %v620, 30
        %v622 = vsub.s32 %v618, %v621
        %vm623 = vcmp.lt.s32.totalorder %v622, 0
        %v624 = vsub.s32 0, %v622
        %v625 = vsel %vm623, %v624, %v622
        %v626 = vclz %v625
        %v627 = vsub.s32 %v626, 2
        %vm628 = vcmp.gt.s32.totalorder 0, %v627
        %v629 = vsel %vm628, 0, %v627
        %v630 = vsub.s32 32, %v629
        %v631 = vshll.u32 %v622, %v629
        %v632 = vshrl.u32 %v614, %v630
        %v633 = vor.u32 %v631, %v632
        %v634 = vsub.s32 4294967266, %v629
        %v635 = vadd.s32 %v634, 127
        %v636 = vshll.u32 %v635, 23
        %v637 = vor.u32 4788187, %v636
        %v638 = vand.u32 2147483647, %v637
        %v640 = vcvt.s32.f32 %v633
        %v641 = vmul.f32 %v640, %v638
        %v642 = vxor.u32 %v641, 2147483648
        %v643 = vsel %vm560, %v642, %v641
        %v644 = vsub.s32 4, %v620
        %v645 = vsel %vm560, %v644, %v620
        %v646 = vsel %vm559, %v556, %v643
        %v647 = vsel %vm559, 0, %v645
        %v648 = vcosq.f32.pop %v646
        %v649 = vsinq.f32.pop %v646
        %vm650 = vweird.f32 %v556
        %v651 = vand.u32 %v647, 3
        %vm652 = vcmp.lt.s32.totalorder %v651, 2
        %vm653 = vcmp.eq.s32.totalorder %v651, 0
        %v654 = vxor.u32 %v649, 2147483648
        %v655 = vsel %vm653, %v648, %v654
        %vm656 = vcmp.eq.s32.totalorder %v651, 2
        %v657 = vxor.u32 %v648, 2147483648
        %v658 = vsel %vm656, %v657, %v649
        %v659 = vsel %vm652, %v655, %v658
        %v660 = vsel %vm650, nan, %v659
        %v661 = vand.u32 2147483647, %v557
        %vm662 = vcmp.le.f32.partialorder %v661, 0.7853982
        %vm663 = vcmp.lt.s32.totalorder %v557, 0
        %v664 = vand.u32 %v557, 2139095040
        %v665 = vshrl.u32 %v664, 23
        %v666 = vsub.s32 %v665, 127
        %v667 = vand.u32 2147483647, %v557
        %v668 = vand.u32 %v667, 8388607
        %v669 = vor.u32 %v668, 8388608
        %v670 = vsub.s32 0, %v669
        %v671 = vadd.s32 %v666, 1
        %vm672 = vcmp.gt.s32.totalorder %v671, 0
        %v673 = vsel %vm672, %v671, 0
        %v674 = vshrl.u32 %v673, 5
        %v675 = vand.u32 %v673, 31
        %v676 = vsub.s32 32, %v675
        %v677 = vshrl.u32 683565275, %v676
        %v678 = vshll.u32 683565275, %v675
        %v679 = vshrl.u32 2475754826, %v676
        %v680 = vor.u32 %v678, %v679
        %v681 = vshll.u32 2475754826, %v675
        %v682 = vshrl.u32 2131351028, %v676
        %v683 = vor.u32 %v681, %v682
        %v684 = vshll.u32 2131351028, %v675
        %v685 = vshrl.u32 2102212464, %v676
        %v686 = vor.u32 %v684, %v685
        %v687 = vshll.u32 2102212464, %v675
        %v688 = vshrl.u32 920167782, %v676
        %v689 = vor.u32 %v687, %v688
        %v690 = vshll.u32 920167782, %v675
        %v691 = vshrl.u32 1326507024, %v676
        %v692 = vor.u32 %v690, %v691
        %vm693 = vcmp.lt.s32.totalorder %v674, 1
        %vm694 = vcmp.lt.s32.totalorder %v674, 2
        %vm695 = vcmp.lt.s32.totalorder %v674, 3
        %vm696 = vcmp.lt.s32.totalorder %v674, 4
        %v697 = vsel %vm693, %v677, %v680
        %v698 = vsel %vm696, %v686, 2102212464
        %v699 = vsel %vm695, %v683, %v698
        %v700 = vsel %vm694, %v697, %v699
        %v701 = vsel %vm693, %v680, %v683
        %v702 = vsel %vm696, %v689, 920167782
        %v703 = vsel %vm695, %v686, %v702
        %v704 = vsel %vm694, %v701, %v703
        %v705 = vsel %vm693, %v683, %v686
        %v706 = vsel %vm696, %v692, 1326507024
        %v707 = vsel %vm695, %v689, %v706
        %v708 = vsel %vm694, %v705, %v707
        %v709 = vshll.u32 %v669, 8
        %v710 = vmul.u32.u64.compose %v709, %v708
        %v711 = vextract.low.u32 %v710
        %v712 = vextract.high.u32 %v710
        %v713 = vmul.u32.u64.compose %v709, %v704
        %v714 = vextract.low.u32 %v713
        %v715 = vextract.high.u32 %v713
        %v716 = vmul.u32 %v709, %v700
        %v717 = vadd.s32 %v712, %v714
        %vm718 = vc.u32 %v712, %v714
        %v719 = vadd.s32 %v715, 1
        %v720 = vsel %vm718, %v719, %v715
        %v721 = vadd.s32 %v716, %v720
        %v722 = vadd.s32 %v721, 536870912
        %v723 = vshrl.u32 %v722, 30
        %v724 = vshll.u32 %v723, 30
        %v725 = vsub.s32 %v721, %v724
        %vm726 = vcmp.lt.s32.totalorder %v725, 0
        %v727 = vsub.s32 0, %v725
        %v728 = vsel %vm726, %v727, %v725
        %v729 = vclz %v728
        %v730 = vsub.s32 %v729, 2
        %vm731 = vcmp.gt.s32.totalorder 0, %v730
        %v732 = vsel %vm731, 0, %v730
        %v733 = vsub.s32 32, %v732
        %v734 = vshll.u32 %v725, %v732
        %v735 = vshrl.u32 %v717, %v733
        %v736 = vor.u32 %v734, %v735
        %v737 = vsub.s32 4294967266, %v732
        %v738 = vadd.s32 %v737, 127
        %v739 = vshll.u32 %v738, 23
        %v740 = vor.u32 4788187, %v739
        %v741 = vand.u32 2147483647, %v740
        %v743 = vcvt.s32.f32 %v736
        %v744 = vmul.f32 %v743, %v741
        %v745 = vxor.u32 %v744, 2147483648
        %v746 = vsel %vm663, %v745, %v744
        %v747 = vsub.s32 4, %v723
        %v748 = vsel %vm663, %v747, %v723
        %v749 = vsel %vm662, %v557, %v746
        %v750 = vsel %vm662, 0, %v748
        %v751 = vcosq.f32.pop %v749
        %v752 = vsinq.f32.pop %v749
        %vm753 = vweird.f32 %v557
        %v754 = vand.u32 %v750, 3
        %vm755 = vcmp.lt.s32.totalorder %v754, 2
        %vm756 = vcmp.eq.s32.totalorder %v754, 0
        %v757 = vxor.u32 %v752, 2147483648
        %v758 = vsel %vm756, %v751, %v757
        %vm759 = vcmp.eq.s32.totalorder %v754, 2
        %v760 = vxor.u32 %v751, 2147483648
        %v761 = vsel %vm759, %v760, %v752
        %v762 = vsel %vm755, %v758, %v761
        %v763 = vsel %vm753, nan, %v762
        %v764 = vmul.f32 %v660, 0.5
        %v765 = vmul.f32 %v763, 0.5
        %v766 = vadd.f32 %v764, 0.5
        %v767 = vadd.f32 %v765, 0.5
        %vm768 = vcmp.lt.f32.partialorder %v543, 5.2
        %vm769 = vcmp.lt.f32.partialorder %v550, 5.2
        %v770 = vsel %vm768, %v766, 0.0
        %v771 = vsel %vm769, %v767, 0.0
        %v772 = vmul.f32 %v770, %v551
        %v773 = vmul.f32 %v771, %v552
        %v774 = vrcp.pop 3.5
        %v775 = vmul.f32 %v553, %v774
        %v776 = vmul.f32 %v554, %v774
        %v777 = vand.u32 2147483647, %v775
        %vm778 = vcmp.le.f32.partialorder %v777, 0.7853982
        %vm779 = vcmp.lt.s32.totalorder %v775, 0
        %v780 = vand.u32 %v775, 2139095040
        %v781 = vshrl.u32 %v780, 23
        %v782 = vsub.s32 %v781, 127
        %v783 = vand.u32 2147483647, %v775
        %v784 = vand.u32 %v783, 8388607
        %v785 = vor.u32 %v784, 8388608
        %v786 = vsub.s32 0, %v785
        %v787 = vadd.s32 %v782, 1
        %vm788 = vcmp.gt.s32.totalorder %v787, 0
        %v789 = vsel %vm788, %v787, 0
        %v790 = vshrl.u32 %v789, 5
        %v791 = vand.u32 %v789, 31
        %v792 = vsub.s32 32, %v791
        %v793 = vshrl.u32 683565275, %v792
        %v794 = vshll.u32 683565275, %v791
        %v795 = vshrl.u32 2475754826, %v792
        %v796 = vor.u32 %v794, %v795
        %v797 = vshll.u32 2475754826, %v791
        %v798 = vshrl.u32 2131351028, %v792
        %v799 = vor.u32 %v797, %v798
        %v800 = vshll.u32 2131351028, %v791
        %v801 = vshrl.u32 2102212464, %v792
        %v802 = vor.u32 %v800, %v801
        %v803 = vshll.u32 2102212464, %v791
        %v804 = vshrl.u32 920167782, %v792
        %v805 = vor.u32 %v803, %v804
        %v806 = vshll.u32 920167782, %v791
        %v807 = vshrl.u32 1326507024, %v792
        %v808 = vor.u32 %v806, %v807
        %vm809 = vcmp.lt.s32.totalorder %v790, 1
        %vm810 = vcmp.lt.s32.totalorder %v790, 2
        %vm811 = vcmp.lt.s32.totalorder %v790, 3
        %vm812 = vcmp.lt.s32.totalorder %v790, 4
        %v813 = vsel %vm809, %v793, %v796
        %v814 = vsel %vm812, %v802, 2102212464
        %v815 = vsel %vm811, %v799, %v814
        %v816 = vsel %vm810, %v813, %v815
        %v817 = vsel %vm809, %v796, %v799
        %v818 = vsel %vm812, %v805, 920167782
        %v819 = vsel %vm811, %v802, %v818
        %v820 = vsel %vm810, %v817, %v819
        %v821 = vsel %vm809, %v799, %v802
        %v822 = vsel %vm812, %v808, 1326507024
        %v823 = vsel %vm811, %v805, %v822
        %v824 = vsel %vm810, %v821, %v823
        %v825 = vshll.u32 %v785, 8
        %v826 = vmul.u32.u64.compose %v825, %v824
        %v827 = vextract.low.u32 %v826
        %v828 = vextract.high.u32 %v826
        %v829 = vmul.u32.u64.compose %v825, %v820
        %v830 = vextract.low.u32 %v829
        %v831 = vextract.high.u32 %v829
        %v832 = vmul.u32 %v825, %v816
        %v833 = vadd.s32 %v828, %v830
        %vm834 = vc.u32 %v828, %v830
        %v835 = vadd.s32 %v831, 1
        %v836 = vsel %vm834, %v835, %v831
        %v837 = vadd.s32 %v832, %v836
        %v838 = vadd.s32 %v837, 536870912
        %v839 = vshrl.u32 %v838, 30
        %v840 = vshll.u32 %v839, 30
        %v841 = vsub.s32 %v837, %v840
        %vm842 = vcmp.lt.s32.totalorder %v841, 0
        %v843 = vsub.s32 0, %v841
        %v844 = vsel %vm842, %v843, %v841
        %v845 = vclz %v844
        %v846 = vsub.s32 %v845, 2
        %vm847 = vcmp.gt.s32.totalorder 0, %v846
        %v848 = vsel %vm847, 0, %v846
        %v849 = vsub.s32 32, %v848
        %v850 = vshll.u32 %v841, %v848
        %v851 = vshrl.u32 %v833, %v849
        %v852 = vor.u32 %v850, %v851
        %v853 = vsub.s32 4294967266, %v848
        %v854 = vadd.s32 %v853, 127
        %v855 = vshll.u32 %v854, 23
        %v856 = vor.u32 4788187, %v855
        %v857 = vand.u32 2147483647, %v856
        %v859 = vcvt.s32.f32 %v852
        %v860 = vmul.f32 %v859, %v857
        %v861 = vxor.u32 %v860, 2147483648
        %v862 = vsel %vm779, %v861, %v860
        %v863 = vsub.s32 4, %v839
        %v864 = vsel %vm779, %v863, %v839
        %v865 = vsel %vm778, %v775, %v862
        %v866 = vsel %vm778, 0, %v864
        %v867 = vcosq.f32.pop %v865
        %v868 = vsinq.f32.pop %v865
        %vm869 = vweird.f32 %v775
        %v870 = vand.u32 %v866, 3
        %vm871 = vcmp.lt.s32.totalorder %v870, 2
        %vm872 = vcmp.eq.s32.totalorder %v870, 0
        %v873 = vxor.u32 %v868, 2147483648
        %v874 = vsel %vm872, %v867, %v873
        %vm875 = vcmp.eq.s32.totalorder %v870, 2
        %v876 = vxor.u32 %v867, 2147483648
        %v877 = vsel %vm875, %v876, %v868
        %v878 = vsel %vm871, %v874, %v877
        %v879 = vsel %vm869, nan, %v878
        %v880 = vand.u32 2147483647, %v776
        %vm881 = vcmp.le.f32.partialorder %v880, 0.7853982
        %vm882 = vcmp.lt.s32.totalorder %v776, 0
        %v883 = vand.u32 %v776, 2139095040
        %v884 = vshrl.u32 %v883, 23
        %v885 = vsub.s32 %v884, 127
        %v886 = vand.u32 2147483647, %v776
        %v887 = vand.u32 %v886, 8388607
        %v888 = vor.u32 %v887, 8388608
        %v889 = vsub.s32 0, %v888
        %v890 = vadd.s32 %v885, 1
        %vm891 = vcmp.gt.s32.totalorder %v890, 0
        %v892 = vsel %vm891, %v890, 0
        %v893 = vshrl.u32 %v892, 5
        %v894 = vand.u32 %v892, 31
        %v895 = vsub.s32 32, %v894
        %v896 = vshrl.u32 683565275, %v895
        %v897 = vshll.u32 683565275, %v894
        %v898 = vshrl.u32 2475754826, %v895
        %v899 = vor.u32 %v897, %v898
        %v900 = vshll.u32 2475754826, %v894
        %v901 = vshrl.u32 2131351028, %v895
        %v902 = vor.u32 %v900, %v901
        %v903 = vshll.u32 2131351028, %v894
        %v904 = vshrl.u32 2102212464, %v895
        %v905 = vor.u32 %v903, %v904
        %v906 = vshll.u32 2102212464, %v894
        %v907 = vshrl.u32 920167782, %v895
        %v908 = vor.u32 %v906, %v907
        %v909 = vshll.u32 920167782, %v894
        %v910 = vshrl.u32 1326507024, %v895
        %v911 = vor.u32 %v909, %v910
        %vm912 = vcmp.lt.s32.totalorder %v893, 1
        %vm913 = vcmp.lt.s32.totalorder %v893, 2
        %vm914 = vcmp.lt.s32.totalorder %v893, 3
        %vm915 = vcmp.lt.s32.totalorder %v893, 4
        %v916 = vsel %vm912, %v896, %v899
        %v917 = vsel %vm915, %v905, 2102212464
        %v918 = vsel %vm914, %v902, %v917
        %v919 = vsel %vm913, %v916, %v918
        %v920 = vsel %vm912, %v899, %v902
        %v921 = vsel %vm915, %v908, 920167782
        %v922 = vsel %vm914, %v905, %v921
        %v923 = vsel %vm913, %v920, %v922
        %v924 = vsel %vm912, %v902, %v905
        %v925 = vsel %vm915, %v911, 1326507024
        %v926 = vsel %vm914, %v908, %v925
        %v927 = vsel %vm913, %v924, %v926
        %v928 = vshll.u32 %v888, 8
        %v929 = vmul.u32.u64.compose %v928, %v927
        %v930 = vextract.low.u32 %v929
        %v931 = vextract.high.u32 %v929
        %v932 = vmul.u32.u64.compose %v928, %v923
        %v933 = vextract.low.u32 %v932
        %v934 = vextract.high.u32 %v932
        %v935 = vmul.u32 %v928, %v919
        %v936 = vadd.s32 %v931, %v933
        %vm937 = vc.u32 %v931, %v933
        %v938 = vadd.s32 %v934, 1
        %v939 = vsel %vm937, %v938, %v934
        %v940 = vadd.s32 %v935, %v939
        %v941 = vadd.s32 %v940, 536870912
        %v942 = vshrl.u32 %v941, 30
        %v943 = vshll.u32 %v942, 30
        %v944 = vsub.s32 %v940, %v943
        %vm945 = vcmp.lt.s32.totalorder %v944, 0
        %v946 = vsub.s32 0, %v944
        %v947 = vsel %vm945, %v946, %v944
        %v948 = vclz %v947
        %v949 = vsub.s32 %v948, 2
        %vm950 = vcmp.gt.s32.totalorder 0, %v949
        %v951 = vsel %vm950, 0, %v949
        %v952 = vsub.s32 32, %v951
        %v953 = vshll.u32 %v944, %v951
        %v954 = vshrl.u32 %v936, %v952
        %v955 = vor.u32 %v953, %v954
        %v956 = vsub.s32 4294967266, %v951
        %v957 = vadd.s32 %v956, 127
        %v958 = vshll.u32 %v957, 23
        %v959 = vor.u32 4788187, %v958
        %v960 = vand.u32 2147483647, %v959
        %v962 = vcvt.s32.f32 %v955
        %v963 = vmul.f32 %v962, %v960
        %v964 = vxor.u32 %v963, 2147483648
        %v965 = vsel %vm882, %v964, %v963
        %v966 = vsub.s32 4, %v942
        %v967 = vsel %vm882, %v966, %v942
        %v968 = vsel %vm881, %v776, %v965
        %v969 = vsel %vm881, 0, %v967
        %v970 = vcosq.f32.pop %v968
        %v971 = vsinq.f32.pop %v968
        %vm972 = vweird.f32 %v776
        %v973 = vand.u32 %v969, 3
        %vm974 = vcmp.lt.s32.totalorder %v973, 2
        %vm975 = vcmp.eq.s32.totalorder %v973, 0
        %v976 = vxor.u32 %v971, 2147483648
        %v977 = vsel %vm975, %v970, %v976
        %vm978 = vcmp.eq.s32.totalorder %v973, 2
        %v979 = vxor.u32 %v970, 2147483648
        %v980 = vsel %vm978, %v979, %v971
        %v981 = vsel %vm974, %v977, %v980
        %v982 = vsel %vm972, nan, %v981
        %v983 = vmul.f32 %v879, 0.5
        %v984 = vmul.f32 %v982, 0.5
        %v985 = vadd.f32 %v983, 0.5
        %v986 = vadd.f32 %v984, 0.5
        %vm987 = vcmp.lt.f32.partialorder %v543, 3.5
        %vm988 = vcmp.lt.f32.partialorder %v550, 3.5
        %v989 = vsel %vm987, %v985, 0.0
        %v990 = vsel %vm988, %v986, 0.0
        %v991 = vmul.f32 %v989, %v551
        %v992 = vmul.f32 %v990, %v552
        %v993 = vld [vmem:[%s4] sm:$0xff]
        %v994 = vld [vmem:[%s4 + $0x8] sm:$0xff]
        %v995 = vsub.f32 %v543, 0.9
        %v996 = vsub.f32 %v550, 0.9
        %v997 = vmul.f32 %v995, %v995
        %v998 = vmul.f32 %v996, %v996
        %v999 = vmul.f32 %v997, -16.0
        %v1000 = vmul.f32 %v998, -16.0
        %v1001 = vmul.f32 %v999, 1.442695
        %v1002 = vpow.pop %v1001
        %v1003 = vmul.f32 %v1000, 1.442695
        %v1004 = vpow.pop %v1003
        %v1005 = vmul.f32 %v1002, 0.25
        %v1006 = vmul.f32 %v1004, 0.25
        %v1007 = vmul.f32 %v1005, %v772
        %v1008 = vmul.f32 %v1006, %v773
        %1009 = vxpose.xlu0.b32.start [1/16] %v1007, 128
        %1010 = vxpose.xlu0.b32.cont [2/16] %v1008, 128
        %1011 = vxpose.xlu0.b32.cont [3/16] 0.0, 128
        %1012 = vxpose.xlu0.b32.cont [4/16] 0.0, 128
        %1013 = vxpose.xlu0.b32.cont [5/16] 0.0, 128
        %1014 = vxpose.xlu0.b32.cont [6/16] 0.0, 128
        %1015 = vxpose.xlu0.b32.cont [7/16] 0.0, 128
        %1016 = vxpose.xlu0.b32.cont [8/16] 0.0, 128
        %1017 = vxpose.xlu0.b32.cont [9/16] 0.0, 128
        %1018 = vxpose.xlu0.b32.cont [10/16] 0.0, 128
        %1019 = vxpose.xlu0.b32.cont [11/16] 0.0, 128
        %1020 = vxpose.xlu0.b32.cont [12/16] 0.0, 128
        %1021 = vxpose.xlu0.b32.cont [13/16] 0.0, 128
        %1022 = vxpose.xlu0.b32.cont [14/16] 0.0, 128
        %1023 = vxpose.xlu0.b32.cont [15/16] 0.0, 128
        %1024 = vxpose.xlu0.b32.end [16/16] 0.0, 128
        %v1025 = vpop.trf.xlu0
        %v1026 = vpop.trf.xlu0
        %v1027 = vpop.trf.xlu0
        %v1028 = vpop.trf.xlu0
        %v1029 = vpop.trf.xlu0
        %v1030 = vpop.trf.xlu0
        %v1031 = vpop.trf.xlu0
        %v1032 = vpop.trf.xlu0
        %v1033 = vpop.trf.xlu0
        %v1034 = vpop.trf.xlu0
        %v1035 = vpop.trf.xlu0
        %v1036 = vpop.trf.xlu0
        %v1037 = vpop.trf.xlu0
        %v1038 = vpop.trf.xlu0
        %v1039 = vpop.trf.xlu0
        %v1040 = vpop.trf.xlu0
        %vm1041 = vcmask 130048
        %v1043 = vsel %vm1041, %v1025, 0
        %1045 = vmatprep.subr.mxu0 0.0
        %1046 = vmatpush1.msra.mxu0 0.0
        %1047 = vmatprep.subr.mxu0 0.0
        %1048 = vmatpush1.msra.mxu0 0.0
        %1049 = vmatprep.subr.mxu0 0.0
        %1050 = vmatpush1.msra.mxu0 0.0
        %1051 = vmatprep.subr.mxu0 0.0
        %1052 = vmatpush1.msra.mxu0 0.0
        %1053 = vmatprep.subr.mxu0 0.0
        %1054 = vmatpush1.msra.mxu0 0.0
        %1055 = vmatprep.subr.mxu0 0.0
        %1056 = vmatpush1.msra.mxu0 0.0
        %1057 = vmatprep.subr.mxu0 0.0
        %1058 = vmatpush1.msra.mxu0 0.0
        %1059 = vmatprep.subr.mxu0 0.0
        %1060 = vmatpush1.msra.mxu0 0.0
        %1061 = vmatprep.subr.mxu0 0.0
        %1062 = vmatpush1.msra.mxu0 0.0
        %1063 = vmatprep.subr.mxu0 0.0
        %1064 = vmatpush1.msra.mxu0 0.0
        %1065 = vmatprep.subr.mxu0 0.0
        %1066 = vmatpush1.msra.mxu0 0.0
        %1067 = vmatprep.subr.mxu0 0.0
        %1068 = vmatpush1.msra.mxu0 0.0
        %1069 = vmatprep.subr.mxu0 0.0
        %1070 = vmatpush1.msra.mxu0 0.0
        %1071 = vmatprep.subr.mxu0 0.0
        %1072 = vmatpush1.msra.mxu0 0.0
        %1073 = vmatprep.subr.mxu0 0.0
        %1074 = vmatpush1.msra.mxu0 %v994
        %1075 = vmatprep.subr.mxu0 0.0
        %1076 = vmatpush1.msra.mxu0 %v993
        %1077 = vmatprep.subr.mxu0 0.0
        %1078 = vmatpush2.msra.mxu0 0.0
        %1079 = vmatprep.subr.mxu0 0.0
        %1080 = vmatpush2.msra.mxu0 0.0
        %1081 = vmatprep.subr.mxu0 0.0
        %1082 = vmatpush2.msra.mxu0 0.0
        %1083 = vmatprep.subr.mxu0 0.0
        %1084 = vmatpush2.msra.mxu0 0.0
        %1085 = vmatprep.subr.mxu0 0.0
        %1086 = vmatpush2.msra.mxu0 0.0
        %1087 = vmatprep.subr.mxu0 0.0
        %1088 = vmatpush2.msra.mxu0 0.0
        %1089 = vmatprep.subr.mxu0 0.0
        %1090 = vmatpush2.msra.mxu0 0.0
        %1091 = vmatprep.subr.mxu0 0.0
        %1092 = vmatpush2.msra.mxu0 0.0
        %1093 = vmatprep.subr.mxu0 0.0
        %1094 = vmatpush2.msra.mxu0 0.0
        %1095 = vmatprep.subr.mxu0 0.0
        %1096 = vmatpush2.msra.mxu0 0.0
        %1097 = vmatprep.subr.mxu0 0.0
        %1098 = vmatpush2.msra.mxu0 0.0
        %1099 = vmatprep.subr.mxu0 0.0
        %1100 = vmatpush2.msra.mxu0 0.0
        %1101 = vmatprep.subr.mxu0 0.0
        %1102 = vmatpush2.msra.mxu0 0.0
        %1103 = vmatprep.subr.mxu0 0.0
        %1104 = vmatpush2.msra.mxu0 0.0
        %1105 = vmatprep.subr.mxu0 0.0
        %1106 = vmatpush2.msra.mxu0 0.0
        %1107 = vmatprep.subr.mxu0 0.0
        %1108 = vmatpush2.msra.mxu0 0.0
        %1109 = vmatprep.mubr.f32.mxu0 0.0
        %1110 = vmatmul.mubr.f32.gmra.mxu0 %v1043
        %v1111 = vpop.f32.mrf.mxu0
        %v1112 = vadd.f32 0.0, %v1111
        %v1113 = vpop.f32.mrf.mxu0
        %1114 = vdwg.mxu0
        %v1115 = vsub.f32 %v543, 2.1
        %v1116 = vsub.f32 %v550, 2.1
        %v1117 = vmul.f32 %v1115, %v1115
        %v1118 = vmul.f32 %v1116, %v1116
        %v1119 = vmul.f32 %v1117, -16.0
        %v1120 = vmul.f32 %v1118, -16.0
        %v1121 = vmul.f32 %v1119, 1.442695
        %v1122 = vpow.pop %v1121
        %v1123 = vmul.f32 %v1120, 1.442695
        %v1124 = vpow.pop %v1123
        %v1125 = vmul.f32 %v1122, 0.25
        %v1126 = vmul.f32 %v1124, 0.25
        %v1127 = vmul.f32 %v1125, %v772
        %v1128 = vmul.f32 %v1126, %v773
        %1129 = vxpose.xlu0.b32.start [1/16] %v1127, 128
        %1130 = vxpose.xlu0.b32.cont [2/16] %v1128, 128
        %1131 = vxpose.xlu0.b32.cont [3/16] 0.0, 128
        %1132 = vxpose.xlu0.b32.cont [4/16] 0.0, 128
        %1133 = vxpose.xlu0.b32.cont [5/16] 0.0, 128
        %1134 = vxpose.xlu0.b32.cont [6/16] 0.0, 128
        %1135 = vxpose.xlu0.b32.cont [7/16] 0.0, 128
        %1136 = vxpose.xlu0.b32.cont [8/16] 0.0, 128
        %1137 = vxpose.xlu0.b32.cont [9/16] 0.0, 128
        %1138 = vxpose.xlu0.b32.cont [10/16] 0.0, 128
        %1139 = vxpose.xlu0.b32.cont [11/16] 0.0, 128
        %1140 = vxpose.xlu0.b32.cont [12/16] 0.0, 128
        %1141 = vxpose.xlu0.b32.cont [13/16] 0.0, 128
        %1142 = vxpose.xlu0.b32.cont [14/16] 0.0, 128
        %1143 = vxpose.xlu0.b32.cont [15/16] 0.0, 128
        %1144 = vxpose.xlu0.b32.end [16/16] 0.0, 128
        %v1145 = vpop.trf.xlu0
        %v1146 = vpop.trf.xlu0
        %v1147 = vpop.trf.xlu0
        %v1148 = vpop.trf.xlu0
        %v1149 = vpop.trf.xlu0
        %v1150 = vpop.trf.xlu0
        %v1151 = vpop.trf.xlu0
        %v1152 = vpop.trf.xlu0
        %v1153 = vpop.trf.xlu0
        %v1154 = vpop.trf.xlu0
        %v1155 = vpop.trf.xlu0
        %v1156 = vpop.trf.xlu0
        %v1157 = vpop.trf.xlu0
        %v1158 = vpop.trf.xlu0
        %v1159 = vpop.trf.xlu0
        %v1160 = vpop.trf.xlu0
        %v1162 = vsel %vm1041, %v1145, 0
        %1164 = vmatprep.subr.mxu0 0.0
        %1165 = vmatpush1.msra.mxu0 0.0
        %1166 = vmatprep.subr.mxu0 0.0
        %1167 = vmatpush1.msra.mxu0 0.0
        %1168 = vmatprep.subr.mxu0 0.0
        %1169 = vmatpush1.msra.mxu0 0.0
        %1170 = vmatprep.subr.mxu0 0.0
        %1171 = vmatpush1.msra.mxu0 0.0
        %1172 = vmatprep.subr.mxu0 0.0
        %1173 = vmatpush1.msra.mxu0 0.0
        %1174 = vmatprep.subr.mxu0 0.0
        %1175 = vmatpush1.msra.mxu0 0.0
        %1176 = vmatprep.subr.mxu0 0.0
        %1177 = vmatpush1.msra.mxu0 0.0
        %1178 = vmatprep.subr.mxu0 0.0
        %1179 = vmatpush1.msra.mxu0 0.0
        %1180 = vmatprep.subr.mxu0 0.0
        %1181 = vmatpush1.msra.mxu0 0.0
        %1182 = vmatprep.subr.mxu0 0.0
        %1183 = vmatpush1.msra.mxu0 0.0
        %1184 = vmatprep.subr.mxu0 0.0
        %1185 = vmatpush1.msra.mxu0 0.0
        %1186 = vmatprep.subr.mxu0 0.0
        %1187 = vmatpush1.msra.mxu0 0.0
        %1188 = vmatprep.subr.mxu0 0.0
        %1189 = vmatpush1.msra.mxu0 0.0
        %1190 = vmatprep.subr.mxu0 0.0
        %1191 = vmatpush1.msra.mxu0 0.0
        %1192 = vmatprep.subr.mxu0 0.0
        %1193 = vmatpush1.msra.mxu0 %v994
        %1194 = vmatprep.subr.mxu0 0.0
        %1195 = vmatpush1.msra.mxu0 %v993
        %1196 = vmatprep.subr.mxu0 0.0
        %1197 = vmatpush2.msra.mxu0 0.0
        %1198 = vmatprep.subr.mxu0 0.0
        %1199 = vmatpush2.msra.mxu0 0.0
        %1200 = vmatprep.subr.mxu0 0.0
        %1201 = vmatpush2.msra.mxu0 0.0
        %1202 = vmatprep.subr.mxu0 0.0
        %1203 = vmatpush2.msra.mxu0 0.0
        %1204 = vmatprep.subr.mxu0 0.0
        %1205 = vmatpush2.msra.mxu0 0.0
        %1206 = vmatprep.subr.mxu0 0.0
        %1207 = vmatpush2.msra.mxu0 0.0
        %1208 = vmatprep.subr.mxu0 0.0
        %1209 = vmatpush2.msra.mxu0 0.0
        %1210 = vmatprep.subr.mxu0 0.0
        %1211 = vmatpush2.msra.mxu0 0.0
        %1212 = vmatprep.subr.mxu0 0.0
        %1213 = vmatpush2.msra.mxu0 0.0
        %1214 = vmatprep.subr.mxu0 0.0
        %1215 = vmatpush2.msra.mxu0 0.0
        %1216 = vmatprep.subr.mxu0 0.0
        %1217 = vmatpush2.msra.mxu0 0.0
        %1218 = vmatprep.subr.mxu0 0.0
        %1219 = vmatpush2.msra.mxu0 0.0
        %1220 = vmatprep.subr.mxu0 0.0
        %1221 = vmatpush2.msra.mxu0 0.0
        %1222 = vmatprep.subr.mxu0 0.0
        %1223 = vmatpush2.msra.mxu0 0.0
        %1224 = vmatprep.subr.mxu0 0.0
        %1225 = vmatpush2.msra.mxu0 0.0
        %1226 = vmatprep.subr.mxu0 0.0
        %1227 = vmatpush2.msra.mxu0 0.0
        %1228 = vmatprep.mubr.f32.mxu0 0.0
        %1229 = vmatmul.mubr.f32.gmra.mxu0 %v1162
        %v1230 = vpop.f32.mrf.mxu0
        %v1231 = vadd.f32 0.0, %v1230
        %v1232 = vpop.f32.mrf.mxu0
        %1233 = vdwg.mxu0
        %v1234 = vsub.f32 %v543, 3.3
        %v1235 = vsub.f32 %v550, 3.3
        %v1236 = vmul.f32 %v1234, %v1234
        %v1237 = vmul.f32 %v1235, %v1235
        %v1238 = vmul.f32 %v1236, -16.0
        %v1239 = vmul.f32 %v1237, -16.0
        %v1240 = vmul.f32 %v1238, 1.442695
        %v1241 = vpow.pop %v1240
        %v1242 = vmul.f32 %v1239, 1.442695
        %v1243 = vpow.pop %v1242
        %v1244 = vmul.f32 %v1241, 0.25
        %v1245 = vmul.f32 %v1243, 0.25
        %v1246 = vmul.f32 %v1244, %v772
        %v1247 = vmul.f32 %v1245, %v773
        %1248 = vxpose.xlu0.b32.start [1/16] %v1246, 128
        %1249 = vxpose.xlu0.b32.cont [2/16] %v1247, 128
        %1250 = vxpose.xlu0.b32.cont [3/16] 0.0, 128
        %1251 = vxpose.xlu0.b32.cont [4/16] 0.0, 128
        %1252 = vxpose.xlu0.b32.cont [5/16] 0.0, 128
        %1253 = vxpose.xlu0.b32.cont [6/16] 0.0, 128
        %1254 = vxpose.xlu0.b32.cont [7/16] 0.0, 128
        %1255 = vxpose.xlu0.b32.cont [8/16] 0.0, 128
        %1256 = vxpose.xlu0.b32.cont [9/16] 0.0, 128
        %1257 = vxpose.xlu0.b32.cont [10/16] 0.0, 128
        %1258 = vxpose.xlu0.b32.cont [11/16] 0.0, 128
        %1259 = vxpose.xlu0.b32.cont [12/16] 0.0, 128
        %1260 = vxpose.xlu0.b32.cont [13/16] 0.0, 128
        %1261 = vxpose.xlu0.b32.cont [14/16] 0.0, 128
        %1262 = vxpose.xlu0.b32.cont [15/16] 0.0, 128
        %1263 = vxpose.xlu0.b32.end [16/16] 0.0, 128
        %v1264 = vpop.trf.xlu0
        %v1265 = vpop.trf.xlu0
        %v1266 = vpop.trf.xlu0
        %v1267 = vpop.trf.xlu0
        %v1268 = vpop.trf.xlu0
        %v1269 = vpop.trf.xlu0
        %v1270 = vpop.trf.xlu0
        %v1271 = vpop.trf.xlu0
        %v1272 = vpop.trf.xlu0
        %v1273 = vpop.trf.xlu0
        %v1274 = vpop.trf.xlu0
        %v1275 = vpop.trf.xlu0
        %v1276 = vpop.trf.xlu0
        %v1277 = vpop.trf.xlu0
        %v1278 = vpop.trf.xlu0
        %v1279 = vpop.trf.xlu0
        %v1281 = vsel %vm1041, %v1264, 0
        %1283 = vmatprep.subr.mxu0 0.0
        %1284 = vmatpush1.msra.mxu0 0.0
        %1285 = vmatprep.subr.mxu0 0.0
        %1286 = vmatpush1.msra.mxu0 0.0
        %1287 = vmatprep.subr.mxu0 0.0
        %1288 = vmatpush1.msra.mxu0 0.0
        %1289 = vmatprep.subr.mxu0 0.0
        %1290 = vmatpush1.msra.mxu0 0.0
        %1291 = vmatprep.subr.mxu0 0.0
        %1292 = vmatpush1.msra.mxu0 0.0
        %1293 = vmatprep.subr.mxu0 0.0
        %1294 = vmatpush1.msra.mxu0 0.0
        %1295 = vmatprep.subr.mxu0 0.0
        %1296 = vmatpush1.msra.mxu0 0.0
        %1297 = vmatprep.subr.mxu0 0.0
        %1298 = vmatpush1.msra.mxu0 0.0
        %1299 = vmatprep.subr.mxu0 0.0
        %1300 = vmatpush1.msra.mxu0 0.0
        %1301 = vmatprep.subr.mxu0 0.0
        %1302 = vmatpush1.msra.mxu0 0.0
        %1303 = vmatprep.subr.mxu0 0.0
        %1304 = vmatpush1.msra.mxu0 0.0
        %1305 = vmatprep.subr.mxu0 0.0
        %1306 = vmatpush1.msra.mxu0 0.0
        %1307 = vmatprep.subr.mxu0 0.0
        %1308 = vmatpush1.msra.mxu0 0.0
        %1309 = vmatprep.subr.mxu0 0.0
        %1310 = vmatpush1.msra.mxu0 0.0
        %1311 = vmatprep.subr.mxu0 0.0
        %1312 = vmatpush1.msra.mxu0 %v994
        %1313 = vmatprep.subr.mxu0 0.0
        %1314 = vmatpush1.msra.mxu0 %v993
        %1315 = vmatprep.subr.mxu0 0.0
        %1316 = vmatpush2.msra.mxu0 0.0
        %1317 = vmatprep.subr.mxu0 0.0
        %1318 = vmatpush2.msra.mxu0 0.0
        %1319 = vmatprep.subr.mxu0 0.0
        %1320 = vmatpush2.msra.mxu0 0.0
        %1321 = vmatprep.subr.mxu0 0.0
        %1322 = vmatpush2.msra.mxu0 0.0
        %1323 = vmatprep.subr.mxu0 0.0
        %1324 = vmatpush2.msra.mxu0 0.0
        %1325 = vmatprep.subr.mxu0 0.0
        %1326 = vmatpush2.msra.mxu0 0.0
        %1327 = vmatprep.subr.mxu0 0.0
        %1328 = vmatpush2.msra.mxu0 0.0
        %1329 = vmatprep.subr.mxu0 0.0
        %1330 = vmatpush2.msra.mxu0 0.0
        %1331 = vmatprep.subr.mxu0 0.0
        %1332 = vmatpush2.msra.mxu0 0.0
        %1333 = vmatprep.subr.mxu0 0.0
        %1334 = vmatpush2.msra.mxu0 0.0
        %1335 = vmatprep.subr.mxu0 0.0
        %1336 = vmatpush2.msra.mxu0 0.0
        %1337 = vmatprep.subr.mxu0 0.0
        %1338 = vmatpush2.msra.mxu0 0.0
        %1339 = vmatprep.subr.mxu0 0.0
        %1340 = vmatpush2.msra.mxu0 0.0
        %1341 = vmatprep.subr.mxu0 0.0
        %1342 = vmatpush2.msra.mxu0 0.0
        %1343 = vmatprep.subr.mxu0 0.0
        %1344 = vmatpush2.msra.mxu0 0.0
        %1345 = vmatprep.subr.mxu0 0.0
        %1346 = vmatpush2.msra.mxu0 0.0
        %1347 = vmatprep.mubr.f32.mxu0 0.0
        %1348 = vmatmul.mubr.f32.gmra.mxu0 %v1281
        %v1349 = vpop.f32.mrf.mxu0
        %v1350 = vadd.f32 0.0, %v1349
        %v1351 = vpop.f32.mrf.mxu0
        %1352 = vdwg.mxu0
        %v1353 = vsub.f32 %v543, 4.5
        %v1354 = vsub.f32 %v550, 4.5
        %v1355 = vmul.f32 %v1353, %v1353
        %v1356 = vmul.f32 %v1354, %v1354
        %v1357 = vmul.f32 %v1355, -16.0
        %v1358 = vmul.f32 %v1356, -16.0
        %v1359 = vmul.f32 %v1357, 1.442695
        %v1360 = vpow.pop %v1359
        %v1361 = vmul.f32 %v1358, 1.442695
        %v1362 = vpow.pop %v1361
        %v1363 = vmul.f32 %v1360, 0.25
        %v1364 = vmul.f32 %v1362, 0.25
        %v1365 = vmul.f32 %v1363, %v772
        %v1366 = vmul.f32 %v1364, %v773
        %1367 = vxpose.xlu0.b32.start [1/16] %v1365, 128
        %1368 = vxpose.xlu0.b32.cont [2/16] %v1366, 128
        %1369 = vxpose.xlu0.b32.cont [3/16] 0.0, 128
        %1370 = vxpose.xlu0.b32.cont [4/16] 0.0, 128
        %1371 = vxpose.xlu0.b32.cont [5/16] 0.0, 128
        %1372 = vxpose.xlu0.b32.cont [6/16] 0.0, 128
        %1373 = vxpose.xlu0.b32.cont [7/16] 0.0, 128
        %1374 = vxpose.xlu0.b32.cont [8/16] 0.0, 128
        %1375 = vxpose.xlu0.b32.cont [9/16] 0.0, 128
        %1376 = vxpose.xlu0.b32.cont [10/16] 0.0, 128
        %1377 = vxpose.xlu0.b32.cont [11/16] 0.0, 128
        %1378 = vxpose.xlu0.b32.cont [12/16] 0.0, 128
        %1379 = vxpose.xlu0.b32.cont [13/16] 0.0, 128
        %1380 = vxpose.xlu0.b32.cont [14/16] 0.0, 128
        %1381 = vxpose.xlu0.b32.cont [15/16] 0.0, 128
        %1382 = vxpose.xlu0.b32.end [16/16] 0.0, 128
        %v1383 = vpop.trf.xlu0
        %v1384 = vpop.trf.xlu0
        %v1385 = vpop.trf.xlu0
        %v1386 = vpop.trf.xlu0
        %v1387 = vpop.trf.xlu0
        %v1388 = vpop.trf.xlu0
        %v1389 = vpop.trf.xlu0
        %v1390 = vpop.trf.xlu0
        %v1391 = vpop.trf.xlu0
        %v1392 = vpop.trf.xlu0
        %v1393 = vpop.trf.xlu0
        %v1394 = vpop.trf.xlu0
        %v1395 = vpop.trf.xlu0
        %v1396 = vpop.trf.xlu0
        %v1397 = vpop.trf.xlu0
        %v1398 = vpop.trf.xlu0
        %v1400 = vsel %vm1041, %v1383, 0
        %1402 = vmatprep.subr.mxu0 0.0
        %1403 = vmatpush1.msra.mxu0 0.0
        %1404 = vmatprep.subr.mxu0 0.0
        %1405 = vmatpush1.msra.mxu0 0.0
        %1406 = vmatprep.subr.mxu0 0.0
        %1407 = vmatpush1.msra.mxu0 0.0
        %1408 = vmatprep.subr.mxu0 0.0
        %1409 = vmatpush1.msra.mxu0 0.0
        %1410 = vmatprep.subr.mxu0 0.0
        %1411 = vmatpush1.msra.mxu0 0.0
        %1412 = vmatprep.subr.mxu0 0.0
        %1413 = vmatpush1.msra.mxu0 0.0
        %1414 = vmatprep.subr.mxu0 0.0
        %1415 = vmatpush1.msra.mxu0 0.0
        %1416 = vmatprep.subr.mxu0 0.0
        %1417 = vmatpush1.msra.mxu0 0.0
        %1418 = vmatprep.subr.mxu0 0.0
        %1419 = vmatpush1.msra.mxu0 0.0
        %1420 = vmatprep.subr.mxu0 0.0
        %1421 = vmatpush1.msra.mxu0 0.0
        %1422 = vmatprep.subr.mxu0 0.0
        %1423 = vmatpush1.msra.mxu0 0.0
        %1424 = vmatprep.subr.mxu0 0.0
        %1425 = vmatpush1.msra.mxu0 0.0
        %1426 = vmatprep.subr.mxu0 0.0
        %1427 = vmatpush1.msra.mxu0 0.0
        %1428 = vmatprep.subr.mxu0 0.0
        %1429 = vmatpush1.msra.mxu0 0.0
        %1430 = vmatprep.subr.mxu0 0.0
        %1431 = vmatpush1.msra.mxu0 %v994
        %1432 = vmatprep.subr.mxu0 0.0
        %1433 = vmatpush1.msra.mxu0 %v993
        %1434 = vmatprep.subr.mxu0 0.0
        %1435 = vmatpush2.msra.mxu0 0.0
        %1436 = vmatprep.subr.mxu0 0.0
        %1437 = vmatpush2.msra.mxu0 0.0
        %1438 = vmatprep.subr.mxu0 0.0
        %1439 = vmatpush2.msra.mxu0 0.0
        %1440 = vmatprep.subr.mxu0 0.0
        %1441 = vmatpush2.msra.mxu0 0.0
        %1442 = vmatprep.subr.mxu0 0.0
        %1443 = vmatpush2.msra.mxu0 0.0
        %1444 = vmatprep.subr.mxu0 0.0
        %1445 = vmatpush2.msra.mxu0 0.0
        %1446 = vmatprep.subr.mxu0 0.0
        %1447 = vmatpush2.msra.mxu0 0.0
        %1448 = vmatprep.subr.mxu0 0.0
        %1449 = vmatpush2.msra.mxu0 0.0
        %1450 = vmatprep.subr.mxu0 0.0
        %1451 = vmatpush2.msra.mxu0 0.0
        %1452 = vmatprep.subr.mxu0 0.0
        %1453 = vmatpush2.msra.mxu0 0.0
        %1454 = vmatprep.subr.mxu0 0.0
        %1455 = vmatpush2.msra.mxu0 0.0
        %1456 = vmatprep.subr.mxu0 0.0
        %1457 = vmatpush2.msra.mxu0 0.0
        %1458 = vmatprep.subr.mxu0 0.0
        %1459 = vmatpush2.msra.mxu0 0.0
        %1460 = vmatprep.subr.mxu0 0.0
        %1461 = vmatpush2.msra.mxu0 0.0
        %1462 = vmatprep.subr.mxu0 0.0
        %1463 = vmatpush2.msra.mxu0 0.0
        %1464 = vmatprep.subr.mxu0 0.0
        %1465 = vmatpush2.msra.mxu0 0.0
        %1466 = vmatprep.mubr.f32.mxu0 0.0
        %1467 = vmatmul.mubr.f32.gmra.mxu0 %v1400
        %v1468 = vpop.f32.mrf.mxu0
        %v1469 = vadd.f32 0.0, %v1468
        %v1470 = vpop.f32.mrf.mxu0
        %1471 = vdwg.mxu0
        %v1474 = vcombine.high %v543, %v543
        %v1476 = vunpack.c.l.s4 1966171168
        %v1477 = vunpack.c.0.s8 %v1476
        %v1478 = vlaneseq
        %v1479 = vshrl.u32 %v1478, 7
        %v1480 = vsub.s32 %v1477, %v1479
        %v1481 = vrot.slane %v543, %v1480
        %v1483 = vunpack.c.l.s4 1966171168
        %v1484 = vunpack.c.0.s8 %v1483
        %v1485 = vlaneseq
        %v1486 = vshrl.u32 %v1485, 7
        %v1487 = vsub.s32 %v1484, %v1486
        %v1488 = vrot.slane %v1474, %v1487
        %v1489 = vcombine.high %v1481, %v1481
        %v1490 = vcombine.high %v1488, %v1488
        %v1492 = vunpack.c.l.s4 1966171168
        %v1493 = vunpack.c.0.s8 %v1492
        %v1494 = vlaneseq
        %v1495 = vshrl.u32 %v1494, 7
        %v1496 = vsub.s32 %v1493, %v1495
        %v1497 = vrot.slane %v1481, %v1496
        %v1499 = vunpack.c.l.s4 1966171168
        %v1500 = vunpack.c.0.s8 %v1499
        %v1501 = vlaneseq
        %v1502 = vshrl.u32 %v1501, 7
        %v1503 = vsub.s32 %v1500, %v1502
        %v1504 = vrot.slane %v1488, %v1503
        %v1506 = vunpack.c.l.s4 1966171168
        %v1507 = vunpack.c.0.s8 %v1506
        %v1508 = vlaneseq
        %v1509 = vshrl.u32 %v1508, 7
        %v1510 = vsub.s32 %v1507, %v1509
        %v1511 = vrot.slane %v1489, %v1510
        %v1513 = vunpack.c.l.s4 1966171168
        %v1514 = vunpack.c.0.s8 %v1513
        %v1515 = vlaneseq
        %v1516 = vshrl.u32 %v1515, 7
        %v1517 = vsub.s32 %v1514, %v1516
        %v1518 = vrot.slane %v1490, %v1517
        %v1519 = vcombine.high %v1497, %v1497
        %v1520 = vcombine.high %v1504, %v1504
        %v1521 = vcombine.high %v1511, %v1511
        %v1522 = vcombine.high %v1518, %v1518
        %v1523 = vcombine.high %v550, %v550
        %v1525 = vunpack.c.l.s4 1966171168
        %v1526 = vunpack.c.0.s8 %v1525
        %v1527 = vlaneseq
        %v1528 = vshrl.u32 %v1527, 7
        %v1529 = vsub.s32 %v1526, %v1528
        %v1530 = vrot.slane %v550, %v1529
        %v1532 = vunpack.c.l.s4 1966171168
        %v1533 = vunpack.c.0.s8 %v1532
        %v1534 = vlaneseq
        %v1535 = vshrl.u32 %v1534, 7
        %v1536 = vsub.s32 %v1533, %v1535
        %v1537 = vrot.slane %v1523, %v1536
        %v1538 = vcombine.high %v1530, %v1530
        %v1539 = vcombine.high %v1537, %v1537
        %v1541 = vunpack.c.l.s4 1966171168
        %v1542 = vunpack.c.0.s8 %v1541
        %v1543 = vlaneseq
        %v1544 = vshrl.u32 %v1543, 7
        %v1545 = vsub.s32 %v1542, %v1544
        %v1546 = vrot.slane %v1530, %v1545
        %v1548 = vunpack.c.l.s4 1966171168
        %v1549 = vunpack.c.0.s8 %v1548
        %v1550 = vlaneseq
        %v1551 = vshrl.u32 %v1550, 7
        %v1552 = vsub.s32 %v1549, %v1551
        %v1553 = vrot.slane %v1537, %v1552
        %v1555 = vunpack.c.l.s4 1966171168
        %v1556 = vunpack.c.0.s8 %v1555
        %v1557 = vlaneseq
        %v1558 = vshrl.u32 %v1557, 7
        %v1559 = vsub.s32 %v1556, %v1558
        %v1560 = vrot.slane %v1538, %v1559
        %v1562 = vunpack.c.l.s4 1966171168
        %v1563 = vunpack.c.0.s8 %v1562
        %v1564 = vlaneseq
        %v1565 = vshrl.u32 %v1564, 7
        %v1566 = vsub.s32 %v1563, %v1565
        %v1567 = vrot.slane %v1539, %v1566
        %v1568 = vcombine.high %v1546, %v1546
        %v1569 = vcombine.high %v1553, %v1553
        %v1570 = vcombine.high %v1560, %v1560
        %v1571 = vcombine.high %v1567, %v1567
        %v1572 = vlaneseq
        %v1573 = vshrl.u32 %v1572, 7
        %v1574 = vsub.s32 0, %v1573
        %v1575 = vrot.slane %v1497, %v1574
        %v1576 = vlaneseq
        %v1577 = vshrl.u32 %v1576, 7
        %v1578 = vsub.s32 0, %v1577
        %v1579 = vrot.slane %v1511, %v1578
        %v1580 = vlaneseq
        %v1581 = vshrl.u32 %v1580, 7
        %v1582 = vsub.s32 0, %v1581
        %v1583 = vrot.slane %v1519, %v1582
        %v1584 = vlaneseq
        %v1585 = vshrl.u32 %v1584, 7
        %v1586 = vsub.s32 0, %v1585
        %v1587 = vrot.slane %v1521, %v1586
        %v1588 = vlaneseq
        %v1589 = vshrl.u32 %v1588, 7
        %v1590 = vsub.s32 0, %v1589
        %v1591 = vrot.slane %v1504, %v1590
        %v1592 = vlaneseq
        %v1593 = vshrl.u32 %v1592, 7
        %v1594 = vsub.s32 0, %v1593
        %v1595 = vrot.slane %v1518, %v1594
        %v1596 = vlaneseq
        %v1597 = vshrl.u32 %v1596, 7
        %v1598 = vsub.s32 0, %v1597
        %v1599 = vrot.slane %v1520, %v1598
        %v1600 = vlaneseq
        %v1601 = vshrl.u32 %v1600, 7
        %v1602 = vsub.s32 0, %v1601
        %v1603 = vrot.slane %v1522, %v1602
        %v1604 = vlaneseq
        %v1605 = vshrl.u32 %v1604, 7
        %v1606 = vsub.s32 0, %v1605
        %v1607 = vrot.slane %v1546, %v1606
        %v1608 = vlaneseq
        %v1609 = vshrl.u32 %v1608, 7
        %v1610 = vsub.s32 0, %v1609
        %v1611 = vrot.slane %v1560, %v1610
        %v1612 = vlaneseq
        %v1613 = vshrl.u32 %v1612, 7
        %v1614 = vsub.s32 0, %v1613
        %v1615 = vrot.slane %v1568, %v1614
        %v1616 = vlaneseq
        %v1617 = vshrl.u32 %v1616, 7
        %v1618 = vsub.s32 0, %v1617
        %v1619 = vrot.slane %v1570, %v1618
        %v1620 = vlaneseq
        %v1621 = vshrl.u32 %v1620, 7
        %v1622 = vsub.s32 0, %v1621
        %v1623 = vrot.slane %v1553, %v1622
        %v1624 = vlaneseq
        %v1625 = vshrl.u32 %v1624, 7
        %v1626 = vsub.s32 0, %v1625
        %v1627 = vrot.slane %v1567, %v1626
        %v1628 = vlaneseq
        %v1629 = vshrl.u32 %v1628, 7
        %v1630 = vsub.s32 0, %v1629
        %v1631 = vrot.slane %v1569, %v1630
        %v1632 = vlaneseq
        %v1633 = vshrl.u32 %v1632, 7
        %v1634 = vsub.s32 0, %v1633
        %v1635 = vrot.slane %v1571, %v1634
        %v1654 = vcombine.high %v991, %v991
        %v1656 = vunpack.c.l.s4 1966171168
        %v1657 = vunpack.c.0.s8 %v1656
        %v1658 = vlaneseq
        %v1659 = vshrl.u32 %v1658, 7
        %v1660 = vsub.s32 %v1657, %v1659
        %v1661 = vrot.slane %v991, %v1660
        %v1663 = vunpack.c.l.s4 1966171168
        %v1664 = vunpack.c.0.s8 %v1663
        %v1665 = vlaneseq
        %v1666 = vshrl.u32 %v1665, 7
        %v1667 = vsub.s32 %v1664, %v1666
        %v1668 = vrot.slane %v1654, %v1667
        %v1669 = vcombine.high %v1661, %v1661
        %v1670 = vcombine.high %v1668, %v1668
        %v1672 = vunpack.c.l.s4 1966171168
        %v1673 = vunpack.c.0.s8 %v1672
        %v1674 = vlaneseq
        %v1675 = vshrl.u32 %v1674, 7
        %v1676 = vsub.s32 %v1673, %v1675
        %v1677 = vrot.slane %v1661, %v1676
        %v1679 = vunpack.c.l.s4 1966171168
        %v1680 = vunpack.c.0.s8 %v1679
        %v1681 = vlaneseq
        %v1682 = vshrl.u32 %v1681, 7
        %v1683 = vsub.s32 %v1680, %v1682
        %v1684 = vrot.slane %v1668, %v1683
        %v1686 = vunpack.c.l.s4 1966171168
        %v1687 = vunpack.c.0.s8 %v1686
        %v1688 = vlaneseq
        %v1689 = vshrl.u32 %v1688, 7
        %v1690 = vsub.s32 %v1687, %v1689
        %v1691 = vrot.slane %v1669, %v1690
        %v1693 = vunpack.c.l.s4 1966171168
        %v1694 = vunpack.c.0.s8 %v1693
        %v1695 = vlaneseq
        %v1696 = vshrl.u32 %v1695, 7
        %v1697 = vsub.s32 %v1694, %v1696
        %v1698 = vrot.slane %v1670, %v1697
        %v1699 = vcombine.high %v1677, %v1677
        %v1700 = vcombine.high %v1684, %v1684
        %v1701 = vcombine.high %v1691, %v1691
        %v1702 = vcombine.high %v1698, %v1698
        %v1703 = vcombine.high %v992, %v992
        %v1705 = vunpack.c.l.s4 1966171168
        %v1706 = vunpack.c.0.s8 %v1705
        %v1707 = vlaneseq
        %v1708 = vshrl.u32 %v1707, 7
        %v1709 = vsub.s32 %v1706, %v1708
        %v1710 = vrot.slane %v992, %v1709
        %v1712 = vunpack.c.l.s4 1966171168
        %v1713 = vunpack.c.0.s8 %v1712
        %v1714 = vlaneseq
        %v1715 = vshrl.u32 %v1714, 7
        %v1716 = vsub.s32 %v1713, %v1715
        %v1717 = vrot.slane %v1703, %v1716
        %v1718 = vcombine.high %v1710, %v1710
        %v1719 = vcombine.high %v1717, %v1717
        %v1721 = vunpack.c.l.s4 1966171168
        %v1722 = vunpack.c.0.s8 %v1721
        %v1723 = vlaneseq
        %v1724 = vshrl.u32 %v1723, 7
        %v1725 = vsub.s32 %v1722, %v1724
        %v1726 = vrot.slane %v1710, %v1725
        %v1728 = vunpack.c.l.s4 1966171168
        %v1729 = vunpack.c.0.s8 %v1728
        %v1730 = vlaneseq
        %v1731 = vshrl.u32 %v1730, 7
        %v1732 = vsub.s32 %v1729, %v1731
        %v1733 = vrot.slane %v1717, %v1732
        %v1735 = vunpack.c.l.s4 1966171168
        %v1736 = vunpack.c.0.s8 %v1735
        %v1737 = vlaneseq
        %v1738 = vshrl.u32 %v1737, 7
        %v1739 = vsub.s32 %v1736, %v1738
        %v1740 = vrot.slane %v1718, %v1739
        %v1742 = vunpack.c.l.s4 1966171168
        %v1743 = vunpack.c.0.s8 %v1742
        %v1744 = vlaneseq
        %v1745 = vshrl.u32 %v1744, 7
        %v1746 = vsub.s32 %v1743, %v1745
        %v1747 = vrot.slane %v1719, %v1746
        %v1748 = vcombine.high %v1726, %v1726
        %v1749 = vcombine.high %v1733, %v1733
        %v1750 = vcombine.high %v1740, %v1740
        %v1751 = vcombine.high %v1747, %v1747
        %v1752 = vlaneseq
        %v1753 = vshrl.u32 %v1752, 7
        %v1754 = vsub.s32 0, %v1753
        %v1755 = vrot.slane %v1677, %v1754
        %v1756 = vlaneseq
        %v1757 = vshrl.u32 %v1756, 7
        %v1758 = vsub.s32 0, %v1757
        %v1759 = vrot.slane %v1691, %v1758
        %v1760 = vlaneseq
        %v1761 = vshrl.u32 %v1760, 7
        %v1762 = vsub.s32 0, %v1761
        %v1763 = vrot.slane %v1699, %v1762
        %v1764 = vlaneseq
        %v1765 = vshrl.u32 %v1764, 7
        %v1766 = vsub.s32 0, %v1765
        %v1767 = vrot.slane %v1701, %v1766
        %v1768 = vlaneseq
        %v1769 = vshrl.u32 %v1768, 7
        %v1770 = vsub.s32 0, %v1769
        %v1771 = vrot.slane %v1684, %v1770
        %v1772 = vlaneseq
        %v1773 = vshrl.u32 %v1772, 7
        %v1774 = vsub.s32 0, %v1773
        %v1775 = vrot.slane %v1698, %v1774
        %v1776 = vlaneseq
        %v1777 = vshrl.u32 %v1776, 7
        %v1778 = vsub.s32 0, %v1777
        %v1779 = vrot.slane %v1700, %v1778
        %v1780 = vlaneseq
        %v1781 = vshrl.u32 %v1780, 7
        %v1782 = vsub.s32 0, %v1781
        %v1783 = vrot.slane %v1702, %v1782
        %v1784 = vlaneseq
        %v1785 = vshrl.u32 %v1784, 7
        %v1786 = vsub.s32 0, %v1785
        %v1787 = vrot.slane %v1726, %v1786
        %v1788 = vlaneseq
        %v1789 = vshrl.u32 %v1788, 7
        %v1790 = vsub.s32 0, %v1789
        %v1791 = vrot.slane %v1740, %v1790
        %v1792 = vlaneseq
        %v1793 = vshrl.u32 %v1792, 7
        %v1794 = vsub.s32 0, %v1793
        %v1795 = vrot.slane %v1748, %v1794
        %v1796 = vlaneseq
        %v1797 = vshrl.u32 %v1796, 7
        %v1798 = vsub.s32 0, %v1797
        %v1799 = vrot.slane %v1750, %v1798
        %v1800 = vlaneseq
        %v1801 = vshrl.u32 %v1800, 7
        %v1802 = vsub.s32 0, %v1801
        %v1803 = vrot.slane %v1733, %v1802
        %v1804 = vlaneseq
        %v1805 = vshrl.u32 %v1804, 7
        %v1806 = vsub.s32 0, %v1805
        %v1807 = vrot.slane %v1747, %v1806
        %v1808 = vlaneseq
        %v1809 = vshrl.u32 %v1808, 7
        %v1810 = vsub.s32 0, %v1809
        %v1811 = vrot.slane %v1749, %v1810
        %v1812 = vlaneseq
        %v1813 = vshrl.u32 %v1812, 7
        %v1814 = vsub.s32 0, %v1813
        %v1815 = vrot.slane %v1751, %v1814
        %v1832 = vmul.f32 %v1755, %v991
        %v1833 = vmul.f32 %v1755, %v992
        %v1834 = vmul.f32 %v1759, %v991
        %v1835 = vmul.f32 %v1759, %v992
        %v1836 = vmul.f32 %v1763, %v991
        %v1837 = vmul.f32 %v1763, %v992
        %v1838 = vmul.f32 %v1767, %v991
        %v1839 = vmul.f32 %v1767, %v992
        %v1840 = vmul.f32 %v1771, %v991
        %v1841 = vmul.f32 %v1771, %v992
        %v1842 = vmul.f32 %v1775, %v991
        %v1843 = vmul.f32 %v1775, %v992
        %v1844 = vmul.f32 %v1779, %v991
        %v1845 = vmul.f32 %v1779, %v992
        %v1846 = vmul.f32 %v1783, %v991
        %v1847 = vmul.f32 %v1783, %v992
        %v1848 = vmul.f32 %v1787, %v991
        %v1849 = vmul.f32 %v1787, %v992
        %v1850 = vmul.f32 %v1791, %v991
        %v1851 = vmul.f32 %v1791, %v992
        %v1852 = vmul.f32 %v1795, %v991
        %v1853 = vmul.f32 %v1795, %v992
        %v1854 = vmul.f32 %v1799, %v991
        %v1855 = vmul.f32 %v1799, %v992
        %v1856 = vmul.f32 %v1803, %v991
        %v1857 = vmul.f32 %v1803, %v992
        %v1858 = vmul.f32 %v1807, %v991
        %v1859 = vmul.f32 %v1807, %v992
        %v1860 = vmul.f32 %v1811, %v991
        %v1861 = vmul.f32 %v1811, %v992
        %v1862 = vmul.f32 %v1815, %v991
        %v1863 = vmul.f32 %v1815, %v992
        %v1866 = vcombine.high %v493, %v493
        %v1868 = vunpack.c.l.s4 1966171168
        %v1869 = vunpack.c.0.s8 %v1868
        %v1870 = vlaneseq
        %v1871 = vshrl.u32 %v1870, 7
        %v1872 = vsub.s32 %v1869, %v1871
        %v1873 = vrot.slane %v493, %v1872
        %v1875 = vunpack.c.l.s4 1966171168
        %v1876 = vunpack.c.0.s8 %v1875
        %v1877 = vlaneseq
        %v1878 = vshrl.u32 %v1877, 7
        %v1879 = vsub.s32 %v1876, %v1878
        %v1880 = vrot.slane %v1866, %v1879
        %v1881 = vcombine.high %v1873, %v1873
        %v1882 = vcombine.high %v1880, %v1880
        %v1884 = vunpack.c.l.s4 1966171168
        %v1885 = vunpack.c.0.s8 %v1884
        %v1886 = vlaneseq
        %v1887 = vshrl.u32 %v1886, 7
        %v1888 = vsub.s32 %v1885, %v1887
        %v1889 = vrot.slane %v1873, %v1888
        %v1891 = vunpack.c.l.s4 1966171168
        %v1892 = vunpack.c.0.s8 %v1891
        %v1893 = vlaneseq
        %v1894 = vshrl.u32 %v1893, 7
        %v1895 = vsub.s32 %v1892, %v1894
        %v1896 = vrot.slane %v1880, %v1895
        %v1898 = vunpack.c.l.s4 1966171168
        %v1899 = vunpack.c.0.s8 %v1898
        %v1900 = vlaneseq
        %v1901 = vshrl.u32 %v1900, 7
        %v1902 = vsub.s32 %v1899, %v1901
        %v1903 = vrot.slane %v1881, %v1902
        %v1905 = vunpack.c.l.s4 1966171168
        %v1906 = vunpack.c.0.s8 %v1905
        %v1907 = vlaneseq
        %v1908 = vshrl.u32 %v1907, 7
        %v1909 = vsub.s32 %v1906, %v1908
        %v1910 = vrot.slane %v1882, %v1909
        %v1911 = vcombine.high %v1889, %v1889
        %v1912 = vcombine.high %v1896, %v1896
        %v1913 = vcombine.high %v1903, %v1903
        %v1914 = vcombine.high %v1910, %v1910
        %v1915 = vcombine.high %v494, %v494
        %v1917 = vunpack.c.l.s4 1966171168
        %v1918 = vunpack.c.0.s8 %v1917
        %v1919 = vlaneseq
        %v1920 = vshrl.u32 %v1919, 7
        %v1921 = vsub.s32 %v1918, %v1920
        %v1922 = vrot.slane %v494, %v1921
        %v1924 = vunpack.c.l.s4 1966171168
        %v1925 = vunpack.c.0.s8 %v1924
        %v1926 = vlaneseq
        %v1927 = vshrl.u32 %v1926, 7
        %v1928 = vsub.s32 %v1925, %v1927
        %v1929 = vrot.slane %v1915, %v1928
        %v1930 = vcombine.high %v1922, %v1922
        %v1931 = vcombine.high %v1929, %v1929
        %v1933 = vunpack.c.l.s4 1966171168
        %v1934 = vunpack.c.0.s8 %v1933
        %v1935 = vlaneseq
        %v1936 = vshrl.u32 %v1935, 7
        %v1937 = vsub.s32 %v1934, %v1936
        %v1938 = vrot.slane %v1922, %v1937
        %v1940 = vunpack.c.l.s4 1966171168
        %v1941 = vunpack.c.0.s8 %v1940
        %v1942 = vlaneseq
        %v1943 = vshrl.u32 %v1942, 7
        %v1944 = vsub.s32 %v1941, %v1943
        %v1945 = vrot.slane %v1929, %v1944
        %v1947 = vunpack.c.l.s4 1966171168
        %v1948 = vunpack.c.0.s8 %v1947
        %v1949 = vlaneseq
        %v1950 = vshrl.u32 %v1949, 7
        %v1951 = vsub.s32 %v1948, %v1950
        %v1952 = vrot.slane %v1930, %v1951
        %v1954 = vunpack.c.l.s4 1966171168
        %v1955 = vunpack.c.0.s8 %v1954
        %v1956 = vlaneseq
        %v1957 = vshrl.u32 %v1956, 7
        %v1958 = vsub.s32 %v1955, %v1957
        %v1959 = vrot.slane %v1931, %v1958
        %v1960 = vcombine.high %v1938, %v1938
        %v1961 = vcombine.high %v1945, %v1945
        %v1962 = vcombine.high %v1952, %v1952
        %v1963 = vcombine.high %v1959, %v1959
        %v1964 = vlaneseq
        %v1965 = vshrl.u32 %v1964, 7
        %v1966 = vsub.s32 0, %v1965
        %v1967 = vrot.slane %v1889, %v1966
        %v1968 = vlaneseq
        %v1969 = vshrl.u32 %v1968, 7
        %v1970 = vsub.s32 0, %v1969
        %v1971 = vrot.slane %v1903, %v1970
        %v1972 = vlaneseq
        %v1973 = vshrl.u32 %v1972, 7
        %v1974 = vsub.s32 0, %v1973
        %v1975 = vrot.slane %v1911, %v1974
        %v1976 = vlaneseq
        %v1977 = vshrl.u32 %v1976, 7
        %v1978 = vsub.s32 0, %v1977
        %v1979 = vrot.slane %v1913, %v1978
        %v1980 = vlaneseq
        %v1981 = vshrl.u32 %v1980, 7
        %v1982 = vsub.s32 0, %v1981
        %v1983 = vrot.slane %v1896, %v1982
        %v1984 = vlaneseq
        %v1985 = vshrl.u32 %v1984, 7
        %v1986 = vsub.s32 0, %v1985
        %v1987 = vrot.slane %v1910, %v1986
        %v1988 = vlaneseq
        %v1989 = vshrl.u32 %v1988, 7
        %v1990 = vsub.s32 0, %v1989
        %v1991 = vrot.slane %v1912, %v1990
        %v1992 = vlaneseq
        %v1993 = vshrl.u32 %v1992, 7
        %v1994 = vsub.s32 0, %v1993
        %v1995 = vrot.slane %v1914, %v1994
        %v1996 = vlaneseq
        %v1997 = vshrl.u32 %v1996, 7
        %v1998 = vsub.s32 0, %v1997
        %v1999 = vrot.slane %v1938, %v1998
        %v2000 = vlaneseq
        %v2001 = vshrl.u32 %v2000, 7
        %v2002 = vsub.s32 0, %v2001
        %v2003 = vrot.slane %v1952, %v2002
        %v2004 = vlaneseq
        %v2005 = vshrl.u32 %v2004, 7
        %v2006 = vsub.s32 0, %v2005
        %v2007 = vrot.slane %v1960, %v2006
        %v2008 = vlaneseq
        %v2009 = vshrl.u32 %v2008, 7
        %v2010 = vsub.s32 0, %v2009
        %v2011 = vrot.slane %v1962, %v2010
        %v2012 = vlaneseq
        %v2013 = vshrl.u32 %v2012, 7
        %v2014 = vsub.s32 0, %v2013
        %v2015 = vrot.slane %v1945, %v2014
        %v2016 = vlaneseq
        %v2017 = vshrl.u32 %v2016, 7
        %v2018 = vsub.s32 0, %v2017
        %v2019 = vrot.slane %v1959, %v2018
        %v2020 = vlaneseq
        %v2021 = vshrl.u32 %v2020, 7
        %v2022 = vsub.s32 0, %v2021
        %v2023 = vrot.slane %v1961, %v2022
        %v2024 = vlaneseq
        %v2025 = vshrl.u32 %v2024, 7
        %v2026 = vsub.s32 0, %v2025
        %v2027 = vrot.slane %v1963, %v2026
        %v2044 = vmul.f32 %v1967, %v493
        %v2045 = vmul.f32 %v1967, %v494
        %v2046 = vmul.f32 %v1971, %v493
        %v2047 = vmul.f32 %v1971, %v494
        %v2048 = vmul.f32 %v1975, %v493
        %v2049 = vmul.f32 %v1975, %v494
        %v2050 = vmul.f32 %v1979, %v493
        %v2051 = vmul.f32 %v1979, %v494
        %v2052 = vmul.f32 %v1983, %v493
        %v2053 = vmul.f32 %v1983, %v494
        %v2054 = vmul.f32 %v1987, %v493
        %v2055 = vmul.f32 %v1987, %v494
        %v2056 = vmul.f32 %v1991, %v493
        %v2057 = vmul.f32 %v1991, %v494
        %v2058 = vmul.f32 %v1995, %v493
        %v2059 = vmul.f32 %v1995, %v494
        %v2060 = vmul.f32 %v1999, %v493
        %v2061 = vmul.f32 %v1999, %v494
        %v2062 = vmul.f32 %v2003, %v493
        %v2063 = vmul.f32 %v2003, %v494
        %v2064 = vmul.f32 %v2007, %v493
        %v2065 = vmul.f32 %v2007, %v494
        %v2066 = vmul.f32 %v2011, %v493
        %v2067 = vmul.f32 %v2011, %v494
        %v2068 = vmul.f32 %v2015, %v493
        %v2069 = vmul.f32 %v2015, %v494
        %v2070 = vmul.f32 %v2019, %v493
        %v2071 = vmul.f32 %v2019, %v494
        %v2072 = vmul.f32 %v2023, %v493
        %v2073 = vmul.f32 %v2023, %v494
        %v2074 = vmul.f32 %v2027, %v493
        %v2075 = vmul.f32 %v2027, %v494
        %v2078 = vcombine.high %v512, %v512
        %v2080 = vunpack.c.l.s4 1966171168
        %v2081 = vunpack.c.0.s8 %v2080
        %v2082 = vlaneseq
        %v2083 = vshrl.u32 %v2082, 7
        %v2084 = vsub.s32 %v2081, %v2083
        %v2085 = vrot.slane %v512, %v2084
        %v2087 = vunpack.c.l.s4 1966171168
        %v2088 = vunpack.c.0.s8 %v2087
        %v2089 = vlaneseq
        %v2090 = vshrl.u32 %v2089, 7
        %v2091 = vsub.s32 %v2088, %v2090
        %v2092 = vrot.slane %v2078, %v2091
        %v2093 = vcombine.high %v2085, %v2085
        %v2094 = vcombine.high %v2092, %v2092
        %v2096 = vunpack.c.l.s4 1966171168
        %v2097 = vunpack.c.0.s8 %v2096
        %v2098 = vlaneseq
        %v2099 = vshrl.u32 %v2098, 7
        %v2100 = vsub.s32 %v2097, %v2099
        %v2101 = vrot.slane %v2085, %v2100
        %v2103 = vunpack.c.l.s4 1966171168
        %v2104 = vunpack.c.0.s8 %v2103
        %v2105 = vlaneseq
        %v2106 = vshrl.u32 %v2105, 7
        %v2107 = vsub.s32 %v2104, %v2106
        %v2108 = vrot.slane %v2092, %v2107
        %v2110 = vunpack.c.l.s4 1966171168
        %v2111 = vunpack.c.0.s8 %v2110
        %v2112 = vlaneseq
        %v2113 = vshrl.u32 %v2112, 7
        %v2114 = vsub.s32 %v2111, %v2113
        %v2115 = vrot.slane %v2093, %v2114
        %v2117 = vunpack.c.l.s4 1966171168
        %v2118 = vunpack.c.0.s8 %v2117
        %v2119 = vlaneseq
        %v2120 = vshrl.u32 %v2119, 7
        %v2121 = vsub.s32 %v2118, %v2120
        %v2122 = vrot.slane %v2094, %v2121
        %v2123 = vcombine.high %v2101, %v2101
        %v2124 = vcombine.high %v2108, %v2108
        %v2125 = vcombine.high %v2115, %v2115
        %v2126 = vcombine.high %v2122, %v2122
        %v2127 = vcombine.high %v513, %v513
        %v2129 = vunpack.c.l.s4 1966171168
        %v2130 = vunpack.c.0.s8 %v2129
        %v2131 = vlaneseq
        %v2132 = vshrl.u32 %v2131, 7
        %v2133 = vsub.s32 %v2130, %v2132
        %v2134 = vrot.slane %v513, %v2133
        %v2136 = vunpack.c.l.s4 1966171168
        %v2137 = vunpack.c.0.s8 %v2136
        %v2138 = vlaneseq
        %v2139 = vshrl.u32 %v2138, 7
        %v2140 = vsub.s32 %v2137, %v2139
        %v2141 = vrot.slane %v2127, %v2140
        %v2142 = vcombine.high %v2134, %v2134
        %v2143 = vcombine.high %v2141, %v2141
        %v2145 = vunpack.c.l.s4 1966171168
        %v2146 = vunpack.c.0.s8 %v2145
        %v2147 = vlaneseq
        %v2148 = vshrl.u32 %v2147, 7
        %v2149 = vsub.s32 %v2146, %v2148
        %v2150 = vrot.slane %v2134, %v2149
        %v2152 = vunpack.c.l.s4 1966171168
        %v2153 = vunpack.c.0.s8 %v2152
        %v2154 = vlaneseq
        %v2155 = vshrl.u32 %v2154, 7
        %v2156 = vsub.s32 %v2153, %v2155
        %v2157 = vrot.slane %v2141, %v2156
        %v2159 = vunpack.c.l.s4 1966171168
        %v2160 = vunpack.c.0.s8 %v2159
        %v2161 = vlaneseq
        %v2162 = vshrl.u32 %v2161, 7
        %v2163 = vsub.s32 %v2160, %v2162
        %v2164 = vrot.slane %v2142, %v2163
        %v2166 = vunpack.c.l.s4 1966171168
        %v2167 = vunpack.c.0.s8 %v2166
        %v2168 = vlaneseq
        %v2169 = vshrl.u32 %v2168, 7
        %v2170 = vsub.s32 %v2167, %v2169
        %v2171 = vrot.slane %v2143, %v2170
        %v2172 = vcombine.high %v2150, %v2150
        %v2173 = vcombine.high %v2157, %v2157
        %v2174 = vcombine.high %v2164, %v2164
        %v2175 = vcombine.high %v2171, %v2171
        %v2176 = vlaneseq
        %v2177 = vshrl.u32 %v2176, 7
        %v2178 = vsub.s32 0, %v2177
        %v2179 = vrot.slane %v2101, %v2178
        %v2180 = vlaneseq
        %v2181 = vshrl.u32 %v2180, 7
        %v2182 = vsub.s32 0, %v2181
        %v2183 = vrot.slane %v2115, %v2182
        %v2184 = vlaneseq
        %v2185 = vshrl.u32 %v2184, 7
        %v2186 = vsub.s32 0, %v2185
        %v2187 = vrot.slane %v2123, %v2186
        %v2188 = vlaneseq
        %v2189 = vshrl.u32 %v2188, 7
        %v2190 = vsub.s32 0, %v2189
        %v2191 = vrot.slane %v2125, %v2190
        %v2192 = vlaneseq
        %v2193 = vshrl.u32 %v2192, 7
        %v2194 = vsub.s32 0, %v2193
        %v2195 = vrot.slane %v2108, %v2194
        %v2196 = vlaneseq
        %v2197 = vshrl.u32 %v2196, 7
        %v2198 = vsub.s32 0, %v2197
        %v2199 = vrot.slane %v2122, %v2198
        %v2200 = vlaneseq
        %v2201 = vshrl.u32 %v2200, 7
        %v2202 = vsub.s32 0, %v2201
        %v2203 = vrot.slane %v2124, %v2202
        %v2204 = vlaneseq
        %v2205 = vshrl.u32 %v2204, 7
        %v2206 = vsub.s32 0, %v2205
        %v2207 = vrot.slane %v2126, %v2206
        %v2208 = vlaneseq
        %v2209 = vshrl.u32 %v2208, 7
        %v2210 = vsub.s32 0, %v2209
        %v2211 = vrot.slane %v2150, %v2210
        %v2212 = vlaneseq
        %v2213 = vshrl.u32 %v2212, 7
        %v2214 = vsub.s32 0, %v2213
        %v2215 = vrot.slane %v2164, %v2214
        %v2216 = vlaneseq
        %v2217 = vshrl.u32 %v2216, 7
        %v2218 = vsub.s32 0, %v2217
        %v2219 = vrot.slane %v2172, %v2218
        %v2220 = vlaneseq
        %v2221 = vshrl.u32 %v2220, 7
        %v2222 = vsub.s32 0, %v2221
        %v2223 = vrot.slane %v2174, %v2222
        %v2224 = vlaneseq
        %v2225 = vshrl.u32 %v2224, 7
        %v2226 = vsub.s32 0, %v2225
        %v2227 = vrot.slane %v2157, %v2226
        %v2228 = vlaneseq
        %v2229 = vshrl.u32 %v2228, 7
        %v2230 = vsub.s32 0, %v2229
        %v2231 = vrot.slane %v2171, %v2230
        %v2232 = vlaneseq
        %v2233 = vshrl.u32 %v2232, 7
        %v2234 = vsub.s32 0, %v2233
        %v2235 = vrot.slane %v2173, %v2234
        %v2236 = vlaneseq
        %v2237 = vshrl.u32 %v2236, 7
        %v2238 = vsub.s32 0, %v2237
        %v2239 = vrot.slane %v2175, %v2238
        %v2256 = vmul.f32 %v2179, %v512
        %v2257 = vmul.f32 %v2179, %v513
        %v2258 = vmul.f32 %v2183, %v512
        %v2259 = vmul.f32 %v2183, %v513
        %v2260 = vmul.f32 %v2187, %v512
        %v2261 = vmul.f32 %v2187, %v513
        %v2262 = vmul.f32 %v2191, %v512
        %v2263 = vmul.f32 %v2191, %v513
        %v2264 = vmul.f32 %v2195, %v512
        %v2265 = vmul.f32 %v2195, %v513
        %v2266 = vmul.f32 %v2199, %v512
        %v2267 = vmul.f32 %v2199, %v513
        %v2268 = vmul.f32 %v2203, %v512
        %v2269 = vmul.f32 %v2203, %v513
        %v2270 = vmul.f32 %v2207, %v512
        %v2271 = vmul.f32 %v2207, %v513
        %v2272 = vmul.f32 %v2211, %v512
        %v2273 = vmul.f32 %v2211, %v513
        %v2274 = vmul.f32 %v2215, %v512
        %v2275 = vmul.f32 %v2215, %v513
        %v2276 = vmul.f32 %v2219, %v512
        %v2277 = vmul.f32 %v2219, %v513
        %v2278 = vmul.f32 %v2223, %v512
        %v2279 = vmul.f32 %v2223, %v513
        %v2280 = vmul.f32 %v2227, %v512
        %v2281 = vmul.f32 %v2227, %v513
        %v2282 = vmul.f32 %v2231, %v512
        %v2283 = vmul.f32 %v2231, %v513
        %v2284 = vmul.f32 %v2235, %v512
        %v2285 = vmul.f32 %v2235, %v513
        %v2286 = vmul.f32 %v2239, %v512
        %v2287 = vmul.f32 %v2239, %v513
        %v2288 = vadd.f32 %v2044, %v2256
        %v2289 = vadd.f32 %v2045, %v2257
        %v2290 = vadd.f32 %v2046, %v2258
        %v2291 = vadd.f32 %v2047, %v2259
        %v2292 = vadd.f32 %v2048, %v2260
        %v2293 = vadd.f32 %v2049, %v2261
        %v2294 = vadd.f32 %v2050, %v2262
        %v2295 = vadd.f32 %v2051, %v2263
        %v2296 = vadd.f32 %v2052, %v2264
        %v2297 = vadd.f32 %v2053, %v2265
        %v2298 = vadd.f32 %v2054, %v2266
        %v2299 = vadd.f32 %v2055, %v2267
        %v2300 = vadd.f32 %v2056, %v2268
        %v2301 = vadd.f32 %v2057, %v2269
        %v2302 = vadd.f32 %v2058, %v2270
        %v2303 = vadd.f32 %v2059, %v2271
        %v2304 = vadd.f32 %v2060, %v2272
        %v2305 = vadd.f32 %v2061, %v2273
        %v2306 = vadd.f32 %v2062, %v2274
        %v2307 = vadd.f32 %v2063, %v2275
        %v2308 = vadd.f32 %v2064, %v2276
        %v2309 = vadd.f32 %v2065, %v2277
        %v2310 = vadd.f32 %v2066, %v2278
        %v2311 = vadd.f32 %v2067, %v2279
        %v2312 = vadd.f32 %v2068, %v2280
        %v2313 = vadd.f32 %v2069, %v2281
        %v2314 = vadd.f32 %v2070, %v2282
        %v2315 = vadd.f32 %v2071, %v2283
        %v2316 = vadd.f32 %v2072, %v2284
        %v2317 = vadd.f32 %v2073, %v2285
        %v2318 = vadd.f32 %v2074, %v2286
        %v2319 = vadd.f32 %v2075, %v2287
        %v2322 = vcombine.high %v531, %v531
        %v2324 = vunpack.c.l.s4 1966171168
        %v2325 = vunpack.c.0.s8 %v2324
        %v2326 = vlaneseq
        %v2327 = vshrl.u32 %v2326, 7
        %v2328 = vsub.s32 %v2325, %v2327
        %v2329 = vrot.slane %v531, %v2328
        %v2331 = vunpack.c.l.s4 1966171168
        %v2332 = vunpack.c.0.s8 %v2331
        %v2333 = vlaneseq
        %v2334 = vshrl.u32 %v2333, 7
        %v2335 = vsub.s32 %v2332, %v2334
        %v2336 = vrot.slane %v2322, %v2335
        %v2337 = vcombine.high %v2329, %v2329
        %v2338 = vcombine.high %v2336, %v2336
        %v2340 = vunpack.c.l.s4 1966171168
        %v2341 = vunpack.c.0.s8 %v2340
        %v2342 = vlaneseq
        %v2343 = vshrl.u32 %v2342, 7
        %v2344 = vsub.s32 %v2341, %v2343
        %v2345 = vrot.slane %v2329, %v2344
        %v2347 = vunpack.c.l.s4 1966171168
        %v2348 = vunpack.c.0.s8 %v2347
        %v2349 = vlaneseq
        %v2350 = vshrl.u32 %v2349, 7
        %v2351 = vsub.s32 %v2348, %v2350
        %v2352 = vrot.slane %v2336, %v2351
        %v2354 = vunpack.c.l.s4 1966171168
        %v2355 = vunpack.c.0.s8 %v2354
        %v2356 = vlaneseq
        %v2357 = vshrl.u32 %v2356, 7
        %v2358 = vsub.s32 %v2355, %v2357
        %v2359 = vrot.slane %v2337, %v2358
        %v2361 = vunpack.c.l.s4 1966171168
        %v2362 = vunpack.c.0.s8 %v2361
        %v2363 = vlaneseq
        %v2364 = vshrl.u32 %v2363, 7
        %v2365 = vsub.s32 %v2362, %v2364
        %v2366 = vrot.slane %v2338, %v2365
        %v2367 = vcombine.high %v2345, %v2345
        %v2368 = vcombine.high %v2352, %v2352
        %v2369 = vcombine.high %v2359, %v2359
        %v2370 = vcombine.high %v2366, %v2366
        %v2371 = vcombine.high %v532, %v532
        %v2373 = vunpack.c.l.s4 1966171168
        %v2374 = vunpack.c.0.s8 %v2373
        %v2375 = vlaneseq
        %v2376 = vshrl.u32 %v2375, 7
        %v2377 = vsub.s32 %v2374, %v2376
        %v2378 = vrot.slane %v532, %v2377
        %v2380 = vunpack.c.l.s4 1966171168
        %v2381 = vunpack.c.0.s8 %v2380
        %v2382 = vlaneseq
        %v2383 = vshrl.u32 %v2382, 7
        %v2384 = vsub.s32 %v2381, %v2383
        %v2385 = vrot.slane %v2371, %v2384
        %v2386 = vcombine.high %v2378, %v2378
        %v2387 = vcombine.high %v2385, %v2385
        %v2389 = vunpack.c.l.s4 1966171168
        %v2390 = vunpack.c.0.s8 %v2389
        %v2391 = vlaneseq
        %v2392 = vshrl.u32 %v2391, 7
        %v2393 = vsub.s32 %v2390, %v2392
        %v2394 = vrot.slane %v2378, %v2393
        %v2396 = vunpack.c.l.s4 1966171168
        %v2397 = vunpack.c.0.s8 %v2396
        %v2398 = vlaneseq
        %v2399 = vshrl.u32 %v2398, 7
        %v2400 = vsub.s32 %v2397, %v2399
        %v2401 = vrot.slane %v2385, %v2400
        %v2403 = vunpack.c.l.s4 1966171168
        %v2404 = vunpack.c.0.s8 %v2403
        %v2405 = vlaneseq
        %v2406 = vshrl.u32 %v2405, 7
        %v2407 = vsub.s32 %v2404, %v2406
        %v2408 = vrot.slane %v2386, %v2407
        %v2410 = vunpack.c.l.s4 1966171168
        %v2411 = vunpack.c.0.s8 %v2410
        %v2412 = vlaneseq
        %v2413 = vshrl.u32 %v2412, 7
        %v2414 = vsub.s32 %v2411, %v2413
        %v2415 = vrot.slane %v2387, %v2414
        %v2416 = vcombine.high %v2394, %v2394
        %v2417 = vcombine.high %v2401, %v2401
        %v2418 = vcombine.high %v2408, %v2408
        %v2419 = vcombine.high %v2415, %v2415
        %v2420 = vlaneseq
        %v2421 = vshrl.u32 %v2420, 7
        %v2422 = vsub.s32 0, %v2421
        %v2423 = vrot.slane %v2345, %v2422
        %v2424 = vlaneseq
        %v2425 = vshrl.u32 %v2424, 7
        %v2426 = vsub.s32 0, %v2425
        %v2427 = vrot.slane %v2359, %v2426
        %v2428 = vlaneseq
        %v2429 = vshrl.u32 %v2428, 7
        %v2430 = vsub.s32 0, %v2429
        %v2431 = vrot.slane %v2367, %v2430
        %v2432 = vlaneseq
        %v2433 = vshrl.u32 %v2432, 7
        %v2434 = vsub.s32 0, %v2433
        %v2435 = vrot.slane %v2369, %v2434
        %v2436 = vlaneseq
        %v2437 = vshrl.u32 %v2436, 7
        %v2438 = vsub.s32 0, %v2437
        %v2439 = vrot.slane %v2352, %v2438
        %v2440 = vlaneseq
        %v2441 = vshrl.u32 %v2440, 7
        %v2442 = vsub.s32 0, %v2441
        %v2443 = vrot.slane %v2366, %v2442
        %v2444 = vlaneseq
        %v2445 = vshrl.u32 %v2444, 7
        %v2446 = vsub.s32 0, %v2445
        %v2447 = vrot.slane %v2368, %v2446
        %v2448 = vlaneseq
        %v2449 = vshrl.u32 %v2448, 7
        %v2450 = vsub.s32 0, %v2449
        %v2451 = vrot.slane %v2370, %v2450
        %v2452 = vlaneseq
        %v2453 = vshrl.u32 %v2452, 7
        %v2454 = vsub.s32 0, %v2453
        %v2455 = vrot.slane %v2394, %v2454
        %v2456 = vlaneseq
        %v2457 = vshrl.u32 %v2456, 7
        %v2458 = vsub.s32 0, %v2457
        %v2459 = vrot.slane %v2408, %v2458
        %v2460 = vlaneseq
        %v2461 = vshrl.u32 %v2460, 7
        %v2462 = vsub.s32 0, %v2461
        %v2463 = vrot.slane %v2416, %v2462
        %v2464 = vlaneseq
        %v2465 = vshrl.u32 %v2464, 7
        %v2466 = vsub.s32 0, %v2465
        %v2467 = vrot.slane %v2418, %v2466
        %v2468 = vlaneseq
        %v2469 = vshrl.u32 %v2468, 7
        %v2470 = vsub.s32 0, %v2469
        %v2471 = vrot.slane %v2401, %v2470
        %v2472 = vlaneseq
        %v2473 = vshrl.u32 %v2472, 7
        %v2474 = vsub.s32 0, %v2473
        %v2475 = vrot.slane %v2415, %v2474
        %v2476 = vlaneseq
        %v2477 = vshrl.u32 %v2476, 7
        %v2478 = vsub.s32 0, %v2477
        %v2479 = vrot.slane %v2417, %v2478
        %v2480 = vlaneseq
        %v2481 = vshrl.u32 %v2480, 7
        %v2482 = vsub.s32 0, %v2481
        %v2483 = vrot.slane %v2419, %v2482
        %v2500 = vmul.f32 %v2423, %v531
        %v2501 = vmul.f32 %v2423, %v532
        %v2502 = vmul.f32 %v2427, %v531
        %v2503 = vmul.f32 %v2427, %v532
        %v2504 = vmul.f32 %v2431, %v531
        %v2505 = vmul.f32 %v2431, %v532
        %v2506 = vmul.f32 %v2435, %v531
        %v2507 = vmul.f32 %v2435, %v532
        %v2508 = vmul.f32 %v2439, %v531
        %v2509 = vmul.f32 %v2439, %v532
        %v2510 = vmul.f32 %v2443, %v531
        %v2511 = vmul.f32 %v2443, %v532
        %v2512 = vmul.f32 %v2447, %v531
        %v2513 = vmul.f32 %v2447, %v532
        %v2514 = vmul.f32 %v2451, %v531
        %v2515 = vmul.f32 %v2451, %v532
        %v2516 = vmul.f32 %v2455, %v531
        %v2517 = vmul.f32 %v2455, %v532
        %v2518 = vmul.f32 %v2459, %v531
        %v2519 = vmul.f32 %v2459, %v532
        %v2520 = vmul.f32 %v2463, %v531
        %v2521 = vmul.f32 %v2463, %v532
        %v2522 = vmul.f32 %v2467, %v531
        %v2523 = vmul.f32 %v2467, %v532
        %v2524 = vmul.f32 %v2471, %v531
        %v2525 = vmul.f32 %v2471, %v532
        %v2526 = vmul.f32 %v2475, %v531
        %v2527 = vmul.f32 %v2475, %v532
        %v2528 = vmul.f32 %v2479, %v531
        %v2529 = vmul.f32 %v2479, %v532
        %v2530 = vmul.f32 %v2483, %v531
        %v2531 = vmul.f32 %v2483, %v532
        %v2532 = vadd.f32 %v2288, %v2500
        %v2533 = vadd.f32 %v2289, %v2501
        %v2534 = vadd.f32 %v2290, %v2502
        %v2535 = vadd.f32 %v2291, %v2503
        %v2536 = vadd.f32 %v2292, %v2504
        %v2537 = vadd.f32 %v2293, %v2505
        %v2538 = vadd.f32 %v2294, %v2506
        %v2539 = vadd.f32 %v2295, %v2507
        %v2540 = vadd.f32 %v2296, %v2508
        %v2541 = vadd.f32 %v2297, %v2509
        %v2542 = vadd.f32 %v2298, %v2510
        %v2543 = vadd.f32 %v2299, %v2511
        %v2544 = vadd.f32 %v2300, %v2512
        %v2545 = vadd.f32 %v2301, %v2513
        %v2546 = vadd.f32 %v2302, %v2514
        %v2547 = vadd.f32 %v2303, %v2515
        %v2548 = vadd.f32 %v2304, %v2516
        %v2549 = vadd.f32 %v2305, %v2517
        %v2550 = vadd.f32 %v2306, %v2518
        %v2551 = vadd.f32 %v2307, %v2519
        %v2552 = vadd.f32 %v2308, %v2520
        %v2553 = vadd.f32 %v2309, %v2521
        %v2554 = vadd.f32 %v2310, %v2522
        %v2555 = vadd.f32 %v2311, %v2523
        %v2556 = vadd.f32 %v2312, %v2524
        %v2557 = vadd.f32 %v2313, %v2525
        %v2558 = vadd.f32 %v2314, %v2526
        %v2559 = vadd.f32 %v2315, %v2527
        %v2560 = vadd.f32 %v2316, %v2528
        %v2561 = vadd.f32 %v2317, %v2529
        %v2562 = vadd.f32 %v2318, %v2530
        %v2563 = vadd.f32 %v2319, %v2531
        %v2564 = vmul.f32 %v2532, 0.95
        %v2565 = vmul.f32 %v2533, 0.95
        %v2566 = vmul.f32 %v2534, 0.95
        %v2567 = vmul.f32 %v2535, 0.95
        %v2568 = vmul.f32 %v2536, 0.95
        %v2569 = vmul.f32 %v2537, 0.95
        %v2570 = vmul.f32 %v2538, 0.95
        %v2571 = vmul.f32 %v2539, 0.95
        %v2572 = vmul.f32 %v2540, 0.95
        %v2573 = vmul.f32 %v2541, 0.95
        %v2574 = vmul.f32 %v2542, 0.95
        %v2575 = vmul.f32 %v2543, 0.95
        %v2576 = vmul.f32 %v2544, 0.95
        %v2577 = vmul.f32 %v2545, 0.95
        %v2578 = vmul.f32 %v2546, 0.95
        %v2579 = vmul.f32 %v2547, 0.95
        %v2580 = vmul.f32 %v2548, 0.95
        %v2581 = vmul.f32 %v2549, 0.95
        %v2582 = vmul.f32 %v2550, 0.95
        %v2583 = vmul.f32 %v2551, 0.95
        %v2584 = vmul.f32 %v2552, 0.95
        %v2585 = vmul.f32 %v2553, 0.95
        %v2586 = vmul.f32 %v2554, 0.95
        %v2587 = vmul.f32 %v2555, 0.95
        %v2588 = vmul.f32 %v2556, 0.95
        %v2589 = vmul.f32 %v2557, 0.95
        %v2590 = vmul.f32 %v2558, 0.95
        %v2591 = vmul.f32 %v2559, 0.95
        %v2592 = vmul.f32 %v2560, 0.95
        %v2593 = vmul.f32 %v2561, 0.95
        %v2594 = vmul.f32 %v2562, 0.95
        %v2595 = vmul.f32 %v2563, 0.95
        %v2596 = vmul.f32 %v1575, %v543
        %v2597 = vmul.f32 %v1575, %v550
        %v2598 = vmul.f32 %v1579, %v543
        %v2599 = vmul.f32 %v1579, %v550
        %v2600 = vmul.f32 %v1583, %v543
        %v2601 = vmul.f32 %v1583, %v550
        %v2602 = vmul.f32 %v1587, %v543
        %v2603 = vmul.f32 %v1587, %v550
        %v2604 = vmul.f32 %v1591, %v543
        %v2605 = vmul.f32 %v1591, %v550
        %v2606 = vmul.f32 %v1595, %v543
        %v2607 = vmul.f32 %v1595, %v550
        %v2608 = vmul.f32 %v1599, %v543
        %v2609 = vmul.f32 %v1599, %v550
        %v2610 = vmul.f32 %v1603, %v543
        %v2611 = vmul.f32 %v1603, %v550
        %v2612 = vmul.f32 %v1607, %v543
        %v2613 = vmul.f32 %v1607, %v550
        %v2614 = vmul.f32 %v1611, %v543
        %v2615 = vmul.f32 %v1611, %v550
        %v2616 = vmul.f32 %v1615, %v543
        %v2617 = vmul.f32 %v1615, %v550
        %v2618 = vmul.f32 %v1619, %v543
        %v2619 = vmul.f32 %v1619, %v550
        %v2620 = vmul.f32 %v1623, %v543
        %v2621 = vmul.f32 %v1623, %v550
        %v2622 = vmul.f32 %v1627, %v543
        %v2623 = vmul.f32 %v1627, %v550
        %v2624 = vmul.f32 %v1631, %v543
        %v2625 = vmul.f32 %v1631, %v550
        %v2626 = vmul.f32 %v1635, %v543
        %v2627 = vmul.f32 %v1635, %v550
        %v2628 = vadd.f32 %v2596, 1e-06
        %v2629 = vadd.f32 %v2597, 1e-06
        %v2630 = vadd.f32 %v2598, 1e-06
        %v2631 = vadd.f32 %v2599, 1e-06
        %v2632 = vadd.f32 %v2600, 1e-06
        %v2633 = vadd.f32 %v2601, 1e-06
        %v2634 = vadd.f32 %v2602, 1e-06
        %v2635 = vadd.f32 %v2603, 1e-06
        %v2636 = vadd.f32 %v2604, 1e-06
        %v2637 = vadd.f32 %v2605, 1e-06
        %v2638 = vadd.f32 %v2606, 1e-06
        %v2639 = vadd.f32 %v2607, 1e-06
        %v2640 = vadd.f32 %v2608, 1e-06
        %v2641 = vadd.f32 %v2609, 1e-06
        %v2642 = vadd.f32 %v2610, 1e-06
        %v2643 = vadd.f32 %v2611, 1e-06
        %v2644 = vadd.f32 %v2612, 1e-06
        %v2645 = vadd.f32 %v2613, 1e-06
        %v2646 = vadd.f32 %v2614, 1e-06
        %v2647 = vadd.f32 %v2615, 1e-06
        %v2648 = vadd.f32 %v2616, 1e-06
        %v2649 = vadd.f32 %v2617, 1e-06
        %v2650 = vadd.f32 %v2618, 1e-06
        %v2651 = vadd.f32 %v2619, 1e-06
        %v2652 = vadd.f32 %v2620, 1e-06
        %v2653 = vadd.f32 %v2621, 1e-06
        %v2654 = vadd.f32 %v2622, 1e-06
        %v2655 = vadd.f32 %v2623, 1e-06
        %v2656 = vadd.f32 %v2624, 1e-06
        %v2657 = vadd.f32 %v2625, 1e-06
        %v2658 = vadd.f32 %v2626, 1e-06
        %v2659 = vadd.f32 %v2627, 1e-06
        %v2660 = vrcp.pop %v2628
        %v2661 = vmul.f32 %v2564, %v2660
        %v2662 = vrcp.pop %v2629
        %v2663 = vmul.f32 %v2565, %v2662
        %v2664 = vrcp.pop %v2630
        %v2665 = vmul.f32 %v2566, %v2664
        %v2666 = vrcp.pop %v2631
        %v2667 = vmul.f32 %v2567, %v2666
        %v2668 = vrcp.pop %v2632
        %v2669 = vmul.f32 %v2568, %v2668
        %v2670 = vrcp.pop %v2633
        %v2671 = vmul.f32 %v2569, %v2670
        %v2672 = vrcp.pop %v2634
        %v2673 = vmul.f32 %v2570, %v2672
        %v2674 = vrcp.pop %v2635
        %v2675 = vmul.f32 %v2571, %v2674
        %v2676 = vrcp.pop %v2636
        %v2677 = vmul.f32 %v2572, %v2676
        %v2678 = vrcp.pop %v2637
        %v2679 = vmul.f32 %v2573, %v2678
        %v2680 = vrcp.pop %v2638
        %v2681 = vmul.f32 %v2574, %v2680
        %v2682 = vrcp.pop %v2639
        %v2683 = vmul.f32 %v2575, %v2682
        %v2684 = vrcp.pop %v2640
        %v2685 = vmul.f32 %v2576, %v2684
        %v2686 = vrcp.pop %v2641
        %v2687 = vmul.f32 %v2577, %v2686
        %v2688 = vrcp.pop %v2642
        %v2689 = vmul.f32 %v2578, %v2688
        %v2690 = vrcp.pop %v2643
        %v2691 = vmul.f32 %v2579, %v2690
        %v2692 = vrcp.pop %v2644
        %v2693 = vmul.f32 %v2580, %v2692
        %v2694 = vrcp.pop %v2645
        %v2695 = vmul.f32 %v2581, %v2694
        %v2696 = vrcp.pop %v2646
        %v2697 = vmul.f32 %v2582, %v2696
        %v2698 = vrcp.pop %v2647
        %v2699 = vmul.f32 %v2583, %v2698
        %v2700 = vrcp.pop %v2648
        %v2701 = vmul.f32 %v2584, %v2700
        %v2702 = vrcp.pop %v2649
        %v2703 = vmul.f32 %v2585, %v2702
        %v2704 = vrcp.pop %v2650
        %v2705 = vmul.f32 %v2586, %v2704
        %v2706 = vrcp.pop %v2651
        %v2707 = vmul.f32 %v2587, %v2706
        %v2708 = vrcp.pop %v2652
        %v2709 = vmul.f32 %v2588, %v2708
        %v2710 = vrcp.pop %v2653
        %v2711 = vmul.f32 %v2589, %v2710
        %v2712 = vrcp.pop %v2654
        %v2713 = vmul.f32 %v2590, %v2712
        %v2714 = vrcp.pop %v2655
        %v2715 = vmul.f32 %v2591, %v2714
        %v2716 = vrcp.pop %v2656
        %v2717 = vmul.f32 %v2592, %v2716
        %v2718 = vrcp.pop %v2657
        %v2719 = vmul.f32 %v2593, %v2718
        %v2720 = vrcp.pop %v2658
        %v2721 = vmul.f32 %v2594, %v2720
        %v2722 = vrcp.pop %v2659
        %v2723 = vmul.f32 %v2595, %v2722
        %v2724 = vmul.f32 %v2661, %v2661
        %v2725 = vmul.f32 %v2663, %v2663
        %v2726 = vmul.f32 %v2665, %v2665
        %v2727 = vmul.f32 %v2667, %v2667
        %v2728 = vmul.f32 %v2669, %v2669
        %v2729 = vmul.f32 %v2671, %v2671
        %v2730 = vmul.f32 %v2673, %v2673
        %v2731 = vmul.f32 %v2675, %v2675
        %v2732 = vmul.f32 %v2677, %v2677
        %v2733 = vmul.f32 %v2679, %v2679
        %v2734 = vmul.f32 %v2681, %v2681
        %v2735 = vmul.f32 %v2683, %v2683
        %v2736 = vmul.f32 %v2685, %v2685
        %v2737 = vmul.f32 %v2687, %v2687
        %v2738 = vmul.f32 %v2689, %v2689
        %v2739 = vmul.f32 %v2691, %v2691
        %v2740 = vmul.f32 %v2693, %v2693
        %v2741 = vmul.f32 %v2695, %v2695
        %v2742 = vmul.f32 %v2697, %v2697
        %v2743 = vmul.f32 %v2699, %v2699
        %v2744 = vmul.f32 %v2701, %v2701
        %v2745 = vmul.f32 %v2703, %v2703
        %v2746 = vmul.f32 %v2705, %v2705
        %v2747 = vmul.f32 %v2707, %v2707
        %v2748 = vmul.f32 %v2709, %v2709
        %v2749 = vmul.f32 %v2711, %v2711
        %v2750 = vmul.f32 %v2713, %v2713
        %v2751 = vmul.f32 %v2715, %v2715
        %v2752 = vmul.f32 %v2717, %v2717
        %v2753 = vmul.f32 %v2719, %v2719
        %v2754 = vmul.f32 %v2721, %v2721
        %v2755 = vmul.f32 %v2723, %v2723
        %v2756 = vsub.f32 1.0, %v2724
        %v2757 = vsub.f32 1.0, %v2725
        %v2758 = vsub.f32 1.0, %v2726
        %v2759 = vsub.f32 1.0, %v2727
        %v2760 = vsub.f32 1.0, %v2728
        %v2761 = vsub.f32 1.0, %v2729
        %v2762 = vsub.f32 1.0, %v2730
        %v2763 = vsub.f32 1.0, %v2731
        %v2764 = vsub.f32 1.0, %v2732
        %v2765 = vsub.f32 1.0, %v2733
        %v2766 = vsub.f32 1.0, %v2734
        %v2767 = vsub.f32 1.0, %v2735
        %v2768 = vsub.f32 1.0, %v2736
        %v2769 = vsub.f32 1.0, %v2737
        %v2770 = vsub.f32 1.0, %v2738
        %v2771 = vsub.f32 1.0, %v2739
        %v2772 = vsub.f32 1.0, %v2740
        %v2773 = vsub.f32 1.0, %v2741
        %v2774 = vsub.f32 1.0, %v2742
        %v2775 = vsub.f32 1.0, %v2743
        %v2776 = vsub.f32 1.0, %v2744
        %v2777 = vsub.f32 1.0, %v2745
        %v2778 = vsub.f32 1.0, %v2746
        %v2779 = vsub.f32 1.0, %v2747
        %v2780 = vsub.f32 1.0, %v2748
        %v2781 = vsub.f32 1.0, %v2749
        %v2782 = vsub.f32 1.0, %v2750
        %v2783 = vsub.f32 1.0, %v2751
        %v2784 = vsub.f32 1.0, %v2752
        %v2785 = vsub.f32 1.0, %v2753
        %v2786 = vsub.f32 1.0, %v2754
        %v2787 = vsub.f32 1.0, %v2755
        %v2788 = vrsqrt.pop %v2756
        %v2789 = vmul.f32 %v2756, %v2788
        %vm2790 = vcmp.eq.f32.partialorder %v2756, inf
        %v2791 = vsel %vm2790, %v2756, %v2789
        %vm2792 = vcmp.eq.f32.partialorder %v2756, 0.0
        %v2793 = vand.u32 %v2756, 2147483648
        %v2794 = vsel %vm2792, %v2793, %v2791
        %v2795 = vrsqrt.pop %v2757
        %v2796 = vmul.f32 %v2757, %v2795
        %vm2797 = vcmp.eq.f32.partialorder %v2757, inf
        %v2798 = vsel %vm2797, %v2757, %v2796
        %vm2799 = vcmp.eq.f32.partialorder %v2757, 0.0
        %v2800 = vand.u32 %v2757, 2147483648
        %v2801 = vsel %vm2799, %v2800, %v2798
        %v2802 = vrsqrt.pop %v2758
        %v2803 = vmul.f32 %v2758, %v2802
        %vm2804 = vcmp.eq.f32.partialorder %v2758, inf
        %v2805 = vsel %vm2804, %v2758, %v2803
        %vm2806 = vcmp.eq.f32.partialorder %v2758, 0.0
        %v2807 = vand.u32 %v2758, 2147483648
        %v2808 = vsel %vm2806, %v2807, %v2805
        %v2809 = vrsqrt.pop %v2759
        %v2810 = vmul.f32 %v2759, %v2809
        %vm2811 = vcmp.eq.f32.partialorder %v2759, inf
        %v2812 = vsel %vm2811, %v2759, %v2810
        %vm2813 = vcmp.eq.f32.partialorder %v2759, 0.0
        %v2814 = vand.u32 %v2759, 2147483648
        %v2815 = vsel %vm2813, %v2814, %v2812
        %v2816 = vrsqrt.pop %v2760
        %v2817 = vmul.f32 %v2760, %v2816
        %vm2818 = vcmp.eq.f32.partialorder %v2760, inf
        %v2819 = vsel %vm2818, %v2760, %v2817
        %vm2820 = vcmp.eq.f32.partialorder %v2760, 0.0
        %v2821 = vand.u32 %v2760, 2147483648
        %v2822 = vsel %vm2820, %v2821, %v2819
        %v2823 = vrsqrt.pop %v2761
        %v2824 = vmul.f32 %v2761, %v2823
        %vm2825 = vcmp.eq.f32.partialorder %v2761, inf
        %v2826 = vsel %vm2825, %v2761, %v2824
        %vm2827 = vcmp.eq.f32.partialorder %v2761, 0.0
        %v2828 = vand.u32 %v2761, 2147483648
        %v2829 = vsel %vm2827, %v2828, %v2826
        %v2830 = vrsqrt.pop %v2762
        %v2831 = vmul.f32 %v2762, %v2830
        %vm2832 = vcmp.eq.f32.partialorder %v2762, inf
        %v2833 = vsel %vm2832, %v2762, %v2831
        %vm2834 = vcmp.eq.f32.partialorder %v2762, 0.0
        %v2835 = vand.u32 %v2762, 2147483648
        %v2836 = vsel %vm2834, %v2835, %v2833
        %v2837 = vrsqrt.pop %v2763
        %v2838 = vmul.f32 %v2763, %v2837
        %vm2839 = vcmp.eq.f32.partialorder %v2763, inf
        %v2840 = vsel %vm2839, %v2763, %v2838
        %vm2841 = vcmp.eq.f32.partialorder %v2763, 0.0
        %v2842 = vand.u32 %v2763, 2147483648
        %v2843 = vsel %vm2841, %v2842, %v2840
        %v2844 = vrsqrt.pop %v2764
        %v2845 = vmul.f32 %v2764, %v2844
        %vm2846 = vcmp.eq.f32.partialorder %v2764, inf
        %v2847 = vsel %vm2846, %v2764, %v2845
        %vm2848 = vcmp.eq.f32.partialorder %v2764, 0.0
        %v2849 = vand.u32 %v2764, 2147483648
        %v2850 = vsel %vm2848, %v2849, %v2847
        %v2851 = vrsqrt.pop %v2765
        %v2852 = vmul.f32 %v2765, %v2851
        %vm2853 = vcmp.eq.f32.partialorder %v2765, inf
        %v2854 = vsel %vm2853, %v2765, %v2852
        %vm2855 = vcmp.eq.f32.partialorder %v2765, 0.0
        %v2856 = vand.u32 %v2765, 2147483648
        %v2857 = vsel %vm2855, %v2856, %v2854
        %v2858 = vrsqrt.pop %v2766
        %v2859 = vmul.f32 %v2766, %v2858
        %vm2860 = vcmp.eq.f32.partialorder %v2766, inf
        %v2861 = vsel %vm2860, %v2766, %v2859
        %vm2862 = vcmp.eq.f32.partialorder %v2766, 0.0
        %v2863 = vand.u32 %v2766, 2147483648
        %v2864 = vsel %vm2862, %v2863, %v2861
        %v2865 = vrsqrt.pop %v2767
        %v2866 = vmul.f32 %v2767, %v2865
        %vm2867 = vcmp.eq.f32.partialorder %v2767, inf
        %v2868 = vsel %vm2867, %v2767, %v2866
        %vm2869 = vcmp.eq.f32.partialorder %v2767, 0.0
        %v2870 = vand.u32 %v2767, 2147483648
        %v2871 = vsel %vm2869, %v2870, %v2868
        %v2872 = vrsqrt.pop %v2768
        %v2873 = vmul.f32 %v2768, %v2872
        %vm2874 = vcmp.eq.f32.partialorder %v2768, inf
        %v2875 = vsel %vm2874, %v2768, %v2873
        %vm2876 = vcmp.eq.f32.partialorder %v2768, 0.0
        %v2877 = vand.u32 %v2768, 2147483648
        %v2878 = vsel %vm2876, %v2877, %v2875
        %v2879 = vrsqrt.pop %v2769
        %v2880 = vmul.f32 %v2769, %v2879
        %vm2881 = vcmp.eq.f32.partialorder %v2769, inf
        %v2882 = vsel %vm2881, %v2769, %v2880
        %vm2883 = vcmp.eq.f32.partialorder %v2769, 0.0
        %v2884 = vand.u32 %v2769, 2147483648
        %v2885 = vsel %vm2883, %v2884, %v2882
        %v2886 = vrsqrt.pop %v2770
        %v2887 = vmul.f32 %v2770, %v2886
        %vm2888 = vcmp.eq.f32.partialorder %v2770, inf
        %v2889 = vsel %vm2888, %v2770, %v2887
        %vm2890 = vcmp.eq.f32.partialorder %v2770, 0.0
        %v2891 = vand.u32 %v2770, 2147483648
        %v2892 = vsel %vm2890, %v2891, %v2889
        %v2893 = vrsqrt.pop %v2771
        %v2894 = vmul.f32 %v2771, %v2893
        %vm2895 = vcmp.eq.f32.partialorder %v2771, inf
        %v2896 = vsel %vm2895, %v2771, %v2894
        %vm2897 = vcmp.eq.f32.partialorder %v2771, 0.0
        %v2898 = vand.u32 %v2771, 2147483648
        %v2899 = vsel %vm2897, %v2898, %v2896
        %v2900 = vrsqrt.pop %v2772
        %v2901 = vmul.f32 %v2772, %v2900
        %vm2902 = vcmp.eq.f32.partialorder %v2772, inf
        %v2903 = vsel %vm2902, %v2772, %v2901
        %vm2904 = vcmp.eq.f32.partialorder %v2772, 0.0
        %v2905 = vand.u32 %v2772, 2147483648
        %v2906 = vsel %vm2904, %v2905, %v2903
        %v2907 = vrsqrt.pop %v2773
        %v2908 = vmul.f32 %v2773, %v2907
        %vm2909 = vcmp.eq.f32.partialorder %v2773, inf
        %v2910 = vsel %vm2909, %v2773, %v2908
        %vm2911 = vcmp.eq.f32.partialorder %v2773, 0.0
        %v2912 = vand.u32 %v2773, 2147483648
        %v2913 = vsel %vm2911, %v2912, %v2910
        %v2914 = vrsqrt.pop %v2774
        %v2915 = vmul.f32 %v2774, %v2914
        %vm2916 = vcmp.eq.f32.partialorder %v2774, inf
        %v2917 = vsel %vm2916, %v2774, %v2915
        %vm2918 = vcmp.eq.f32.partialorder %v2774, 0.0
        %v2919 = vand.u32 %v2774, 2147483648
        %v2920 = vsel %vm2918, %v2919, %v2917
        %v2921 = vrsqrt.pop %v2775
        %v2922 = vmul.f32 %v2775, %v2921
        %vm2923 = vcmp.eq.f32.partialorder %v2775, inf
        %v2924 = vsel %vm2923, %v2775, %v2922
        %vm2925 = vcmp.eq.f32.partialorder %v2775, 0.0
        %v2926 = vand.u32 %v2775, 2147483648
        %v2927 = vsel %vm2925, %v2926, %v2924
        %v2928 = vrsqrt.pop %v2776
        %v2929 = vmul.f32 %v2776, %v2928
        %vm2930 = vcmp.eq.f32.partialorder %v2776, inf
        %v2931 = vsel %vm2930, %v2776, %v2929
        %vm2932 = vcmp.eq.f32.partialorder %v2776, 0.0
        %v2933 = vand.u32 %v2776, 2147483648
        %v2934 = vsel %vm2932, %v2933, %v2931
        %v2935 = vrsqrt.pop %v2777
        %v2936 = vmul.f32 %v2777, %v2935
        %vm2937 = vcmp.eq.f32.partialorder %v2777, inf
        %v2938 = vsel %vm2937, %v2777, %v2936
        %vm2939 = vcmp.eq.f32.partialorder %v2777, 0.0
        %v2940 = vand.u32 %v2777, 2147483648
        %v2941 = vsel %vm2939, %v2940, %v2938
        %v2942 = vrsqrt.pop %v2778
        %v2943 = vmul.f32 %v2778, %v2942
        %vm2944 = vcmp.eq.f32.partialorder %v2778, inf
        %v2945 = vsel %vm2944, %v2778, %v2943
        %vm2946 = vcmp.eq.f32.partialorder %v2778, 0.0
        %v2947 = vand.u32 %v2778, 2147483648
        %v2948 = vsel %vm2946, %v2947, %v2945
        %v2949 = vrsqrt.pop %v2779
        %v2950 = vmul.f32 %v2779, %v2949
        %vm2951 = vcmp.eq.f32.partialorder %v2779, inf
        %v2952 = vsel %vm2951, %v2779, %v2950
        %vm2953 = vcmp.eq.f32.partialorder %v2779, 0.0
        %v2954 = vand.u32 %v2779, 2147483648
        %v2955 = vsel %vm2953, %v2954, %v2952
        %v2956 = vrsqrt.pop %v2780
        %v2957 = vmul.f32 %v2780, %v2956
        %vm2958 = vcmp.eq.f32.partialorder %v2780, inf
        %v2959 = vsel %vm2958, %v2780, %v2957
        %vm2960 = vcmp.eq.f32.partialorder %v2780, 0.0
        %v2961 = vand.u32 %v2780, 2147483648
        %v2962 = vsel %vm2960, %v2961, %v2959
        %v2963 = vrsqrt.pop %v2781
        %v2964 = vmul.f32 %v2781, %v2963
        %vm2965 = vcmp.eq.f32.partialorder %v2781, inf
        %v2966 = vsel %vm2965, %v2781, %v2964
        %vm2967 = vcmp.eq.f32.partialorder %v2781, 0.0
        %v2968 = vand.u32 %v2781, 2147483648
        %v2969 = vsel %vm2967, %v2968, %v2966
        %v2970 = vrsqrt.pop %v2782
        %v2971 = vmul.f32 %v2782, %v2970
        %vm2972 = vcmp.eq.f32.partialorder %v2782, inf
        %v2973 = vsel %vm2972, %v2782, %v2971
        %vm2974 = vcmp.eq.f32.partialorder %v2782, 0.0
        %v2975 = vand.u32 %v2782, 2147483648
        %v2976 = vsel %vm2974, %v2975, %v2973
        %v2977 = vrsqrt.pop %v2783
        %v2978 = vmul.f32 %v2783, %v2977
        %vm2979 = vcmp.eq.f32.partialorder %v2783, inf
        %v2980 = vsel %vm2979, %v2783, %v2978
        %vm2981 = vcmp.eq.f32.partialorder %v2783, 0.0
        %v2982 = vand.u32 %v2783, 2147483648
        %v2983 = vsel %vm2981, %v2982, %v2980
        %v2984 = vrsqrt.pop %v2784
        %v2985 = vmul.f32 %v2784, %v2984
        %vm2986 = vcmp.eq.f32.partialorder %v2784, inf
        %v2987 = vsel %vm2986, %v2784, %v2985
        %vm2988 = vcmp.eq.f32.partialorder %v2784, 0.0
        %v2989 = vand.u32 %v2784, 2147483648
        %v2990 = vsel %vm2988, %v2989, %v2987
        %v2991 = vrsqrt.pop %v2785
        %v2992 = vmul.f32 %v2785, %v2991
        %vm2993 = vcmp.eq.f32.partialorder %v2785, inf
        %v2994 = vsel %vm2993, %v2785, %v2992
        %vm2995 = vcmp.eq.f32.partialorder %v2785, 0.0
        %v2996 = vand.u32 %v2785, 2147483648
        %v2997 = vsel %vm2995, %v2996, %v2994
        %v2998 = vrsqrt.pop %v2786
        %v2999 = vmul.f32 %v2786, %v2998
        %vm3000 = vcmp.eq.f32.partialorder %v2786, inf
        %v3001 = vsel %vm3000, %v2786, %v2999
        %vm3002 = vcmp.eq.f32.partialorder %v2786, 0.0
        %v3003 = vand.u32 %v2786, 2147483648
        %v3004 = vsel %vm3002, %v3003, %v3001
        %v3005 = vrsqrt.pop %v2787
        %v3006 = vmul.f32 %v2787, %v3005
        %vm3007 = vcmp.eq.f32.partialorder %v2787, inf
        %v3008 = vsel %vm3007, %v2787, %v3006
        %vm3009 = vcmp.eq.f32.partialorder %v2787, 0.0
        %v3010 = vand.u32 %v2787, 2147483648
        %v3011 = vsel %vm3009, %v3010, %v3008
        %v3012 = vadd.f32 %v1575, %v543
        %v3013 = vadd.f32 %v1575, %v550
        %v3014 = vadd.f32 %v1579, %v543
        %v3015 = vadd.f32 %v1579, %v550
        %v3016 = vadd.f32 %v1583, %v543
        %v3017 = vadd.f32 %v1583, %v550
        %v3018 = vadd.f32 %v1587, %v543
        %v3019 = vadd.f32 %v1587, %v550
        %v3020 = vadd.f32 %v1591, %v543
        %v3021 = vadd.f32 %v1591, %v550
        %v3022 = vadd.f32 %v1595, %v543
        %v3023 = vadd.f32 %v1595, %v550
        %v3024 = vadd.f32 %v1599, %v543
        %v3025 = vadd.f32 %v1599, %v550
        %v3026 = vadd.f32 %v1603, %v543
        %v3027 = vadd.f32 %v1603, %v550
        %v3028 = vadd.f32 %v1607, %v543
        %v3029 = vadd.f32 %v1607, %v550
        %v3030 = vadd.f32 %v1611, %v543
        %v3031 = vadd.f32 %v1611, %v550
        %v3032 = vadd.f32 %v1615, %v543
        %v3033 = vadd.f32 %v1615, %v550
        %v3034 = vadd.f32 %v1619, %v543
        %v3035 = vadd.f32 %v1619, %v550
        %v3036 = vadd.f32 %v1623, %v543
        %v3037 = vadd.f32 %v1623, %v550
        %v3038 = vadd.f32 %v1627, %v543
        %v3039 = vadd.f32 %v1627, %v550
        %v3040 = vadd.f32 %v1631, %v543
        %v3041 = vadd.f32 %v1631, %v550
        %v3042 = vadd.f32 %v1635, %v543
        %v3043 = vadd.f32 %v1635, %v550
        %v3044 = vmul.f32 %v3012, 0.5
        %v3045 = vmul.f32 %v3013, 0.5
        %v3046 = vmul.f32 %v3014, 0.5
        %v3047 = vmul.f32 %v3015, 0.5
        %v3048 = vmul.f32 %v3016, 0.5
        %v3049 = vmul.f32 %v3017, 0.5
        %v3050 = vmul.f32 %v3018, 0.5
        %v3051 = vmul.f32 %v3019, 0.5
        %v3052 = vmul.f32 %v3020, 0.5
        %v3053 = vmul.f32 %v3021, 0.5
        %v3054 = vmul.f32 %v3022, 0.5
        %v3055 = vmul.f32 %v3023, 0.5
        %v3056 = vmul.f32 %v3024, 0.5
        %v3057 = vmul.f32 %v3025, 0.5
        %v3058 = vmul.f32 %v3026, 0.5
        %v3059 = vmul.f32 %v3027, 0.5
        %v3060 = vmul.f32 %v3028, 0.5
        %v3061 = vmul.f32 %v3029, 0.5
        %v3062 = vmul.f32 %v3030, 0.5
        %v3063 = vmul.f32 %v3031, 0.5
        %v3064 = vmul.f32 %v3032, 0.5
        %v3065 = vmul.f32 %v3033, 0.5
        %v3066 = vmul.f32 %v3034, 0.5
        %v3067 = vmul.f32 %v3035, 0.5
        %v3068 = vmul.f32 %v3036, 0.5
        %v3069 = vmul.f32 %v3037, 0.5
        %v3070 = vmul.f32 %v3038, 0.5
        %v3071 = vmul.f32 %v3039, 0.5
        %v3072 = vmul.f32 %v3040, 0.5
        %v3073 = vmul.f32 %v3041, 0.5
        %v3074 = vmul.f32 %v3042, 0.5
        %v3075 = vmul.f32 %v3043, 0.5
        %v3076 = vsub.f32 %v3044, 0.9
        %v3077 = vsub.f32 %v3045, 0.9
        %v3078 = vsub.f32 %v3046, 0.9
        %v3079 = vsub.f32 %v3047, 0.9
        %v3080 = vsub.f32 %v3048, 0.9
        %v3081 = vsub.f32 %v3049, 0.9
        %v3082 = vsub.f32 %v3050, 0.9
        %v3083 = vsub.f32 %v3051, 0.9
        %v3084 = vsub.f32 %v3052, 0.9
        %v3085 = vsub.f32 %v3053, 0.9
        %v3086 = vsub.f32 %v3054, 0.9
        %v3087 = vsub.f32 %v3055, 0.9
        %v3088 = vsub.f32 %v3056, 0.9
        %v3089 = vsub.f32 %v3057, 0.9
        %v3090 = vsub.f32 %v3058, 0.9
        %v3091 = vsub.f32 %v3059, 0.9
        %v3092 = vsub.f32 %v3060, 0.9
        %v3093 = vsub.f32 %v3061, 0.9
        %v3094 = vsub.f32 %v3062, 0.9
        %v3095 = vsub.f32 %v3063, 0.9
        %v3096 = vsub.f32 %v3064, 0.9
        %v3097 = vsub.f32 %v3065, 0.9
        %v3098 = vsub.f32 %v3066, 0.9
        %v3099 = vsub.f32 %v3067, 0.9
        %v3100 = vsub.f32 %v3068, 0.9
        %v3101 = vsub.f32 %v3069, 0.9
        %v3102 = vsub.f32 %v3070, 0.9
        %v3103 = vsub.f32 %v3071, 0.9
        %v3104 = vsub.f32 %v3072, 0.9
        %v3105 = vsub.f32 %v3073, 0.9
        %v3106 = vsub.f32 %v3074, 0.9
        %v3107 = vsub.f32 %v3075, 0.9
        %v3108 = vmul.f32 %v3076, %v3076
        %v3109 = vmul.f32 %v3077, %v3077
        %v3110 = vmul.f32 %v3078, %v3078
        %v3111 = vmul.f32 %v3079, %v3079
        %v3112 = vmul.f32 %v3080, %v3080
        %v3113 = vmul.f32 %v3081, %v3081
        %v3114 = vmul.f32 %v3082, %v3082
        %v3115 = vmul.f32 %v3083, %v3083
        %v3116 = vmul.f32 %v3084, %v3084
        %v3117 = vmul.f32 %v3085, %v3085
        %v3118 = vmul.f32 %v3086, %v3086
        %v3119 = vmul.f32 %v3087, %v3087
        %v3120 = vmul.f32 %v3088, %v3088
        %v3121 = vmul.f32 %v3089, %v3089
        %v3122 = vmul.f32 %v3090, %v3090
        %v3123 = vmul.f32 %v3091, %v3091
        %v3124 = vmul.f32 %v3092, %v3092
        %v3125 = vmul.f32 %v3093, %v3093
        %v3126 = vmul.f32 %v3094, %v3094
        %v3127 = vmul.f32 %v3095, %v3095
        %v3128 = vmul.f32 %v3096, %v3096
        %v3129 = vmul.f32 %v3097, %v3097
        %v3130 = vmul.f32 %v3098, %v3098
        %v3131 = vmul.f32 %v3099, %v3099
        %v3132 = vmul.f32 %v3100, %v3100
        %v3133 = vmul.f32 %v3101, %v3101
        %v3134 = vmul.f32 %v3102, %v3102
        %v3135 = vmul.f32 %v3103, %v3103
        %v3136 = vmul.f32 %v3104, %v3104
        %v3137 = vmul.f32 %v3105, %v3105
        %v3138 = vmul.f32 %v3106, %v3106
        %v3139 = vmul.f32 %v3107, %v3107
        %v3140 = vmul.f32 %v3108, -8.0
        %v3141 = vmul.f32 %v3109, -8.0
        %v3142 = vmul.f32 %v3110, -8.0
        %v3143 = vmul.f32 %v3111, -8.0
        %v3144 = vmul.f32 %v3112, -8.0
        %v3145 = vmul.f32 %v3113, -8.0
        %v3146 = vmul.f32 %v3114, -8.0
        %v3147 = vmul.f32 %v3115, -8.0
        %v3148 = vmul.f32 %v3116, -8.0
        %v3149 = vmul.f32 %v3117, -8.0
        %v3150 = vmul.f32 %v3118, -8.0
        %v3151 = vmul.f32 %v3119, -8.0
        %v3152 = vmul.f32 %v3120, -8.0
        %v3153 = vmul.f32 %v3121, -8.0
        %v3154 = vmul.f32 %v3122, -8.0
        %v3155 = vmul.f32 %v3123, -8.0
        %v3156 = vmul.f32 %v3124, -8.0
        %v3157 = vmul.f32 %v3125, -8.0
        %v3158 = vmul.f32 %v3126, -8.0
        %v3159 = vmul.f32 %v3127, -8.0
        %v3160 = vmul.f32 %v3128, -8.0
        %v3161 = vmul.f32 %v3129, -8.0
        %v3162 = vmul.f32 %v3130, -8.0
        %v3163 = vmul.f32 %v3131, -8.0
        %v3164 = vmul.f32 %v3132, -8.0
        %v3165 = vmul.f32 %v3133, -8.0
        %v3166 = vmul.f32 %v3134, -8.0
        %v3167 = vmul.f32 %v3135, -8.0
        %v3168 = vmul.f32 %v3136, -8.0
        %v3169 = vmul.f32 %v3137, -8.0
        %v3170 = vmul.f32 %v3138, -8.0
        %v3171 = vmul.f32 %v3139, -8.0
        %v3172 = vmul.f32 %v3140, 1.442695
        %v3173 = vpow.pop %v3172
        %v3174 = vmul.f32 %v3141, 1.442695
        %v3175 = vpow.pop %v3174
        %v3176 = vmul.f32 %v3142, 1.442695
        %v3177 = vpow.pop %v3176
        %v3178 = vmul.f32 %v3143, 1.442695
        %v3179 = vpow.pop %v3178
        %v3180 = vmul.f32 %v3144, 1.442695
        %v3181 = vpow.pop %v3180
        %v3182 = vmul.f32 %v3145, 1.442695
        %v3183 = vpow.pop %v3182
        %v3184 = vmul.f32 %v3146, 1.442695
        %v3185 = vpow.pop %v3184
        %v3186 = vmul.f32 %v3147, 1.442695
        %v3187 = vpow.pop %v3186
        %v3188 = vmul.f32 %v3148, 1.442695
        %v3189 = vpow.pop %v3188
        %v3190 = vmul.f32 %v3149, 1.442695
        %v3191 = vpow.pop %v3190
        %v3192 = vmul.f32 %v3150, 1.442695
        %v3193 = vpow.pop %v3192
        %v3194 = vmul.f32 %v3151, 1.442695
        %v3195 = vpow.pop %v3194
        %v3196 = vmul.f32 %v3152, 1.442695
        %v3197 = vpow.pop %v3196
        %v3198 = vmul.f32 %v3153, 1.442695
        %v3199 = vpow.pop %v3198
        %v3200 = vmul.f32 %v3154, 1.442695
        %v3201 = vpow.pop %v3200
        %v3202 = vmul.f32 %v3155, 1.442695
        %v3203 = vpow.pop %v3202
        %v3204 = vmul.f32 %v3156, 1.442695
        %v3205 = vpow.pop %v3204
        %v3206 = vmul.f32 %v3157, 1.442695
        %v3207 = vpow.pop %v3206
        %v3208 = vmul.f32 %v3158, 1.442695
        %v3209 = vpow.pop %v3208
        %v3210 = vmul.f32 %v3159, 1.442695
        %v3211 = vpow.pop %v3210
        %v3212 = vmul.f32 %v3160, 1.442695
        %v3213 = vpow.pop %v3212
        %v3214 = vmul.f32 %v3161, 1.442695
        %v3215 = vpow.pop %v3214
        %v3216 = vmul.f32 %v3162, 1.442695
        %v3217 = vpow.pop %v3216
        %v3218 = vmul.f32 %v3163, 1.442695
        %v3219 = vpow.pop %v3218
        %v3220 = vmul.f32 %v3164, 1.442695
        %v3221 = vpow.pop %v3220
        %v3222 = vmul.f32 %v3165, 1.442695
        %v3223 = vpow.pop %v3222
        %v3224 = vmul.f32 %v3166, 1.442695
        %v3225 = vpow.pop %v3224
        %v3226 = vmul.f32 %v3167, 1.442695
        %v3227 = vpow.pop %v3226
        %v3228 = vmul.f32 %v3168, 1.442695
        %v3229 = vpow.pop %v3228
        %v3230 = vmul.f32 %v3169, 1.442695
        %v3231 = vpow.pop %v3230
        %v3232 = vmul.f32 %v3170, 1.442695
        %v3233 = vpow.pop %v3232
        %v3234 = vmul.f32 %v3171, 1.442695
        %v3235 = vpow.pop %v3234
        %v3236 = vmul.f32 %v1832, %v3173
        %v3237 = vmul.f32 %v1833, %v3175
        %v3238 = vmul.f32 %v1834, %v3177
        %v3239 = vmul.f32 %v1835, %v3179
        %v3240 = vmul.f32 %v1836, %v3181
        %v3241 = vmul.f32 %v1837, %v3183
        %v3242 = vmul.f32 %v1838, %v3185
        %v3243 = vmul.f32 %v1839, %v3187
        %v3244 = vmul.f32 %v1840, %v3189
        %v3245 = vmul.f32 %v1841, %v3191
        %v3246 = vmul.f32 %v1842, %v3193
        %v3247 = vmul.f32 %v1843, %v3195
        %v3248 = vmul.f32 %v1844, %v3197
        %v3249 = vmul.f32 %v1845, %v3199
        %v3250 = vmul.f32 %v1846, %v3201
        %v3251 = vmul.f32 %v1847, %v3203
        %v3252 = vmul.f32 %v1848, %v3205
        %v3253 = vmul.f32 %v1849, %v3207
        %v3254 = vmul.f32 %v1850, %v3209
        %v3255 = vmul.f32 %v1851, %v3211
        %v3256 = vmul.f32 %v1852, %v3213
        %v3257 = vmul.f32 %v1853, %v3215
        %v3258 = vmul.f32 %v1854, %v3217
        %v3259 = vmul.f32 %v1855, %v3219
        %v3260 = vmul.f32 %v1856, %v3221
        %v3261 = vmul.f32 %v1857, %v3223
        %v3262 = vmul.f32 %v1858, %v3225
        %v3263 = vmul.f32 %v1859, %v3227
        %v3264 = vmul.f32 %v1860, %v3229
        %v3265 = vmul.f32 %v1861, %v3231
        %v3266 = vmul.f32 %v1862, %v3233
        %v3267 = vmul.f32 %v1863, %v3235
        %v3268 = vsub.f32 %v3044, 2.2
        %v3269 = vsub.f32 %v3045, 2.2
        %v3270 = vsub.f32 %v3046, 2.2
        %v3271 = vsub.f32 %v3047, 2.2
        %v3272 = vsub.f32 %v3048, 2.2
        %v3273 = vsub.f32 %v3049, 2.2
        %v3274 = vsub.f32 %v3050, 2.2
        %v3275 = vsub.f32 %v3051, 2.2
        %v3276 = vsub.f32 %v3052, 2.2
        %v3277 = vsub.f32 %v3053, 2.2
        %v3278 = vsub.f32 %v3054, 2.2
        %v3279 = vsub.f32 %v3055, 2.2
        %v3280 = vsub.f32 %v3056, 2.2
        %v3281 = vsub.f32 %v3057, 2.2
        %v3282 = vsub.f32 %v3058, 2.2
        %v3283 = vsub.f32 %v3059, 2.2
        %v3284 = vsub.f32 %v3060, 2.2
        %v3285 = vsub.f32 %v3061, 2.2
        %v3286 = vsub.f32 %v3062, 2.2
        %v3287 = vsub.f32 %v3063, 2.2
        %v3288 = vsub.f32 %v3064, 2.2
        %v3289 = vsub.f32 %v3065, 2.2
        %v3290 = vsub.f32 %v3066, 2.2
        %v3291 = vsub.f32 %v3067, 2.2
        %v3292 = vsub.f32 %v3068, 2.2
        %v3293 = vsub.f32 %v3069, 2.2
        %v3294 = vsub.f32 %v3070, 2.2
        %v3295 = vsub.f32 %v3071, 2.2
        %v3296 = vsub.f32 %v3072, 2.2
        %v3297 = vsub.f32 %v3073, 2.2
        %v3298 = vsub.f32 %v3074, 2.2
        %v3299 = vsub.f32 %v3075, 2.2
        %v3300 = vmul.f32 %v3268, %v3268
        %v3301 = vmul.f32 %v3269, %v3269
        %v3302 = vmul.f32 %v3270, %v3270
        %v3303 = vmul.f32 %v3271, %v3271
        %v3304 = vmul.f32 %v3272, %v3272
        %v3305 = vmul.f32 %v3273, %v3273
        %v3306 = vmul.f32 %v3274, %v3274
        %v3307 = vmul.f32 %v3275, %v3275
        %v3308 = vmul.f32 %v3276, %v3276
        %v3309 = vmul.f32 %v3277, %v3277
        %v3310 = vmul.f32 %v3278, %v3278
        %v3311 = vmul.f32 %v3279, %v3279
        %v3312 = vmul.f32 %v3280, %v3280
        %v3313 = vmul.f32 %v3281, %v3281
        %v3314 = vmul.f32 %v3282, %v3282
        %v3315 = vmul.f32 %v3283, %v3283
        %v3316 = vmul.f32 %v3284, %v3284
        %v3317 = vmul.f32 %v3285, %v3285
        %v3318 = vmul.f32 %v3286, %v3286
        %v3319 = vmul.f32 %v3287, %v3287
        %v3320 = vmul.f32 %v3288, %v3288
        %v3321 = vmul.f32 %v3289, %v3289
        %v3322 = vmul.f32 %v3290, %v3290
        %v3323 = vmul.f32 %v3291, %v3291
        %v3324 = vmul.f32 %v3292, %v3292
        %v3325 = vmul.f32 %v3293, %v3293
        %v3326 = vmul.f32 %v3294, %v3294
        %v3327 = vmul.f32 %v3295, %v3295
        %v3328 = vmul.f32 %v3296, %v3296
        %v3329 = vmul.f32 %v3297, %v3297
        %v3330 = vmul.f32 %v3298, %v3298
        %v3331 = vmul.f32 %v3299, %v3299
        %v3332 = vmul.f32 %v3300, -8.0
        %v3333 = vmul.f32 %v3301, -8.0
        %v3334 = vmul.f32 %v3302, -8.0
        %v3335 = vmul.f32 %v3303, -8.0
        %v3336 = vmul.f32 %v3304, -8.0
        %v3337 = vmul.f32 %v3305, -8.0
        %v3338 = vmul.f32 %v3306, -8.0
        %v3339 = vmul.f32 %v3307, -8.0
        %v3340 = vmul.f32 %v3308, -8.0
        %v3341 = vmul.f32 %v3309, -8.0
        %v3342 = vmul.f32 %v3310, -8.0
        %v3343 = vmul.f32 %v3311, -8.0
        %v3344 = vmul.f32 %v3312, -8.0
        %v3345 = vmul.f32 %v3313, -8.0
        %v3346 = vmul.f32 %v3314, -8.0
        %v3347 = vmul.f32 %v3315, -8.0
        %v3348 = vmul.f32 %v3316, -8.0
        %v3349 = vmul.f32 %v3317, -8.0
        %v3350 = vmul.f32 %v3318, -8.0
        %v3351 = vmul.f32 %v3319, -8.0
        %v3352 = vmul.f32 %v3320, -8.0
        %v3353 = vmul.f32 %v3321, -8.0
        %v3354 = vmul.f32 %v3322, -8.0
        %v3355 = vmul.f32 %v3323, -8.0
        %v3356 = vmul.f32 %v3324, -8.0
        %v3357 = vmul.f32 %v3325, -8.0
        %v3358 = vmul.f32 %v3326, -8.0
        %v3359 = vmul.f32 %v3327, -8.0
        %v3360 = vmul.f32 %v3328, -8.0
        %v3361 = vmul.f32 %v3329, -8.0
        %v3362 = vmul.f32 %v3330, -8.0
        %v3363 = vmul.f32 %v3331, -8.0
        %v3364 = vmul.f32 %v3332, 1.442695
        %v3365 = vpow.pop %v3364
        %v3366 = vmul.f32 %v3333, 1.442695
        %v3367 = vpow.pop %v3366
        %v3368 = vmul.f32 %v3334, 1.442695
        %v3369 = vpow.pop %v3368
        %v3370 = vmul.f32 %v3335, 1.442695
        %v3371 = vpow.pop %v3370
        %v3372 = vmul.f32 %v3336, 1.442695
        %v3373 = vpow.pop %v3372
        %v3374 = vmul.f32 %v3337, 1.442695
        %v3375 = vpow.pop %v3374
        %v3376 = vmul.f32 %v3338, 1.442695
        %v3377 = vpow.pop %v3376
        %v3378 = vmul.f32 %v3339, 1.442695
        %v3379 = vpow.pop %v3378
        %v3380 = vmul.f32 %v3340, 1.442695
        %v3381 = vpow.pop %v3380
        %v3382 = vmul.f32 %v3341, 1.442695
        %v3383 = vpow.pop %v3382
        %v3384 = vmul.f32 %v3342, 1.442695
        %v3385 = vpow.pop %v3384
        %v3386 = vmul.f32 %v3343, 1.442695
        %v3387 = vpow.pop %v3386
        %v3388 = vmul.f32 %v3344, 1.442695
        %v3389 = vpow.pop %v3388
        %v3390 = vmul.f32 %v3345, 1.442695
        %v3391 = vpow.pop %v3390
        %v3392 = vmul.f32 %v3346, 1.442695
        %v3393 = vpow.pop %v3392
        %v3394 = vmul.f32 %v3347, 1.442695
        %v3395 = vpow.pop %v3394
        %v3396 = vmul.f32 %v3348, 1.442695
        %v3397 = vpow.pop %v3396
        %v3398 = vmul.f32 %v3349, 1.442695
        %v3399 = vpow.pop %v3398
        %v3400 = vmul.f32 %v3350, 1.442695
        %v3401 = vpow.pop %v3400
        %v3402 = vmul.f32 %v3351, 1.442695
        %v3403 = vpow.pop %v3402
        %v3404 = vmul.f32 %v3352, 1.442695
        %v3405 = vpow.pop %v3404
        %v3406 = vmul.f32 %v3353, 1.442695
        %v3407 = vpow.pop %v3406
        %v3408 = vmul.f32 %v3354, 1.442695
        %v3409 = vpow.pop %v3408
        %v3410 = vmul.f32 %v3355, 1.442695
        %v3411 = vpow.pop %v3410
        %v3412 = vmul.f32 %v3356, 1.442695
        %v3413 = vpow.pop %v3412
        %v3414 = vmul.f32 %v3357, 1.442695
        %v3415 = vpow.pop %v3414
        %v3416 = vmul.f32 %v3358, 1.442695
        %v3417 = vpow.pop %v3416
        %v3418 = vmul.f32 %v3359, 1.442695
        %v3419 = vpow.pop %v3418
        %v3420 = vmul.f32 %v3360, 1.442695
        %v3421 = vpow.pop %v3420
        %v3422 = vmul.f32 %v3361, 1.442695
        %v3423 = vpow.pop %v3422
        %v3424 = vmul.f32 %v3362, 1.442695
        %v3425 = vpow.pop %v3424
        %v3426 = vmul.f32 %v3363, 1.442695
        %v3427 = vpow.pop %v3426
        %v3428 = vmul.f32 %v1832, %v3365
        %v3429 = vmul.f32 %v1833, %v3367
        %v3430 = vmul.f32 %v1834, %v3369
        %v3431 = vmul.f32 %v1835, %v3371
        %v3432 = vmul.f32 %v1836, %v3373
        %v3433 = vmul.f32 %v1837, %v3375
        %v3434 = vmul.f32 %v1838, %v3377
        %v3435 = vmul.f32 %v1839, %v3379
        %v3436 = vmul.f32 %v1840, %v3381
        %v3437 = vmul.f32 %v1841, %v3383
        %v3438 = vmul.f32 %v1842, %v3385
        %v3439 = vmul.f32 %v1843, %v3387
        %v3440 = vmul.f32 %v1844, %v3389
        %v3441 = vmul.f32 %v1845, %v3391
        %v3442 = vmul.f32 %v1846, %v3393
        %v3443 = vmul.f32 %v1847, %v3395
        %v3444 = vmul.f32 %v1848, %v3397
        %v3445 = vmul.f32 %v1849, %v3399
        %v3446 = vmul.f32 %v1850, %v3401
        %v3447 = vmul.f32 %v1851, %v3403
        %v3448 = vmul.f32 %v1852, %v3405
        %v3449 = vmul.f32 %v1853, %v3407
        %v3450 = vmul.f32 %v1854, %v3409
        %v3451 = vmul.f32 %v1855, %v3411
        %v3452 = vmul.f32 %v1856, %v3413
        %v3453 = vmul.f32 %v1857, %v3415
        %v3454 = vmul.f32 %v1858, %v3417
        %v3455 = vmul.f32 %v1859, %v3419
        %v3456 = vmul.f32 %v1860, %v3421
        %v3457 = vmul.f32 %v1861, %v3423
        %v3458 = vmul.f32 %v1862, %v3425
        %v3459 = vmul.f32 %v1863, %v3427
        %v3460 = vld [vmem:[%s5] sm:$0xff]
        %v3461 = vld [vmem:[%s5 + $0x8] sm:$0xff]
        %v3462 = vld [vmem:[%s5 + $0x10] sm:$0xff]
        %v3463 = vld [vmem:[%s5 + $0x18] sm:$0xff]
        %v3464 = vld [vmem:[%s5 + $0x20] sm:$0xff]
        %v3465 = vld [vmem:[%s5 + $0x28] sm:$0xff]
        %v3466 = vld [vmem:[%s5 + $0x30] sm:$0xff]
        %v3467 = vld [vmem:[%s5 + $0x38] sm:$0xff]
        %v3468 = vld [vmem:[%s5 + $0x40] sm:$0xff]
        %v3469 = vld [vmem:[%s5 + $0x48] sm:$0xff]
        %v3470 = vld [vmem:[%s5 + $0x50] sm:$0xff]
        %v3471 = vld [vmem:[%s5 + $0x58] sm:$0xff]
        %v3472 = vld [vmem:[%s5 + $0x60] sm:$0xff]
        %v3473 = vld [vmem:[%s5 + $0x68] sm:$0xff]
        %v3474 = vld [vmem:[%s5 + $0x70] sm:$0xff]
        %v3475 = vld [vmem:[%s5 + $0x78] sm:$0xff]
        %v3476 = vld [vmem:[%s5 + $0x80] sm:$0xff]
        %v3477 = vld [vmem:[%s5 + $0x88] sm:$0xff]
        %v3478 = vld [vmem:[%s5 + $0x90] sm:$0xff]
        %v3479 = vld [vmem:[%s5 + $0x98] sm:$0xff]
        %v3480 = vld [vmem:[%s5 + $0xa0] sm:$0xff]
        %v3481 = vld [vmem:[%s5 + $0xa8] sm:$0xff]
        %v3482 = vld [vmem:[%s5 + $0xb0] sm:$0xff]
        %v3483 = vld [vmem:[%s5 + $0xb8] sm:$0xff]
        %v3484 = vld [vmem:[%s5 + $0xc0] sm:$0xff]
        %v3485 = vld [vmem:[%s5 + $0xc8] sm:$0xff]
        %v3486 = vld [vmem:[%s5 + $0xd0] sm:$0xff]
        %v3487 = vld [vmem:[%s5 + $0xd8] sm:$0xff]
        %v3488 = vld [vmem:[%s5 + $0xe0] sm:$0xff]
        %v3489 = vld [vmem:[%s5 + $0xe8] sm:$0xff]
        %v3490 = vld [vmem:[%s5 + $0xf0] sm:$0xff]
        %v3491 = vld [vmem:[%s5 + $0xf8] sm:$0xff]
        %v3492 = vmul.f32 %v2661, 0.70710677
        %v3493 = vmul.f32 %v2663, 0.70710677
        %v3494 = vmul.f32 %v2665, 0.70710677
        %v3495 = vmul.f32 %v2667, 0.70710677
        %v3496 = vmul.f32 %v2669, 0.70710677
        %v3497 = vmul.f32 %v2671, 0.70710677
        %v3498 = vmul.f32 %v2673, 0.70710677
        %v3499 = vmul.f32 %v2675, 0.70710677
        %v3500 = vmul.f32 %v2677, 0.70710677
        %v3501 = vmul.f32 %v2679, 0.70710677
        %v3502 = vmul.f32 %v2681, 0.70710677
        %v3503 = vmul.f32 %v2683, 0.70710677
        %v3504 = vmul.f32 %v2685, 0.70710677
        %v3505 = vmul.f32 %v2687, 0.70710677
        %v3506 = vmul.f32 %v2689, 0.70710677
        %v3507 = vmul.f32 %v2691, 0.70710677
        %v3508 = vmul.f32 %v2693, 0.70710677
        %v3509 = vmul.f32 %v2695, 0.70710677
        %v3510 = vmul.f32 %v2697, 0.70710677
        %v3511 = vmul.f32 %v2699, 0.70710677
        %v3512 = vmul.f32 %v2701, 0.70710677
        %v3513 = vmul.f32 %v2703, 0.70710677
        %v3514 = vmul.f32 %v2705, 0.70710677
        %v3515 = vmul.f32 %v2707, 0.70710677
        %v3516 = vmul.f32 %v2709, 0.70710677
        %v3517 = vmul.f32 %v2711, 0.70710677
        %v3518 = vmul.f32 %v2713, 0.70710677
        %v3519 = vmul.f32 %v2715, 0.70710677
        %v3520 = vmul.f32 %v2717, 0.70710677
        %v3521 = vmul.f32 %v2719, 0.70710677
        %v3522 = vmul.f32 %v2721, 0.70710677
        %v3523 = vmul.f32 %v2723, 0.70710677
        %v3524 = vadd.f32 %v3492, 1.0
        %v3525 = vadd.f32 %v3493, 1.0
        %v3526 = vadd.f32 %v3494, 1.0
        %v3527 = vadd.f32 %v3495, 1.0
        %v3528 = vadd.f32 %v3496, 1.0
        %v3529 = vadd.f32 %v3497, 1.0
        %v3530 = vadd.f32 %v3498, 1.0
        %v3531 = vadd.f32 %v3499, 1.0
        %v3532 = vadd.f32 %v3500, 1.0
        %v3533 = vadd.f32 %v3501, 1.0
        %v3534 = vadd.f32 %v3502, 1.0
        %v3535 = vadd.f32 %v3503, 1.0
        %v3536 = vadd.f32 %v3504, 1.0
        %v3537 = vadd.f32 %v3505, 1.0
        %v3538 = vadd.f32 %v3506, 1.0
        %v3539 = vadd.f32 %v3507, 1.0
        %v3540 = vadd.f32 %v3508, 1.0
        %v3541 = vadd.f32 %v3509, 1.0
        %v3542 = vadd.f32 %v3510, 1.0
        %v3543 = vadd.f32 %v3511, 1.0
        %v3544 = vadd.f32 %v3512, 1.0
        %v3545 = vadd.f32 %v3513, 1.0
        %v3546 = vadd.f32 %v3514, 1.0
        %v3547 = vadd.f32 %v3515, 1.0
        %v3548 = vadd.f32 %v3516, 1.0
        %v3549 = vadd.f32 %v3517, 1.0
        %v3550 = vadd.f32 %v3518, 1.0
        %v3551 = vadd.f32 %v3519, 1.0
        %v3552 = vadd.f32 %v3520, 1.0
        %v3553 = vadd.f32 %v3521, 1.0
        %v3554 = vadd.f32 %v3522, 1.0
        %v3555 = vadd.f32 %v3523, 1.0
        %v3556 = vmul.f32 %v2794, 0.70710677
        %v3557 = vmul.f32 %v2801, 0.70710677
        %v3558 = vmul.f32 %v2808, 0.70710677
        %v3559 = vmul.f32 %v2815, 0.70710677
        %v3560 = vmul.f32 %v2822, 0.70710677
        %v3561 = vmul.f32 %v2829, 0.70710677
        %v3562 = vmul.f32 %v2836, 0.70710677
        %v3563 = vmul.f32 %v2843, 0.70710677
        %v3564 = vmul.f32 %v2850, 0.70710677
        %v3565 = vmul.f32 %v2857, 0.70710677
        %v3566 = vmul.f32 %v2864, 0.70710677
        %v3567 = vmul.f32 %v2871, 0.70710677
        %v3568 = vmul.f32 %v2878, 0.70710677
        %v3569 = vmul.f32 %v2885, 0.70710677
        %v3570 = vmul.f32 %v2892, 0.70710677
        %v3571 = vmul.f32 %v2899, 0.70710677
        %v3572 = vmul.f32 %v2906, 0.70710677
        %v3573 = vmul.f32 %v2913, 0.70710677
        %v3574 = vmul.f32 %v2920, 0.70710677
        %v3575 = vmul.f32 %v2927, 0.70710677
        %v3576 = vmul.f32 %v2934, 0.70710677
        %v3577 = vmul.f32 %v2941, 0.70710677
        %v3578 = vmul.f32 %v2948, 0.70710677
        %v3579 = vmul.f32 %v2955, 0.70710677
        %v3580 = vmul.f32 %v2962, 0.70710677
        %v3581 = vmul.f32 %v2969, 0.70710677
        %v3582 = vmul.f32 %v2976, 0.70710677
        %v3583 = vmul.f32 %v2983, 0.70710677
        %v3584 = vmul.f32 %v2990, 0.70710677
        %v3585 = vmul.f32 %v2997, 0.70710677
        %v3586 = vmul.f32 %v3004, 0.70710677
        %v3587 = vmul.f32 %v3011, 0.70710677
        %v3588 = vadd.f32 %v3524, %v3556
        %v3589 = vadd.f32 %v3525, %v3557
        %v3590 = vadd.f32 %v3526, %v3558
        %v3591 = vadd.f32 %v3527, %v3559
        %v3592 = vadd.f32 %v3528, %v3560
        %v3593 = vadd.f32 %v3529, %v3561
        %v3594 = vadd.f32 %v3530, %v3562
        %v3595 = vadd.f32 %v3531, %v3563
        %v3596 = vadd.f32 %v3532, %v3564
        %v3597 = vadd.f32 %v3533, %v3565
        %v3598 = vadd.f32 %v3534, %v3566
        %v3599 = vadd.f32 %v3535, %v3567
        %v3600 = vadd.f32 %v3536, %v3568
        %v3601 = vadd.f32 %v3537, %v3569
        %v3602 = vadd.f32 %v3538, %v3570
        %v3603 = vadd.f32 %v3539, %v3571
        %v3604 = vadd.f32 %v3540, %v3572
        %v3605 = vadd.f32 %v3541, %v3573
        %v3606 = vadd.f32 %v3542, %v3574
        %v3607 = vadd.f32 %v3543, %v3575
        %v3608 = vadd.f32 %v3544, %v3576
        %v3609 = vadd.f32 %v3545, %v3577
        %v3610 = vadd.f32 %v3546, %v3578
        %v3611 = vadd.f32 %v3547, %v3579
        %v3612 = vadd.f32 %v3548, %v3580
        %v3613 = vadd.f32 %v3549, %v3581
        %v3614 = vadd.f32 %v3550, %v3582
        %v3615 = vadd.f32 %v3551, %v3583
        %v3616 = vadd.f32 %v3552, %v3584
        %v3617 = vadd.f32 %v3553, %v3585
        %v3618 = vadd.f32 %v3554, %v3586
        %v3619 = vadd.f32 %v3555, %v3587
        %v3620 = vmul.f32 %v3588, 0.5
        %v3621 = vmul.f32 %v3589, 0.5
        %v3622 = vmul.f32 %v3590, 0.5
        %v3623 = vmul.f32 %v3591, 0.5
        %v3624 = vmul.f32 %v3592, 0.5
        %v3625 = vmul.f32 %v3593, 0.5
        %v3626 = vmul.f32 %v3594, 0.5
        %v3627 = vmul.f32 %v3595, 0.5
        %v3628 = vmul.f32 %v3596, 0.5
        %v3629 = vmul.f32 %v3597, 0.5
        %v3630 = vmul.f32 %v3598, 0.5
        %v3631 = vmul.f32 %v3599, 0.5
        %v3632 = vmul.f32 %v3600, 0.5
        %v3633 = vmul.f32 %v3601, 0.5
        %v3634 = vmul.f32 %v3602, 0.5
        %v3635 = vmul.f32 %v3603, 0.5
        %v3636 = vmul.f32 %v3604, 0.5
        %v3637 = vmul.f32 %v3605, 0.5
        %v3638 = vmul.f32 %v3606, 0.5
        %v3639 = vmul.f32 %v3607, 0.5
        %v3640 = vmul.f32 %v3608, 0.5
        %v3641 = vmul.f32 %v3609, 0.5
        %v3642 = vmul.f32 %v3610, 0.5
        %v3643 = vmul.f32 %v3611, 0.5
        %v3644 = vmul.f32 %v3612, 0.5
        %v3645 = vmul.f32 %v3613, 0.5
        %v3646 = vmul.f32 %v3614, 0.5
        %v3647 = vmul.f32 %v3615, 0.5
        %v3648 = vmul.f32 %v3616, 0.5
        %v3649 = vmul.f32 %v3617, 0.5
        %v3650 = vmul.f32 %v3618, 0.5
        %v3651 = vmul.f32 %v3619, 0.5
        %v3652 = vmul.f32 %v3620, %v3620
        %v3653 = vmul.f32 %v3621, %v3621
        %v3654 = vmul.f32 %v3622, %v3622
        %v3655 = vmul.f32 %v3623, %v3623
        %v3656 = vmul.f32 %v3624, %v3624
        %v3657 = vmul.f32 %v3625, %v3625
        %v3658 = vmul.f32 %v3626, %v3626
        %v3659 = vmul.f32 %v3627, %v3627
        %v3660 = vmul.f32 %v3628, %v3628
        %v3661 = vmul.f32 %v3629, %v3629
        %v3662 = vmul.f32 %v3630, %v3630
        %v3663 = vmul.f32 %v3631, %v3631
        %v3664 = vmul.f32 %v3632, %v3632
        %v3665 = vmul.f32 %v3633, %v3633
        %v3666 = vmul.f32 %v3634, %v3634
        %v3667 = vmul.f32 %v3635, %v3635
        %v3668 = vmul.f32 %v3636, %v3636
        %v3669 = vmul.f32 %v3637, %v3637
        %v3670 = vmul.f32 %v3638, %v3638
        %v3671 = vmul.f32 %v3639, %v3639
        %v3672 = vmul.f32 %v3640, %v3640
        %v3673 = vmul.f32 %v3641, %v3641
        %v3674 = vmul.f32 %v3642, %v3642
        %v3675 = vmul.f32 %v3643, %v3643
        %v3676 = vmul.f32 %v3644, %v3644
        %v3677 = vmul.f32 %v3645, %v3645
        %v3678 = vmul.f32 %v3646, %v3646
        %v3679 = vmul.f32 %v3647, %v3647
        %v3680 = vmul.f32 %v3648, %v3648
        %v3681 = vmul.f32 %v3649, %v3649
        %v3682 = vmul.f32 %v3650, %v3650
        %v3683 = vmul.f32 %v3651, %v3651
        %v3684 = vmul.f32 %v3652, %v3652
        %v3685 = vmul.f32 %v3653, %v3653
        %v3686 = vmul.f32 %v3654, %v3654
        %v3687 = vmul.f32 %v3655, %v3655
        %v3688 = vmul.f32 %v3656, %v3656
        %v3689 = vmul.f32 %v3657, %v3657
        %v3690 = vmul.f32 %v3658, %v3658
        %v3691 = vmul.f32 %v3659, %v3659
        %v3692 = vmul.f32 %v3660, %v3660
        %v3693 = vmul.f32 %v3661, %v3661
        %v3694 = vmul.f32 %v3662, %v3662
        %v3695 = vmul.f32 %v3663, %v3663
        %v3696 = vmul.f32 %v3664, %v3664
        %v3697 = vmul.f32 %v3665, %v3665
        %v3698 = vmul.f32 %v3666, %v3666
        %v3699 = vmul.f32 %v3667, %v3667
        %v3700 = vmul.f32 %v3668, %v3668
        %v3701 = vmul.f32 %v3669, %v3669
        %v3702 = vmul.f32 %v3670, %v3670
        %v3703 = vmul.f32 %v3671, %v3671
        %v3704 = vmul.f32 %v3672, %v3672
        %v3705 = vmul.f32 %v3673, %v3673
        %v3706 = vmul.f32 %v3674, %v3674
        %v3707 = vmul.f32 %v3675, %v3675
        %v3708 = vmul.f32 %v3676, %v3676
        %v3709 = vmul.f32 %v3677, %v3677
        %v3710 = vmul.f32 %v3678, %v3678
        %v3711 = vmul.f32 %v3679, %v3679
        %v3712 = vmul.f32 %v3680, %v3680
        %v3713 = vmul.f32 %v3681, %v3681
        %v3714 = vmul.f32 %v3682, %v3682
        %v3715 = vmul.f32 %v3683, %v3683
        %v3716 = vmul.f32 %v3684, %v3684
        %v3717 = vmul.f32 %v3685, %v3685
        %v3718 = vmul.f32 %v3686, %v3686
        %v3719 = vmul.f32 %v3687, %v3687
        %v3720 = vmul.f32 %v3688, %v3688
        %v3721 = vmul.f32 %v3689, %v3689
        %v3722 = vmul.f32 %v3690, %v3690
        %v3723 = vmul.f32 %v3691, %v3691
        %v3724 = vmul.f32 %v3692, %v3692
        %v3725 = vmul.f32 %v3693, %v3693
        %v3726 = vmul.f32 %v3694, %v3694
        %v3727 = vmul.f32 %v3695, %v3695
        %v3728 = vmul.f32 %v3696, %v3696
        %v3729 = vmul.f32 %v3697, %v3697
        %v3730 = vmul.f32 %v3698, %v3698
        %v3731 = vmul.f32 %v3699, %v3699
        %v3732 = vmul.f32 %v3700, %v3700
        %v3733 = vmul.f32 %v3701, %v3701
        %v3734 = vmul.f32 %v3702, %v3702
        %v3735 = vmul.f32 %v3703, %v3703
        %v3736 = vmul.f32 %v3704, %v3704
        %v3737 = vmul.f32 %v3705, %v3705
        %v3738 = vmul.f32 %v3706, %v3706
        %v3739 = vmul.f32 %v3707, %v3707
        %v3740 = vmul.f32 %v3708, %v3708
        %v3741 = vmul.f32 %v3709, %v3709
        %v3742 = vmul.f32 %v3710, %v3710
        %v3743 = vmul.f32 %v3711, %v3711
        %v3744 = vmul.f32 %v3712, %v3712
        %v3745 = vmul.f32 %v3713, %v3713
        %v3746 = vmul.f32 %v3714, %v3714
        %v3747 = vmul.f32 %v3715, %v3715
        %v3748 = vmul.f32 %v3716, %v3236
        %v3749 = vmul.f32 %v3717, %v3237
        %v3750 = vmul.f32 %v3718, %v3238
        %v3751 = vmul.f32 %v3719, %v3239
        %v3752 = vmul.f32 %v3720, %v3240
        %v3753 = vmul.f32 %v3721, %v3241
        %v3754 = vmul.f32 %v3722, %v3242
        %v3755 = vmul.f32 %v3723, %v3243
        %v3756 = vmul.f32 %v3724, %v3244
        %v3757 = vmul.f32 %v3725, %v3245
        %v3758 = vmul.f32 %v3726, %v3246
        %v3759 = vmul.f32 %v3727, %v3247
        %v3760 = vmul.f32 %v3728, %v3248
        %v3761 = vmul.f32 %v3729, %v3249
        %v3762 = vmul.f32 %v3730, %v3250
        %v3763 = vmul.f32 %v3731, %v3251
        %v3764 = vmul.f32 %v3732, %v3252
        %v3765 = vmul.f32 %v3733, %v3253
        %v3766 = vmul.f32 %v3734, %v3254
        %v3767 = vmul.f32 %v3735, %v3255
        %v3768 = vmul.f32 %v3736, %v3256
        %v3769 = vmul.f32 %v3737, %v3257
        %v3770 = vmul.f32 %v3738, %v3258
        %v3771 = vmul.f32 %v3739, %v3259
        %v3772 = vmul.f32 %v3740, %v3260
        %v3773 = vmul.f32 %v3741, %v3261
        %v3774 = vmul.f32 %v3742, %v3262
        %v3775 = vmul.f32 %v3743, %v3263
        %v3776 = vmul.f32 %v3744, %v3264
        %v3777 = vmul.f32 %v3745, %v3265
        %v3778 = vmul.f32 %v3746, %v3266
        %v3779 = vmul.f32 %v3747, %v3267
        %3780 = vxpose.xlu0.b32.start [1/16] %v3748, 128
        %3781 = vxpose.xlu0.b32.cont [2/16] %v3749, 128
        %3782 = vxpose.xlu0.b32.cont [3/16] %v3750, 128
        %3783 = vxpose.xlu0.b32.cont [4/16] %v3751, 128
        %3784 = vxpose.xlu0.b32.cont [5/16] %v3752, 128
        %3785 = vxpose.xlu0.b32.cont [6/16] %v3753, 128
        %3786 = vxpose.xlu0.b32.cont [7/16] %v3754, 128
        %3787 = vxpose.xlu0.b32.cont [8/16] %v3755, 128
        %3788 = vxpose.xlu0.b32.cont [9/16] %v3756, 128
        %3789 = vxpose.xlu0.b32.cont [10/16] %v3757, 128
        %3790 = vxpose.xlu0.b32.cont [11/16] %v3758, 128
        %3791 = vxpose.xlu0.b32.cont [12/16] %v3759, 128
        %3792 = vxpose.xlu0.b32.cont [13/16] %v3760, 128
        %3793 = vxpose.xlu0.b32.cont [14/16] %v3761, 128
        %3794 = vxpose.xlu0.b32.cont [15/16] %v3762, 128
        %3795 = vxpose.xlu0.b32.end [16/16] %v3763, 128
        %v3796 = vpop.trf.xlu0
        %v3797 = vpop.trf.xlu0
        %v3798 = vpop.trf.xlu0
        %v3799 = vpop.trf.xlu0
        %v3800 = vpop.trf.xlu0
        %v3801 = vpop.trf.xlu0
        %v3802 = vpop.trf.xlu0
        %v3803 = vpop.trf.xlu0
        %v3804 = vpop.trf.xlu0
        %v3805 = vpop.trf.xlu0
        %v3806 = vpop.trf.xlu0
        %v3807 = vpop.trf.xlu0
        %v3808 = vpop.trf.xlu0
        %v3809 = vpop.trf.xlu0
        %v3810 = vpop.trf.xlu0
        %v3811 = vpop.trf.xlu0
        %3812 = vxpose.xlu0.b32.start [1/16] %v3764, 128
        %3813 = vxpose.xlu0.b32.cont [2/16] %v3765, 128
        %3814 = vxpose.xlu0.b32.cont [3/16] %v3766, 128
        %3815 = vxpose.xlu0.b32.cont [4/16] %v3767, 128
        %3816 = vxpose.xlu0.b32.cont [5/16] %v3768, 128
        %3817 = vxpose.xlu0.b32.cont [6/16] %v3769, 128
        %3818 = vxpose.xlu0.b32.cont [7/16] %v3770, 128
        %3819 = vxpose.xlu0.b32.cont [8/16] %v3771, 128
        %3820 = vxpose.xlu0.b32.cont [9/16] %v3772, 128
        %3821 = vxpose.xlu0.b32.cont [10/16] %v3773, 128
        %3822 = vxpose.xlu0.b32.cont [11/16] %v3774, 128
        %3823 = vxpose.xlu0.b32.cont [12/16] %v3775, 128
        %3824 = vxpose.xlu0.b32.cont [13/16] %v3776, 128
        %3825 = vxpose.xlu0.b32.cont [14/16] %v3777, 128
        %3826 = vxpose.xlu0.b32.cont [15/16] %v3778, 128
        %3827 = vxpose.xlu0.b32.end [16/16] %v3779, 128
        %v3828 = vpop.trf.xlu0
        %v3829 = vpop.trf.xlu0
        %v3830 = vpop.trf.xlu0
        %v3831 = vpop.trf.xlu0
        %v3832 = vpop.trf.xlu0
        %v3833 = vpop.trf.xlu0
        %v3834 = vpop.trf.xlu0
        %v3835 = vpop.trf.xlu0
        %v3836 = vpop.trf.xlu0
        %v3837 = vpop.trf.xlu0
        %v3838 = vpop.trf.xlu0
        %v3839 = vpop.trf.xlu0
        %v3840 = vpop.trf.xlu0
        %v3841 = vpop.trf.xlu0
        %v3842 = vpop.trf.xlu0
        %v3843 = vpop.trf.xlu0
        %3844 = vmatprep.subr.mxu0 0.0
        %3845 = vmatpush1.msra.mxu0 %v3475
        %3846 = vmatprep.subr.mxu0 0.0
        %3847 = vmatpush1.msra.mxu0 %v3474
        %3848 = vmatprep.subr.mxu0 0.0
        %3849 = vmatpush1.msra.mxu0 %v3473
        %3850 = vmatprep.subr.mxu0 0.0
        %3851 = vmatpush1.msra.mxu0 %v3472
        %3852 = vmatprep.subr.mxu0 0.0
        %3853 = vmatpush1.msra.mxu0 %v3471
        %3854 = vmatprep.subr.mxu0 0.0
        %3855 = vmatpush1.msra.mxu0 %v3470
        %3856 = vmatprep.subr.mxu0 0.0
        %3857 = vmatpush1.msra.mxu0 %v3469
        %3858 = vmatprep.subr.mxu0 0.0
        %3859 = vmatpush1.msra.mxu0 %v3468
        %3860 = vmatprep.subr.mxu0 0.0
        %3861 = vmatpush1.msra.mxu0 %v3467
        %3862 = vmatprep.subr.mxu0 0.0
        %3863 = vmatpush1.msra.mxu0 %v3466
        %3864 = vmatprep.subr.mxu0 0.0
        %3865 = vmatpush1.msra.mxu0 %v3465
        %3866 = vmatprep.subr.mxu0 0.0
        %3867 = vmatpush1.msra.mxu0 %v3464
        %3868 = vmatprep.subr.mxu0 0.0
        %3869 = vmatpush1.msra.mxu0 %v3463
        %3870 = vmatprep.subr.mxu0 0.0
        %3871 = vmatpush1.msra.mxu0 %v3462
        %3872 = vmatprep.subr.mxu0 0.0
        %3873 = vmatpush1.msra.mxu0 %v3461
        %3874 = vmatprep.subr.mxu0 0.0
        %3875 = vmatpush1.msra.mxu0 %v3460
        %3876 = vmatprep.subr.mxu0 0.0
        %3877 = vmatpush2.msra.mxu0 %v3491
        %3878 = vmatprep.subr.mxu0 0.0
        %3879 = vmatpush2.msra.mxu0 %v3490
        %3880 = vmatprep.subr.mxu0 0.0
        %3881 = vmatpush2.msra.mxu0 %v3489
        %3882 = vmatprep.subr.mxu0 0.0
        %3883 = vmatpush2.msra.mxu0 %v3488
        %3884 = vmatprep.subr.mxu0 0.0
        %3885 = vmatpush2.msra.mxu0 %v3487
        %3886 = vmatprep.subr.mxu0 0.0
        %3887 = vmatpush2.msra.mxu0 %v3486
        %3888 = vmatprep.subr.mxu0 0.0
        %3889 = vmatpush2.msra.mxu0 %v3485
        %3890 = vmatprep.subr.mxu0 0.0
        %3891 = vmatpush2.msra.mxu0 %v3484
        %3892 = vmatprep.subr.mxu0 0.0
        %3893 = vmatpush2.msra.mxu0 %v3483
        %3894 = vmatprep.subr.mxu0 0.0
        %3895 = vmatpush2.msra.mxu0 %v3482
        %3896 = vmatprep.subr.mxu0 0.0
        %3897 = vmatpush2.msra.mxu0 %v3481
        %3898 = vmatprep.subr.mxu0 0.0
        %3899 = vmatpush2.msra.mxu0 %v3480
        %3900 = vmatprep.subr.mxu0 0.0
        %3901 = vmatpush2.msra.mxu0 %v3479
        %3902 = vmatprep.subr.mxu0 0.0
        %3903 = vmatpush2.msra.mxu0 %v3478
        %3904 = vmatprep.subr.mxu0 0.0
        %3905 = vmatpush2.msra.mxu0 %v3477
        %3906 = vmatprep.subr.mxu0 0.0
        %3907 = vmatpush2.msra.mxu0 %v3476
        %3908 = vmatprep.mubr.f32.mxu0 %v3828
        %3909 = vmatmul.mubr.f32.gmra.mxu0 %v3796
        %v3910 = vpop.f32.mrf.mxu0
        %v3911 = vadd.f32 0.0, %v3910
        %v3912 = vpop.f32.mrf.mxu0
        %3913 = vdwg.mxu0
        %v3914 = vmul.f32 %v3716, %v3428
        %v3915 = vmul.f32 %v3717, %v3429
        %v3916 = vmul.f32 %v3718, %v3430
        %v3917 = vmul.f32 %v3719, %v3431
        %v3918 = vmul.f32 %v3720, %v3432
        %v3919 = vmul.f32 %v3721, %v3433
        %v3920 = vmul.f32 %v3722, %v3434
        %v3921 = vmul.f32 %v3723, %v3435
        %v3922 = vmul.f32 %v3724, %v3436
        %v3923 = vmul.f32 %v3725, %v3437
        %v3924 = vmul.f32 %v3726, %v3438
        %v3925 = vmul.f32 %v3727, %v3439
        %v3926 = vmul.f32 %v3728, %v3440
        %v3927 = vmul.f32 %v3729, %v3441
        %v3928 = vmul.f32 %v3730, %v3442
        %v3929 = vmul.f32 %v3731, %v3443
        %v3930 = vmul.f32 %v3732, %v3444
        %v3931 = vmul.f32 %v3733, %v3445
        %v3932 = vmul.f32 %v3734, %v3446
        %v3933 = vmul.f32 %v3735, %v3447
        %v3934 = vmul.f32 %v3736, %v3448
        %v3935 = vmul.f32 %v3737, %v3449
        %v3936 = vmul.f32 %v3738, %v3450
        %v3937 = vmul.f32 %v3739, %v3451
        %v3938 = vmul.f32 %v3740, %v3452
        %v3939 = vmul.f32 %v3741, %v3453
        %v3940 = vmul.f32 %v3742, %v3454
        %v3941 = vmul.f32 %v3743, %v3455
        %v3942 = vmul.f32 %v3744, %v3456
        %v3943 = vmul.f32 %v3745, %v3457
        %v3944 = vmul.f32 %v3746, %v3458
        %v3945 = vmul.f32 %v3747, %v3459
        %3946 = vxpose.xlu0.b32.start [1/16] %v3914, 128
        %3947 = vxpose.xlu0.b32.cont [2/16] %v3915, 128
        %3948 = vxpose.xlu0.b32.cont [3/16] %v3916, 128
        %3949 = vxpose.xlu0.b32.cont [4/16] %v3917, 128
        %3950 = vxpose.xlu0.b32.cont [5/16] %v3918, 128
        %3951 = vxpose.xlu0.b32.cont [6/16] %v3919, 128
        %3952 = vxpose.xlu0.b32.cont [7/16] %v3920, 128
        %3953 = vxpose.xlu0.b32.cont [8/16] %v3921, 128
        %3954 = vxpose.xlu0.b32.cont [9/16] %v3922, 128
        %3955 = vxpose.xlu0.b32.cont [10/16] %v3923, 128
        %3956 = vxpose.xlu0.b32.cont [11/16] %v3924, 128
        %3957 = vxpose.xlu0.b32.cont [12/16] %v3925, 128
        %3958 = vxpose.xlu0.b32.cont [13/16] %v3926, 128
        %3959 = vxpose.xlu0.b32.cont [14/16] %v3927, 128
        %3960 = vxpose.xlu0.b32.cont [15/16] %v3928, 128
        %3961 = vxpose.xlu0.b32.end [16/16] %v3929, 128
        %v3962 = vpop.trf.xlu0
        %v3963 = vpop.trf.xlu0
        %v3964 = vpop.trf.xlu0
        %v3965 = vpop.trf.xlu0
        %v3966 = vpop.trf.xlu0
        %v3967 = vpop.trf.xlu0
        %v3968 = vpop.trf.xlu0
        %v3969 = vpop.trf.xlu0
        %v3970 = vpop.trf.xlu0
        %v3971 = vpop.trf.xlu0
        %v3972 = vpop.trf.xlu0
        %v3973 = vpop.trf.xlu0
        %v3974 = vpop.trf.xlu0
        %v3975 = vpop.trf.xlu0
        %v3976 = vpop.trf.xlu0
        %v3977 = vpop.trf.xlu0
        %3978 = vxpose.xlu0.b32.start [1/16] %v3930, 128
        %3979 = vxpose.xlu0.b32.cont [2/16] %v3931, 128
        %3980 = vxpose.xlu0.b32.cont [3/16] %v3932, 128
        %3981 = vxpose.xlu0.b32.cont [4/16] %v3933, 128
        %3982 = vxpose.xlu0.b32.cont [5/16] %v3934, 128
        %3983 = vxpose.xlu0.b32.cont [6/16] %v3935, 128
        %3984 = vxpose.xlu0.b32.cont [7/16] %v3936, 128
        %3985 = vxpose.xlu0.b32.cont [8/16] %v3937, 128
        %3986 = vxpose.xlu0.b32.cont [9/16] %v3938, 128
        %3987 = vxpose.xlu0.b32.cont [10/16] %v3939, 128
        %3988 = vxpose.xlu0.b32.cont [11/16] %v3940, 128
        %3989 = vxpose.xlu0.b32.cont [12/16] %v3941, 128
        %3990 = vxpose.xlu0.b32.cont [13/16] %v3942, 128
        %3991 = vxpose.xlu0.b32.cont [14/16] %v3943, 128
        %3992 = vxpose.xlu0.b32.cont [15/16] %v3944, 128
        %3993 = vxpose.xlu0.b32.end [16/16] %v3945, 128
        %v3994 = vpop.trf.xlu0
        %v3995 = vpop.trf.xlu0
        %v3996 = vpop.trf.xlu0
        %v3997 = vpop.trf.xlu0
        %v3998 = vpop.trf.xlu0
        %v3999 = vpop.trf.xlu0
        %v4000 = vpop.trf.xlu0
        %v4001 = vpop.trf.xlu0
        %v4002 = vpop.trf.xlu0
        %v4003 = vpop.trf.xlu0
        %v4004 = vpop.trf.xlu0
        %v4005 = vpop.trf.xlu0
        %v4006 = vpop.trf.xlu0
        %v4007 = vpop.trf.xlu0
        %v4008 = vpop.trf.xlu0
        %v4009 = vpop.trf.xlu0
        %4010 = vmatprep.subr.mxu0 0.0
        %4011 = vmatpush1.msra.mxu0 %v3475
        %4012 = vmatprep.subr.mxu0 0.0
        %4013 = vmatpush1.msra.mxu0 %v3474
        %4014 = vmatprep.subr.mxu0 0.0
        %4015 = vmatpush1.msra.mxu0 %v3473
        %4016 = vmatprep.subr.mxu0 0.0
        %4017 = vmatpush1.msra.mxu0 %v3472
        %4018 = vmatprep.subr.mxu0 0.0
        %4019 = vmatpush1.msra.mxu0 %v3471
        %4020 = vmatprep.subr.mxu0 0.0
        %4021 = vmatpush1.msra.mxu0 %v3470
        %4022 = vmatprep.subr.mxu0 0.0
        %4023 = vmatpush1.msra.mxu0 %v3469
        %4024 = vmatprep.subr.mxu0 0.0
        %4025 = vmatpush1.msra.mxu0 %v3468
        %4026 = vmatprep.subr.mxu0 0.0
        %4027 = vmatpush1.msra.mxu0 %v3467
        %4028 = vmatprep.subr.mxu0 0.0
        %4029 = vmatpush1.msra.mxu0 %v3466
        %4030 = vmatprep.subr.mxu0 0.0
        %4031 = vmatpush1.msra.mxu0 %v3465
        %4032 = vmatprep.subr.mxu0 0.0
        %4033 = vmatpush1.msra.mxu0 %v3464
        %4034 = vmatprep.subr.mxu0 0.0
        %4035 = vmatpush1.msra.mxu0 %v3463
        %4036 = vmatprep.subr.mxu0 0.0
        %4037 = vmatpush1.msra.mxu0 %v3462
        %4038 = vmatprep.subr.mxu0 0.0
        %4039 = vmatpush1.msra.mxu0 %v3461
        %4040 = vmatprep.subr.mxu0 0.0
        %4041 = vmatpush1.msra.mxu0 %v3460
        %4042 = vmatprep.subr.mxu0 0.0
        %4043 = vmatpush2.msra.mxu0 %v3491
        %4044 = vmatprep.subr.mxu0 0.0
        %4045 = vmatpush2.msra.mxu0 %v3490
        %4046 = vmatprep.subr.mxu0 0.0
        %4047 = vmatpush2.msra.mxu0 %v3489
        %4048 = vmatprep.subr.mxu0 0.0
        %4049 = vmatpush2.msra.mxu0 %v3488
        %4050 = vmatprep.subr.mxu0 0.0
        %4051 = vmatpush2.msra.mxu0 %v3487
        %4052 = vmatprep.subr.mxu0 0.0
        %4053 = vmatpush2.msra.mxu0 %v3486
        %4054 = vmatprep.subr.mxu0 0.0
        %4055 = vmatpush2.msra.mxu0 %v3485
        %4056 = vmatprep.subr.mxu0 0.0
        %4057 = vmatpush2.msra.mxu0 %v3484
        %4058 = vmatprep.subr.mxu0 0.0
        %4059 = vmatpush2.msra.mxu0 %v3483
        %4060 = vmatprep.subr.mxu0 0.0
        %4061 = vmatpush2.msra.mxu0 %v3482
        %4062 = vmatprep.subr.mxu0 0.0
        %4063 = vmatpush2.msra.mxu0 %v3481
        %4064 = vmatprep.subr.mxu0 0.0
        %4065 = vmatpush2.msra.mxu0 %v3480
        %4066 = vmatprep.subr.mxu0 0.0
        %4067 = vmatpush2.msra.mxu0 %v3479
        %4068 = vmatprep.subr.mxu0 0.0
        %4069 = vmatpush2.msra.mxu0 %v3478
        %4070 = vmatprep.subr.mxu0 0.0
        %4071 = vmatpush2.msra.mxu0 %v3477
        %4072 = vmatprep.subr.mxu0 0.0
        %4073 = vmatpush2.msra.mxu0 %v3476
        %4074 = vmatprep.mubr.f32.mxu0 %v3994
        %4075 = vmatmul.mubr.f32.gmra.mxu0 %v3962
        %v4076 = vpop.f32.mrf.mxu0
        %v4077 = vadd.f32 0.0, %v4076
        %v4078 = vpop.f32.mrf.mxu0
        %4079 = vdwg.mxu0
        %v4080 = vmul.f32 %v2661, -0.70710677
        %v4081 = vmul.f32 %v2663, -0.70710677
        %v4082 = vmul.f32 %v2665, -0.70710677
        %v4083 = vmul.f32 %v2667, -0.70710677
        %v4084 = vmul.f32 %v2669, -0.70710677
        %v4085 = vmul.f32 %v2671, -0.70710677
        %v4086 = vmul.f32 %v2673, -0.70710677
        %v4087 = vmul.f32 %v2675, -0.70710677
        %v4088 = vmul.f32 %v2677, -0.70710677
        %v4089 = vmul.f32 %v2679, -0.70710677
        %v4090 = vmul.f32 %v2681, -0.70710677
        %v4091 = vmul.f32 %v2683, -0.70710677
        %v4092 = vmul.f32 %v2685, -0.70710677
        %v4093 = vmul.f32 %v2687, -0.70710677
        %v4094 = vmul.f32 %v2689, -0.70710677
        %v4095 = vmul.f32 %v2691, -0.70710677
        %v4096 = vmul.f32 %v2693, -0.70710677
        %v4097 = vmul.f32 %v2695, -0.70710677
        %v4098 = vmul.f32 %v2697, -0.70710677
        %v4099 = vmul.f32 %v2699, -0.70710677
        %v4100 = vmul.f32 %v2701, -0.70710677
        %v4101 = vmul.f32 %v2703, -0.70710677
        %v4102 = vmul.f32 %v2705, -0.70710677
        %v4103 = vmul.f32 %v2707, -0.70710677
        %v4104 = vmul.f32 %v2709, -0.70710677
        %v4105 = vmul.f32 %v2711, -0.70710677
        %v4106 = vmul.f32 %v2713, -0.70710677
        %v4107 = vmul.f32 %v2715, -0.70710677
        %v4108 = vmul.f32 %v2717, -0.70710677
        %v4109 = vmul.f32 %v2719, -0.70710677
        %v4110 = vmul.f32 %v2721, -0.70710677
        %v4111 = vmul.f32 %v2723, -0.70710677
        %v4112 = vadd.f32 %v4080, 1.0
        %v4113 = vadd.f32 %v4081, 1.0
        %v4114 = vadd.f32 %v4082, 1.0
        %v4115 = vadd.f32 %v4083, 1.0
        %v4116 = vadd.f32 %v4084, 1.0
        %v4117 = vadd.f32 %v4085, 1.0
        %v4118 = vadd.f32 %v4086, 1.0
        %v4119 = vadd.f32 %v4087, 1.0
        %v4120 = vadd.f32 %v4088, 1.0
        %v4121 = vadd.f32 %v4089, 1.0
        %v4122 = vadd.f32 %v4090, 1.0
        %v4123 = vadd.f32 %v4091, 1.0
        %v4124 = vadd.f32 %v4092, 1.0
        %v4125 = vadd.f32 %v4093, 1.0
        %v4126 = vadd.f32 %v4094, 1.0
        %v4127 = vadd.f32 %v4095, 1.0
        %v4128 = vadd.f32 %v4096, 1.0
        %v4129 = vadd.f32 %v4097, 1.0
        %v4130 = vadd.f32 %v4098, 1.0
        %v4131 = vadd.f32 %v4099, 1.0
        %v4132 = vadd.f32 %v4100, 1.0
        %v4133 = vadd.f32 %v4101, 1.0
        %v4134 = vadd.f32 %v4102, 1.0
        %v4135 = vadd.f32 %v4103, 1.0
        %v4136 = vadd.f32 %v4104, 1.0
        %v4137 = vadd.f32 %v4105, 1.0
        %v4138 = vadd.f32 %v4106, 1.0
        %v4139 = vadd.f32 %v4107, 1.0
        %v4140 = vadd.f32 %v4108, 1.0
        %v4141 = vadd.f32 %v4109, 1.0
        %v4142 = vadd.f32 %v4110, 1.0
        %v4143 = vadd.f32 %v4111, 1.0
        %v4144 = vadd.f32 %v4112, %v3556
        %v4145 = vadd.f32 %v4113, %v3557
        %v4146 = vadd.f32 %v4114, %v3558
        %v4147 = vadd.f32 %v4115, %v3559
        %v4148 = vadd.f32 %v4116, %v3560
        %v4149 = vadd.f32 %v4117, %v3561
        %v4150 = vadd.f32 %v4118, %v3562
        %v4151 = vadd.f32 %v4119, %v3563
        %v4152 = vadd.f32 %v4120, %v3564
        %v4153 = vadd.f32 %v4121, %v3565
        %v4154 = vadd.f32 %v4122, %v3566
        %v4155 = vadd.f32 %v4123, %v3567
        %v4156 = vadd.f32 %v4124, %v3568
        %v4157 = vadd.f32 %v4125, %v3569
        %v4158 = vadd.f32 %v4126, %v3570
        %v4159 = vadd.f32 %v4127, %v3571
        %v4160 = vadd.f32 %v4128, %v3572
        %v4161 = vadd.f32 %v4129, %v3573
        %v4162 = vadd.f32 %v4130, %v3574
        %v4163 = vadd.f32 %v4131, %v3575
        %v4164 = vadd.f32 %v4132, %v3576
        %v4165 = vadd.f32 %v4133, %v3577
        %v4166 = vadd.f32 %v4134, %v3578
        %v4167 = vadd.f32 %v4135, %v3579
        %v4168 = vadd.f32 %v4136, %v3580
        %v4169 = vadd.f32 %v4137, %v3581
        %v4170 = vadd.f32 %v4138, %v3582
        %v4171 = vadd.f32 %v4139, %v3583
        %v4172 = vadd.f32 %v4140, %v3584
        %v4173 = vadd.f32 %v4141, %v3585
        %v4174 = vadd.f32 %v4142, %v3586
        %v4175 = vadd.f32 %v4143, %v3587
        %v4176 = vmul.f32 %v4144, 0.5
        %v4177 = vmul.f32 %v4145, 0.5
        %v4178 = vmul.f32 %v4146, 0.5
        %v4179 = vmul.f32 %v4147, 0.5
        %v4180 = vmul.f32 %v4148, 0.5
        %v4181 = vmul.f32 %v4149, 0.5
        %v4182 = vmul.f32 %v4150, 0.5
        %v4183 = vmul.f32 %v4151, 0.5
        %v4184 = vmul.f32 %v4152, 0.5
        %v4185 = vmul.f32 %v4153, 0.5
        %v4186 = vmul.f32 %v4154, 0.5
        %v4187 = vmul.f32 %v4155, 0.5
        %v4188 = vmul.f32 %v4156, 0.5
        %v4189 = vmul.f32 %v4157, 0.5
        %v4190 = vmul.f32 %v4158, 0.5
        %v4191 = vmul.f32 %v4159, 0.5
        %v4192 = vmul.f32 %v4160, 0.5
        %v4193 = vmul.f32 %v4161, 0.5
        %v4194 = vmul.f32 %v4162, 0.5
        %v4195 = vmul.f32 %v4163, 0.5
        %v4196 = vmul.f32 %v4164, 0.5
        %v4197 = vmul.f32 %v4165, 0.5
        %v4198 = vmul.f32 %v4166, 0.5
        %v4199 = vmul.f32 %v4167, 0.5
        %v4200 = vmul.f32 %v4168, 0.5
        %v4201 = vmul.f32 %v4169, 0.5
        %v4202 = vmul.f32 %v4170, 0.5
        %v4203 = vmul.f32 %v4171, 0.5
        %v4204 = vmul.f32 %v4172, 0.5
        %v4205 = vmul.f32 %v4173, 0.5
        %v4206 = vmul.f32 %v4174, 0.5
        %v4207 = vmul.f32 %v4175, 0.5
        %v4208 = vmul.f32 %v4176, %v4176
        %v4209 = vmul.f32 %v4177, %v4177
        %v4210 = vmul.f32 %v4178, %v4178
        %v4211 = vmul.f32 %v4179, %v4179
        %v4212 = vmul.f32 %v4180, %v4180
        %v4213 = vmul.f32 %v4181, %v4181
        %v4214 = vmul.f32 %v4182, %v4182
        %v4215 = vmul.f32 %v4183, %v4183
        %v4216 = vmul.f32 %v4184, %v4184
        %v4217 = vmul.f32 %v4185, %v4185
        %v4218 = vmul.f32 %v4186, %v4186
        %v4219 = vmul.f32 %v4187, %v4187
        %v4220 = vmul.f32 %v4188, %v4188
        %v4221 = vmul.f32 %v4189, %v4189
        %v4222 = vmul.f32 %v4190, %v4190
        %v4223 = vmul.f32 %v4191, %v4191
        %v4224 = vmul.f32 %v4192, %v4192
        %v4225 = vmul.f32 %v4193, %v4193
        %v4226 = vmul.f32 %v4194, %v4194
        %v4227 = vmul.f32 %v4195, %v4195
        %v4228 = vmul.f32 %v4196, %v4196
        %v4229 = vmul.f32 %v4197, %v4197
        %v4230 = vmul.f32 %v4198, %v4198
        %v4231 = vmul.f32 %v4199, %v4199
        %v4232 = vmul.f32 %v4200, %v4200
        %v4233 = vmul.f32 %v4201, %v4201
        %v4234 = vmul.f32 %v4202, %v4202
        %v4235 = vmul.f32 %v4203, %v4203
        %v4236 = vmul.f32 %v4204, %v4204
        %v4237 = vmul.f32 %v4205, %v4205
        %v4238 = vmul.f32 %v4206, %v4206
        %v4239 = vmul.f32 %v4207, %v4207
        %v4240 = vmul.f32 %v4208, %v4208
        %v4241 = vmul.f32 %v4209, %v4209
        %v4242 = vmul.f32 %v4210, %v4210
        %v4243 = vmul.f32 %v4211, %v4211
        %v4244 = vmul.f32 %v4212, %v4212
        %v4245 = vmul.f32 %v4213, %v4213
        %v4246 = vmul.f32 %v4214, %v4214
        %v4247 = vmul.f32 %v4215, %v4215
        %v4248 = vmul.f32 %v4216, %v4216
        %v4249 = vmul.f32 %v4217, %v4217
        %v4250 = vmul.f32 %v4218, %v4218
        %v4251 = vmul.f32 %v4219, %v4219
        %v4252 = vmul.f32 %v4220, %v4220
        %v4253 = vmul.f32 %v4221, %v4221
        %v4254 = vmul.f32 %v4222, %v4222
        %v4255 = vmul.f32 %v4223, %v4223
        %v4256 = vmul.f32 %v4224, %v4224
        %v4257 = vmul.f32 %v4225, %v4225
        %v4258 = vmul.f32 %v4226, %v4226
        %v4259 = vmul.f32 %v4227, %v4227
        %v4260 = vmul.f32 %v4228, %v4228
        %v4261 = vmul.f32 %v4229, %v4229
        %v4262 = vmul.f32 %v4230, %v4230
        %v4263 = vmul.f32 %v4231, %v4231
        %v4264 = vmul.f32 %v4232, %v4232
        %v4265 = vmul.f32 %v4233, %v4233
        %v4266 = vmul.f32 %v4234, %v4234
        %v4267 = vmul.f32 %v4235, %v4235
        %v4268 = vmul.f32 %v4236, %v4236
        %v4269 = vmul.f32 %v4237, %v4237
        %v4270 = vmul.f32 %v4238, %v4238
        %v4271 = vmul.f32 %v4239, %v4239
        %v4272 = vmul.f32 %v4240, %v4240
        %v4273 = vmul.f32 %v4241, %v4241
        %v4274 = vmul.f32 %v4242, %v4242
        %v4275 = vmul.f32 %v4243, %v4243
        %v4276 = vmul.f32 %v4244, %v4244
        %v4277 = vmul.f32 %v4245, %v4245
        %v4278 = vmul.f32 %v4246, %v4246
        %v4279 = vmul.f32 %v4247, %v4247
        %v4280 = vmul.f32 %v4248, %v4248
        %v4281 = vmul.f32 %v4249, %v4249
        %v4282 = vmul.f32 %v4250, %v4250
        %v4283 = vmul.f32 %v4251, %v4251
        %v4284 = vmul.f32 %v4252, %v4252
        %v4285 = vmul.f32 %v4253, %v4253
        %v4286 = vmul.f32 %v4254, %v4254
        %v4287 = vmul.f32 %v4255, %v4255
        %v4288 = vmul.f32 %v4256, %v4256
        %v4289 = vmul.f32 %v4257, %v4257
        %v4290 = vmul.f32 %v4258, %v4258
        %v4291 = vmul.f32 %v4259, %v4259
        %v4292 = vmul.f32 %v4260, %v4260
        %v4293 = vmul.f32 %v4261, %v4261
        %v4294 = vmul.f32 %v4262, %v4262
        %v4295 = vmul.f32 %v4263, %v4263
        %v4296 = vmul.f32 %v4264, %v4264
        %v4297 = vmul.f32 %v4265, %v4265
        %v4298 = vmul.f32 %v4266, %v4266
        %v4299 = vmul.f32 %v4267, %v4267
        %v4300 = vmul.f32 %v4268, %v4268
        %v4301 = vmul.f32 %v4269, %v4269
        %v4302 = vmul.f32 %v4270, %v4270
        %v4303 = vmul.f32 %v4271, %v4271
        %v4304 = vmul.f32 %v4272, %v3236
        %v4305 = vmul.f32 %v4273, %v3237
        %v4306 = vmul.f32 %v4274, %v3238
        %v4307 = vmul.f32 %v4275, %v3239
        %v4308 = vmul.f32 %v4276, %v3240
        %v4309 = vmul.f32 %v4277, %v3241
        %v4310 = vmul.f32 %v4278, %v3242
        %v4311 = vmul.f32 %v4279, %v3243
        %v4312 = vmul.f32 %v4280, %v3244
        %v4313 = vmul.f32 %v4281, %v3245
        %v4314 = vmul.f32 %v4282, %v3246
        %v4315 = vmul.f32 %v4283, %v3247
        %v4316 = vmul.f32 %v4284, %v3248
        %v4317 = vmul.f32 %v4285, %v3249
        %v4318 = vmul.f32 %v4286, %v3250
        %v4319 = vmul.f32 %v4287, %v3251
        %v4320 = vmul.f32 %v4288, %v3252
        %v4321 = vmul.f32 %v4289, %v3253
        %v4322 = vmul.f32 %v4290, %v3254
        %v4323 = vmul.f32 %v4291, %v3255
        %v4324 = vmul.f32 %v4292, %v3256
        %v4325 = vmul.f32 %v4293, %v3257
        %v4326 = vmul.f32 %v4294, %v3258
        %v4327 = vmul.f32 %v4295, %v3259
        %v4328 = vmul.f32 %v4296, %v3260
        %v4329 = vmul.f32 %v4297, %v3261
        %v4330 = vmul.f32 %v4298, %v3262
        %v4331 = vmul.f32 %v4299, %v3263
        %v4332 = vmul.f32 %v4300, %v3264
        %v4333 = vmul.f32 %v4301, %v3265
        %v4334 = vmul.f32 %v4302, %v3266
        %v4335 = vmul.f32 %v4303, %v3267
        %4336 = vxpose.xlu0.b32.start [1/16] %v4304, 128
        %4337 = vxpose.xlu0.b32.cont [2/16] %v4305, 128
        %4338 = vxpose.xlu0.b32.cont [3/16] %v4306, 128
        %4339 = vxpose.xlu0.b32.cont [4/16] %v4307, 128
        %4340 = vxpose.xlu0.b32.cont [5/16] %v4308, 128
        %4341 = vxpose.xlu0.b32.cont [6/16] %v4309, 128
        %4342 = vxpose.xlu0.b32.cont [7/16] %v4310, 128
        %4343 = vxpose.xlu0.b32.cont [8/16] %v4311, 128
        %4344 = vxpose.xlu0.b32.cont [9/16] %v4312, 128
        %4345 = vxpose.xlu0.b32.cont [10/16] %v4313, 128
        %4346 = vxpose.xlu0.b32.cont [11/16] %v4314, 128
        %4347 = vxpose.xlu0.b32.cont [12/16] %v4315, 128
        %4348 = vxpose.xlu0.b32.cont [13/16] %v4316, 128
        %4349 = vxpose.xlu0.b32.cont [14/16] %v4317, 128
        %4350 = vxpose.xlu0.b32.cont [15/16] %v4318, 128
        %4351 = vxpose.xlu0.b32.end [16/16] %v4319, 128
        %v4352 = vpop.trf.xlu0
        %v4353 = vpop.trf.xlu0
        %v4354 = vpop.trf.xlu0
        %v4355 = vpop.trf.xlu0
        %v4356 = vpop.trf.xlu0
        %v4357 = vpop.trf.xlu0
        %v4358 = vpop.trf.xlu0
        %v4359 = vpop.trf.xlu0
        %v4360 = vpop.trf.xlu0
        %v4361 = vpop.trf.xlu0
        %v4362 = vpop.trf.xlu0
        %v4363 = vpop.trf.xlu0
        %v4364 = vpop.trf.xlu0
        %v4365 = vpop.trf.xlu0
        %v4366 = vpop.trf.xlu0
        %v4367 = vpop.trf.xlu0
        %4368 = vxpose.xlu0.b32.start [1/16] %v4320, 128
        %4369 = vxpose.xlu0.b32.cont [2/16] %v4321, 128
        %4370 = vxpose.xlu0.b32.cont [3/16] %v4322, 128
        %4371 = vxpose.xlu0.b32.cont [4/16] %v4323, 128
        %4372 = vxpose.xlu0.b32.cont [5/16] %v4324, 128
        %4373 = vxpose.xlu0.b32.cont [6/16] %v4325, 128
        %4374 = vxpose.xlu0.b32.cont [7/16] %v4326, 128
        %4375 = vxpose.xlu0.b32.cont [8/16] %v4327, 128
        %4376 = vxpose.xlu0.b32.cont [9/16] %v4328, 128
        %4377 = vxpose.xlu0.b32.cont [10/16] %v4329, 128
        %4378 = vxpose.xlu0.b32.cont [11/16] %v4330, 128
        %4379 = vxpose.xlu0.b32.cont [12/16] %v4331, 128
        %4380 = vxpose.xlu0.b32.cont [13/16] %v4332, 128
        %4381 = vxpose.xlu0.b32.cont [14/16] %v4333, 128
        %4382 = vxpose.xlu0.b32.cont [15/16] %v4334, 128
        %4383 = vxpose.xlu0.b32.end [16/16] %v4335, 128
        %v4384 = vpop.trf.xlu0
        %v4385 = vpop.trf.xlu0
        %v4386 = vpop.trf.xlu0
        %v4387 = vpop.trf.xlu0
        %v4388 = vpop.trf.xlu0
        %v4389 = vpop.trf.xlu0
        %v4390 = vpop.trf.xlu0
        %v4391 = vpop.trf.xlu0
        %v4392 = vpop.trf.xlu0
        %v4393 = vpop.trf.xlu0
        %v4394 = vpop.trf.xlu0
        %v4395 = vpop.trf.xlu0
        %v4396 = vpop.trf.xlu0
        %v4397 = vpop.trf.xlu0
        %v4398 = vpop.trf.xlu0
        %v4399 = vpop.trf.xlu0
        %4400 = vmatprep.subr.mxu0 0.0
        %4401 = vmatpush1.msra.mxu0 %v3475
        %4402 = vmatprep.subr.mxu0 0.0
        %4403 = vmatpush1.msra.mxu0 %v3474
        %4404 = vmatprep.subr.mxu0 0.0
        %4405 = vmatpush1.msra.mxu0 %v3473
        %4406 = vmatprep.subr.mxu0 0.0
        %4407 = vmatpush1.msra.mxu0 %v3472
        %4408 = vmatprep.subr.mxu0 0.0
        %4409 = vmatpush1.msra.mxu0 %v3471
        %4410 = vmatprep.subr.mxu0 0.0
        %4411 = vmatpush1.msra.mxu0 %v3470
        %4412 = vmatprep.subr.mxu0 0.0
        %4413 = vmatpush1.msra.mxu0 %v3469
        %4414 = vmatprep.subr.mxu0 0.0
        %4415 = vmatpush1.msra.mxu0 %v3468
        %4416 = vmatprep.subr.mxu0 0.0
        %4417 = vmatpush1.msra.mxu0 %v3467
        %4418 = vmatprep.subr.mxu0 0.0
        %4419 = vmatpush1.msra.mxu0 %v3466
        %4420 = vmatprep.subr.mxu0 0.0
        %4421 = vmatpush1.msra.mxu0 %v3465
        %4422 = vmatprep.subr.mxu0 0.0
        %4423 = vmatpush1.msra.mxu0 %v3464
        %4424 = vmatprep.subr.mxu0 0.0
        %4425 = vmatpush1.msra.mxu0 %v3463
        %4426 = vmatprep.subr.mxu0 0.0
        %4427 = vmatpush1.msra.mxu0 %v3462
        %4428 = vmatprep.subr.mxu0 0.0
        %4429 = vmatpush1.msra.mxu0 %v3461
        %4430 = vmatprep.subr.mxu0 0.0
        %4431 = vmatpush1.msra.mxu0 %v3460
        %4432 = vmatprep.subr.mxu0 0.0
        %4433 = vmatpush2.msra.mxu0 %v3491
        %4434 = vmatprep.subr.mxu0 0.0
        %4435 = vmatpush2.msra.mxu0 %v3490
        %4436 = vmatprep.subr.mxu0 0.0
        %4437 = vmatpush2.msra.mxu0 %v3489
        %4438 = vmatprep.subr.mxu0 0.0
        %4439 = vmatpush2.msra.mxu0 %v3488
        %4440 = vmatprep.subr.mxu0 0.0
        %4441 = vmatpush2.msra.mxu0 %v3487
        %4442 = vmatprep.subr.mxu0 0.0
        %4443 = vmatpush2.msra.mxu0 %v3486
        %4444 = vmatprep.subr.mxu0 0.0
        %4445 = vmatpush2.msra.mxu0 %v3485
        %4446 = vmatprep.subr.mxu0 0.0
        %4447 = vmatpush2.msra.mxu0 %v3484
        %4448 = vmatprep.subr.mxu0 0.0
        %4449 = vmatpush2.msra.mxu0 %v3483
        %4450 = vmatprep.subr.mxu0 0.0
        %4451 = vmatpush2.msra.mxu0 %v3482
        %4452 = vmatprep.subr.mxu0 0.0
        %4453 = vmatpush2.msra.mxu0 %v3481
        %4454 = vmatprep.subr.mxu0 0.0
        %4455 = vmatpush2.msra.mxu0 %v3480
        %4456 = vmatprep.subr.mxu0 0.0
        %4457 = vmatpush2.msra.mxu0 %v3479
        %4458 = vmatprep.subr.mxu0 0.0
        %4459 = vmatpush2.msra.mxu0 %v3478
        %4460 = vmatprep.subr.mxu0 0.0
        %4461 = vmatpush2.msra.mxu0 %v3477
        %4462 = vmatprep.subr.mxu0 0.0
        %4463 = vmatpush2.msra.mxu0 %v3476
        %4464 = vmatprep.mubr.f32.mxu0 %v4384
        %4465 = vmatmul.mubr.f32.gmra.mxu0 %v4352
        %v4466 = vpop.f32.mrf.mxu0
        %v4467 = vadd.f32 0.0, %v4466
        %v4468 = vpop.f32.mrf.mxu0
        %4469 = vdwg.mxu0
        %v4470 = vmul.f32 %v4272, %v3428
        %v4471 = vmul.f32 %v4273, %v3429
        %v4472 = vmul.f32 %v4274, %v3430
        %v4473 = vmul.f32 %v4275, %v3431
        %v4474 = vmul.f32 %v4276, %v3432
        %v4475 = vmul.f32 %v4277, %v3433
        %v4476 = vmul.f32 %v4278, %v3434
        %v4477 = vmul.f32 %v4279, %v3435
        %v4478 = vmul.f32 %v4280, %v3436
        %v4479 = vmul.f32 %v4281, %v3437
        %v4480 = vmul.f32 %v4282, %v3438
        %v4481 = vmul.f32 %v4283, %v3439
        %v4482 = vmul.f32 %v4284, %v3440
        %v4483 = vmul.f32 %v4285, %v3441
        %v4484 = vmul.f32 %v4286, %v3442
        %v4485 = vmul.f32 %v4287, %v3443
        %v4486 = vmul.f32 %v4288, %v3444
        %v4487 = vmul.f32 %v4289, %v3445
        %v4488 = vmul.f32 %v4290, %v3446
        %v4489 = vmul.f32 %v4291, %v3447
        %v4490 = vmul.f32 %v4292, %v3448
        %v4491 = vmul.f32 %v4293, %v3449
        %v4492 = vmul.f32 %v4294, %v3450
        %v4493 = vmul.f32 %v4295, %v3451
        %v4494 = vmul.f32 %v4296, %v3452
        %v4495 = vmul.f32 %v4297, %v3453
        %v4496 = vmul.f32 %v4298, %v3454
        %v4497 = vmul.f32 %v4299, %v3455
        %v4498 = vmul.f32 %v4300, %v3456
        %v4499 = vmul.f32 %v4301, %v3457
        %v4500 = vmul.f32 %v4302, %v3458
        %v4501 = vmul.f32 %v4303, %v3459
        %4502 = vxpose.xlu0.b32.start [1/16] %v4470, 128
        %4503 = vxpose.xlu0.b32.cont [2/16] %v4471, 128
        %4504 = vxpose.xlu0.b32.cont [3/16] %v4472, 128
        %4505 = vxpose.xlu0.b32.cont [4/16] %v4473, 128
        %4506 = vxpose.xlu0.b32.cont [5/16] %v4474, 128
        %4507 = vxpose.xlu0.b32.cont [6/16] %v4475, 128
        %4508 = vxpose.xlu0.b32.cont [7/16] %v4476, 128
        %4509 = vxpose.xlu0.b32.cont [8/16] %v4477, 128
        %4510 = vxpose.xlu0.b32.cont [9/16] %v4478, 128
        %4511 = vxpose.xlu0.b32.cont [10/16] %v4479, 128
        %4512 = vxpose.xlu0.b32.cont [11/16] %v4480, 128
        %4513 = vxpose.xlu0.b32.cont [12/16] %v4481, 128
        %4514 = vxpose.xlu0.b32.cont [13/16] %v4482, 128
        %4515 = vxpose.xlu0.b32.cont [14/16] %v4483, 128
        %4516 = vxpose.xlu0.b32.cont [15/16] %v4484, 128
        %4517 = vxpose.xlu0.b32.end [16/16] %v4485, 128
        %v4518 = vpop.trf.xlu0
        %v4519 = vpop.trf.xlu0
        %v4520 = vpop.trf.xlu0
        %v4521 = vpop.trf.xlu0
        %v4522 = vpop.trf.xlu0
        %v4523 = vpop.trf.xlu0
        %v4524 = vpop.trf.xlu0
        %v4525 = vpop.trf.xlu0
        %v4526 = vpop.trf.xlu0
        %v4527 = vpop.trf.xlu0
        %v4528 = vpop.trf.xlu0
        %v4529 = vpop.trf.xlu0
        %v4530 = vpop.trf.xlu0
        %v4531 = vpop.trf.xlu0
        %v4532 = vpop.trf.xlu0
        %v4533 = vpop.trf.xlu0
        %4534 = vxpose.xlu0.b32.start [1/16] %v4486, 128
        %4535 = vxpose.xlu0.b32.cont [2/16] %v4487, 128
        %4536 = vxpose.xlu0.b32.cont [3/16] %v4488, 128
        %4537 = vxpose.xlu0.b32.cont [4/16] %v4489, 128
        %4538 = vxpose.xlu0.b32.cont [5/16] %v4490, 128
        %4539 = vxpose.xlu0.b32.cont [6/16] %v4491, 128
        %4540 = vxpose.xlu0.b32.cont [7/16] %v4492, 128
        %4541 = vxpose.xlu0.b32.cont [8/16] %v4493, 128
        %4542 = vxpose.xlu0.b32.cont [9/16] %v4494, 128
        %4543 = vxpose.xlu0.b32.cont [10/16] %v4495, 128
        %4544 = vxpose.xlu0.b32.cont [11/16] %v4496, 128
        %4545 = vxpose.xlu0.b32.cont [12/16] %v4497, 128
        %4546 = vxpose.xlu0.b32.cont [13/16] %v4498, 128
        %4547 = vxpose.xlu0.b32.cont [14/16] %v4499, 128
        %4548 = vxpose.xlu0.b32.cont [15/16] %v4500, 128
        %4549 = vxpose.xlu0.b32.end [16/16] %v4501, 128
        %v4550 = vpop.trf.xlu0
        %v4551 = vpop.trf.xlu0
        %v4552 = vpop.trf.xlu0
        %v4553 = vpop.trf.xlu0
        %v4554 = vpop.trf.xlu0
        %v4555 = vpop.trf.xlu0
        %v4556 = vpop.trf.xlu0
        %v4557 = vpop.trf.xlu0
        %v4558 = vpop.trf.xlu0
        %v4559 = vpop.trf.xlu0
        %v4560 = vpop.trf.xlu0
        %v4561 = vpop.trf.xlu0
        %v4562 = vpop.trf.xlu0
        %v4563 = vpop.trf.xlu0
        %v4564 = vpop.trf.xlu0
        %v4565 = vpop.trf.xlu0
        %4566 = vmatprep.subr.mxu0 0.0
        %4567 = vmatpush1.msra.mxu0 %v3475
        %4568 = vmatprep.subr.mxu0 0.0
        %4569 = vmatpush1.msra.mxu0 %v3474
        %4570 = vmatprep.subr.mxu0 0.0
        %4571 = vmatpush1.msra.mxu0 %v3473
        %4572 = vmatprep.subr.mxu0 0.0
        %4573 = vmatpush1.msra.mxu0 %v3472
        %4574 = vmatprep.subr.mxu0 0.0
        %4575 = vmatpush1.msra.mxu0 %v3471
        %4576 = vmatprep.subr.mxu0 0.0
        %4577 = vmatpush1.msra.mxu0 %v3470
        %4578 = vmatprep.subr.mxu0 0.0
        %4579 = vmatpush1.msra.mxu0 %v3469
        %4580 = vmatprep.subr.mxu0 0.0
        %4581 = vmatpush1.msra.mxu0 %v3468
        %4582 = vmatprep.subr.mxu0 0.0
        %4583 = vmatpush1.msra.mxu0 %v3467
        %4584 = vmatprep.subr.mxu0 0.0
        %4585 = vmatpush1.msra.mxu0 %v3466
        %4586 = vmatprep.subr.mxu0 0.0
        %4587 = vmatpush1.msra.mxu0 %v3465
        %4588 = vmatprep.subr.mxu0 0.0
        %4589 = vmatpush1.msra.mxu0 %v3464
        %4590 = vmatprep.subr.mxu0 0.0
        %4591 = vmatpush1.msra.mxu0 %v3463
        %4592 = vmatprep.subr.mxu0 0.0
        %4593 = vmatpush1.msra.mxu0 %v3462
        %4594 = vmatprep.subr.mxu0 0.0
        %4595 = vmatpush1.msra.mxu0 %v3461
        %4596 = vmatprep.subr.mxu0 0.0
        %4597 = vmatpush1.msra.mxu0 %v3460
        %4598 = vmatprep.subr.mxu0 0.0
        %4599 = vmatpush2.msra.mxu0 %v3491
        %4600 = vmatprep.subr.mxu0 0.0
        %4601 = vmatpush2.msra.mxu0 %v3490
        %4602 = vmatprep.subr.mxu0 0.0
        %4603 = vmatpush2.msra.mxu0 %v3489
        %4604 = vmatprep.subr.mxu0 0.0
        %4605 = vmatpush2.msra.mxu0 %v3488
        %4606 = vmatprep.subr.mxu0 0.0
        %4607 = vmatpush2.msra.mxu0 %v3487
        %4608 = vmatprep.subr.mxu0 0.0
        %4609 = vmatpush2.msra.mxu0 %v3486
        %4610 = vmatprep.subr.mxu0 0.0
        %4611 = vmatpush2.msra.mxu0 %v3485
        %4612 = vmatprep.subr.mxu0 0.0
        %4613 = vmatpush2.msra.mxu0 %v3484
        %4614 = vmatprep.subr.mxu0 0.0
        %4615 = vmatpush2.msra.mxu0 %v3483
        %4616 = vmatprep.subr.mxu0 0.0
        %4617 = vmatpush2.msra.mxu0 %v3482
        %4618 = vmatprep.subr.mxu0 0.0
        %4619 = vmatpush2.msra.mxu0 %v3481
        %4620 = vmatprep.subr.mxu0 0.0
        %4621 = vmatpush2.msra.mxu0 %v3480
        %4622 = vmatprep.subr.mxu0 0.0
        %4623 = vmatpush2.msra.mxu0 %v3479
        %4624 = vmatprep.subr.mxu0 0.0
        %4625 = vmatpush2.msra.mxu0 %v3478
        %4626 = vmatprep.subr.mxu0 0.0
        %4627 = vmatpush2.msra.mxu0 %v3477
        %4628 = vmatprep.subr.mxu0 0.0
        %4629 = vmatpush2.msra.mxu0 %v3476
        %4630 = vmatprep.mubr.f32.mxu0 %v4550
        %4631 = vmatmul.mubr.f32.gmra.mxu0 %v4518
        %v4632 = vpop.f32.mrf.mxu0
        %v4633 = vadd.f32 0.0, %v4632
        %v4634 = vpop.f32.mrf.mxu0
        %4635 = vdwg.mxu0
        %4637 = vrot.lane.b32.xlu0 %v1231, 4
        %v4638 = vpop.permute.xlu0 %4637
        %4641 = vrot.lane.b32.xlu0 %v1350, 8
        %v4642 = vpop.permute.xlu0 %4641
        %4645 = vrot.lane.b32.xlu0 %v1469, 12
        %v4646 = vpop.permute.xlu0 %4645
        %4649 = vrot.lane.b32.xlu0 %v3911, 16
        %v4650 = vpop.permute.xlu0 %4649
        %4653 = vrot.lane.b32.xlu0 %v4077, 26
        %v4654 = vpop.permute.xlu0 %4653
        %4657 = vrot.lane.b32.xlu0 %v4467, 36
        %v4658 = vpop.permute.xlu0 %4657
        %4661 = vrot.lane.b32.xlu0 %v4633, 46
        %v4662 = vpop.permute.xlu0 %4661
        %vm4664 = vcmask 31744
        %v4665 = vsel %vm4664, %v1112, %v4638
        %vm4666 = vcmask 64512
        %v4667 = vsel %vm4666, %v4665, %v4642
        %vm4668 = vcmask 97280
        %v4669 = vsel %vm4668, %v4667, %v4646
        %v4670 = vsel %vm1041, %v4669, %v4650
        %vm4671 = vcmask 211968
        %v4672 = vsel %vm4671, %v4670, %v4654
        %vm4673 = vcmask 293888
        %v4674 = vsel %vm4673, %v4672, %v4658
        %vm4675 = vcmask 375808
        %v4676 = vsel %vm4675, %v4674, %v4662
        %v4677 = vpack.c.bf16 %v4676, %v4676
        %v4678 = vld [vmem:[%s7] sm:$0xff]
        %v4679 = vld [vmem:[%s7 + $0x8] sm:$0xff]
        %v4680 = vld [vmem:[%s7 + $0x10] sm:$0xff]
        %v4681 = vld [vmem:[%s7 + $0x18] sm:$0xff]
        %v4682 = vld [vmem:[%s7 + $0x20] sm:$0xff]
        %v4683 = vld [vmem:[%s7 + $0x28] sm:$0xff]
        %v4684 = vld [vmem:[%s7 + $0x30] sm:$0xff]
        %v4685 = vld [vmem:[%s8] sm:$0x3]
        %v4687 = vlaneseq
        %v4688 = vshrl.u32 %v4687, 7
        %v4689 = vsub.s32 0, %v4688
        %v4690 = vrot.slane %v4685, %v4689
        %v4691 = vlaneseq
        %v4692 = vshrl.u32 %v4691, 7
        %v4693 = vsub.s32 1, %v4692
        %v4694 = vrot.slane %v4685, %v4693
        %v4704 = vunpack.c.l.b16 %v4678
        %v4705 = vunpack.c.h.b16 %v4678
        %v4706 = vunpack.c.l.b16 %v4679
        %v4707 = vunpack.c.h.b16 %v4679
        %v4708 = vunpack.c.l.b16 %v4680
        %v4709 = vunpack.c.h.b16 %v4680
        %v4710 = vunpack.c.l.b16 %v4681
        %v4711 = vunpack.c.h.b16 %v4681
        %v4712 = vunpack.c.l.b16 %v4682
        %v4713 = vunpack.c.h.b16 %v4682
        %v4714 = vunpack.c.l.b16 %v4683
        %v4715 = vunpack.c.h.b16 %v4683
        %v4716 = vunpack.c.l.b16 %v4684
        %v4717 = vunpack.c.h.b16 %v4684
        %v4718 = vpack.c.b16 %v4706, %v4704
        %v4719 = vpack.c.b16 %v4707, %v4705
        %v4720 = vpack.c.b16 %v4710, %v4708
        %v4721 = vpack.c.b16 %v4711, %v4709
        %v4722 = vpack.c.b16 %v4714, %v4712
        %v4723 = vpack.c.b16 %v4715, %v4713
        %v4724 = vpack.c.b16 %v4716, %v4716
        %v4725 = vpack.c.b16 %v4717, %v4717
        %vm4732 = vcmask 457728
        %v4734 = vsel %vm4732, %v4677, 0
        %vm4736 = vcmask 1043456
        %v4738 = vsel %vm4736, %v4724, 0
        %v4741 = vsel %vm4736, %v4725, 0
        %4743 = vmatprep.subr.bf16.mxu0 0
        %4744 = vmatpush1.bf16.msra.mxu0 0
        %4745 = vmatprep.subr.bf16.mxu0 0
        %4746 = vmatpush1.bf16.msra.mxu0 0
        %4747 = vmatprep.subr.bf16.mxu0 0
        %4748 = vmatpush1.bf16.msra.mxu0 0
        %4749 = vmatprep.subr.bf16.mxu0 0
        %4750 = vmatpush1.bf16.msra.mxu0 0
        %4751 = vmatprep.subr.bf16.mxu0 %v4741
        %4752 = vmatpush1.bf16.msra.mxu0 %v4738
        %4753 = vmatprep.subr.bf16.mxu0 %v4723
        %4754 = vmatpush1.bf16.msra.mxu0 %v4722
        %4755 = vmatprep.subr.bf16.mxu0 %v4721
        %4756 = vmatpush1.bf16.msra.mxu0 %v4720
        %4757 = vmatprep.subr.bf16.mxu0 %v4719
        %4758 = vmatpush1.bf16.msra.mxu0 %v4718
        %4759 = vmatprep.subr.bf16.mxu0 0
        %4760 = vmatpush2.bf16.msra.mxu0 0
        %4761 = vmatprep.subr.bf16.mxu0 0
        %4762 = vmatpush2.bf16.msra.mxu0 0
        %4763 = vmatprep.subr.bf16.mxu0 0
        %4764 = vmatpush2.bf16.msra.mxu0 0
        %4765 = vmatprep.subr.bf16.mxu0 0
        %4766 = vmatpush2.bf16.msra.mxu0 0
        %4767 = vmatprep.subr.bf16.mxu0 0
        %4768 = vmatpush2.bf16.msra.mxu0 0
        %4769 = vmatprep.subr.bf16.mxu0 0
        %4770 = vmatpush2.bf16.msra.mxu0 0
        %4771 = vmatprep.subr.bf16.mxu0 0
        %4772 = vmatpush2.bf16.msra.mxu0 0
        %4773 = vmatprep.subr.bf16.mxu0 0
        %4774 = vmatpush2.bf16.msra.mxu0 0
        %4775 = vmatprep.mubr.bf16.mxu0 0
        %4776 = vmatmul.mubr.bf16.gmra.mxu0 %v4734
        %v4777 = vpop.f32.mrf.mxu0
        %v4778 = vadd.f32 %v4690, %v4777
        %v4779 = vpop.f32.mrf.mxu0
        %v4780 = vadd.f32 %v4694, %v4779
        %v4781 = vpop.f32.mrf.mxu0
        %v4782 = vpop.f32.mrf.mxu0
        %4783 = vdwg.mxu0
        %vm4784 = vcmp.gt.f32.partialorder %v4778, 0.0
        %vm4785 = vcmp.gt.f32.partialorder %v4780, 0.0
        %v4786 = vmin.f32 %v4778, 0.0
        %v4787 = vmin.f32 %v4780, 0.0
        %v4788 = vrcp.pop 0.1
        %v4789 = vmul.f32 %v4786, %v4788
        %v4790 = vmul.f32 %v4787, %v4788
        %v4791 = vmul.f32 %v4789, 1.442695
        %v4792 = vpow.pop %v4791
        %v4793 = vmul.f32 %v4790, 1.442695
        %v4794 = vpow.pop %v4793
        %v4795 = vsub.f32 %v4792, 1.0
        %v4796 = vsub.f32 %v4794, 1.0
        %v4797 = vmul.f32 %v4795, 0.1
        %v4798 = vmul.f32 %v4796, 0.1
        %v4799 = vsel %vm4784, %v4778, %v4797
        %v4800 = vsel %vm4785, %v4780, %v4798
        %v4801 = vpack.c.bf16 %v4799, %v4799
        %v4802 = vpack.c.bf16 %v4800, %v4800
        %v4803 = vld [vmem:[%s9] sm:$0xf]
        %v4804 = vld [vmem:[%s9 + $0x4] sm:$0xf]
        %v4805 = vld [vmem:[%s9 + $0x8] sm:$0xf]
        %v4806 = vld [vmem:[%s9 + $0xc] sm:$0xf]
        %v4807 = vld [vmem:[%s9 + $0x10] sm:$0xf]
        %v4808 = vld [vmem:[%s9 + $0x14] sm:$0xf]
        %v4809 = vld [vmem:[%s9 + $0x18] sm:$0xf]
        %v4810 = vld [vmem:[%s9 + $0x1c] sm:$0xf]
        %v4811 = vld [vmem:[%s9 + $0x20] sm:$0xf]
        %v4812 = vld [vmem:[%s9 + $0x24] sm:$0xf]
        %v4813 = vld [vmem:[%s9 + $0x28] sm:$0xf]
        %v4814 = vld [vmem:[%s9 + $0x2c] sm:$0xf]
        %v4815 = vld [vmem:[%s9 + $0x30] sm:$0xf]
        %v4816 = vld [vmem:[%s9 + $0x34] sm:$0xf]
        %v4817 = vld [vmem:[%s9 + $0x38] sm:$0xf]
        %v4818 = vld [vmem:[%s9 + $0x3c] sm:$0xf]
        %v4819 = vld [vmem:[%s9 + $0x40] sm:$0xf]
        %v4820 = vld [vmem:[%s9 + $0x44] sm:$0xf]
        %v4821 = vld [vmem:[%s9 + $0x48] sm:$0xf]
        %v4822 = vld [vmem:[%s9 + $0x4c] sm:$0xf]
        %v4823 = vld [vmem:[%s9 + $0x50] sm:$0xf]
        %v4824 = vld [vmem:[%s9 + $0x54] sm:$0xf]
        %v4825 = vld [vmem:[%s9 + $0x58] sm:$0xf]
        %v4826 = vld [vmem:[%s9 + $0x5c] sm:$0xf]
        %v4827 = vld [vmem:[%s9 + $0x60] sm:$0xf]
        %v4828 = vld [vmem:[%s9 + $0x64] sm:$0xf]
        %v4829 = vld [vmem:[%s9 + $0x68] sm:$0xf]
        %v4830 = vld [vmem:[%s9 + $0x6c] sm:$0xf]
        %v4831 = vld [vmem:[%s9 + $0x70] sm:$0xf]
        %v4832 = vld [vmem:[%s9 + $0x74] sm:$0xf]
        %v4833 = vld [vmem:[%s9 + $0x78] sm:$0xf]
        %v4834 = vld [vmem:[%s9 + $0x7c] sm:$0xf]
        %v4835 = vld [vmem:[%s10] sm:$0x1]
        %v4837 = vlaneseq
        %v4838 = vshrl.u32 %v4837, 7
        %v4839 = vsub.s32 0, %v4838
        %v4840 = vrot.slane %v4835, %v4839
        %v4874 = vunpack.c.l.b16 %v4803
        %v4875 = vunpack.c.l.b16 %v4804
        %v4876 = vunpack.c.l.b16 %v4805
        %v4877 = vunpack.c.l.b16 %v4806
        %v4878 = vunpack.c.l.b16 %v4807
        %v4879 = vunpack.c.l.b16 %v4808
        %v4880 = vunpack.c.l.b16 %v4809
        %v4881 = vunpack.c.l.b16 %v4810
        %v4882 = vunpack.c.l.b16 %v4811
        %v4883 = vunpack.c.l.b16 %v4812
        %v4884 = vunpack.c.l.b16 %v4813
        %v4885 = vunpack.c.l.b16 %v4814
        %v4886 = vunpack.c.l.b16 %v4815
        %v4887 = vunpack.c.l.b16 %v4816
        %v4888 = vunpack.c.l.b16 %v4817
        %v4889 = vunpack.c.l.b16 %v4818
        %v4890 = vunpack.c.l.b16 %v4819
        %v4891 = vunpack.c.l.b16 %v4820
        %v4892 = vunpack.c.l.b16 %v4821
        %v4893 = vunpack.c.l.b16 %v4822
        %v4894 = vunpack.c.l.b16 %v4823
        %v4895 = vunpack.c.l.b16 %v4824
        %v4896 = vunpack.c.l.b16 %v4825
        %v4897 = vunpack.c.l.b16 %v4826
        %v4898 = vunpack.c.l.b16 %v4827
        %v4899 = vunpack.c.l.b16 %v4828
        %v4900 = vunpack.c.l.b16 %v4829
        %v4901 = vunpack.c.l.b16 %v4830
        %v4902 = vunpack.c.l.b16 %v4831
        %v4903 = vunpack.c.l.b16 %v4832
        %v4904 = vunpack.c.l.b16 %v4833
        %v4905 = vunpack.c.l.b16 %v4834
        %v4906 = vpack.c.b16 %v4875, %v4874
        %v4907 = vpack.c.b16 %v4877, %v4876
        %v4908 = vpack.c.b16 %v4879, %v4878
        %v4909 = vpack.c.b16 %v4881, %v4880
        %v4910 = vpack.c.b16 %v4883, %v4882
        %v4911 = vpack.c.b16 %v4885, %v4884
        %v4912 = vpack.c.b16 %v4887, %v4886
        %v4913 = vpack.c.b16 %v4889, %v4888
        %v4914 = vpack.c.b16 %v4891, %v4890
        %v4915 = vpack.c.b16 %v4893, %v4892
        %v4916 = vpack.c.b16 %v4895, %v4894
        %v4917 = vpack.c.b16 %v4897, %v4896
        %v4918 = vpack.c.b16 %v4899, %v4898
        %v4919 = vpack.c.b16 %v4901, %v4900
        %v4920 = vpack.c.b16 %v4903, %v4902
        %v4921 = vpack.c.b16 %v4905, %v4904
        %4938 = vmatprep.subr.bf16.mxu0 0
        %4939 = vmatpush1.bf16.msra.mxu0 %v4913
        %4940 = vmatprep.subr.bf16.mxu0 0
        %4941 = vmatpush1.bf16.msra.mxu0 %v4912
        %4942 = vmatprep.subr.bf16.mxu0 0
        %4943 = vmatpush1.bf16.msra.mxu0 %v4911
        %4944 = vmatprep.subr.bf16.mxu0 0
        %4945 = vmatpush1.bf16.msra.mxu0 %v4910
        %4946 = vmatprep.subr.bf16.mxu0 0
        %4947 = vmatpush1.bf16.msra.mxu0 %v4909
        %4948 = vmatprep.subr.bf16.mxu0 0
        %4949 = vmatpush1.bf16.msra.mxu0 %v4908
        %4950 = vmatprep.subr.bf16.mxu0 0
        %4951 = vmatpush1.bf16.msra.mxu0 %v4907
        %4952 = vmatprep.subr.bf16.mxu0 0
        %4953 = vmatpush1.bf16.msra.mxu0 %v4906
        %4954 = vmatprep.subr.bf16.mxu0 0
        %4955 = vmatpush2.bf16.msra.mxu0 %v4921
        %4956 = vmatprep.subr.bf16.mxu0 0
        %4957 = vmatpush2.bf16.msra.mxu0 %v4920
        %4958 = vmatprep.subr.bf16.mxu0 0
        %4959 = vmatpush2.bf16.msra.mxu0 %v4919
        %4960 = vmatprep.subr.bf16.mxu0 0
        %4961 = vmatpush2.bf16.msra.mxu0 %v4918
        %4962 = vmatprep.subr.bf16.mxu0 0
        %4963 = vmatpush2.bf16.msra.mxu0 %v4917
        %4964 = vmatprep.subr.bf16.mxu0 0
        %4965 = vmatpush2.bf16.msra.mxu0 %v4916
        %4966 = vmatprep.subr.bf16.mxu0 0
        %4967 = vmatpush2.bf16.msra.mxu0 %v4915
        %4968 = vmatprep.subr.bf16.mxu0 0
        %4969 = vmatpush2.bf16.msra.mxu0 %v4914
        %4970 = vmatprep.mubr.bf16.mxu0 %v4802
        %4971 = vmatmul.mubr.bf16.gmra.mxu0 %v4801
        %v4972 = vpop.f32.mrf.mxu0
        %v4973 = vadd.f32 %v4840, %v4972
        %v4974 = vpop.f32.mrf.mxu0
        %v4975 = vpop.f32.mrf.mxu0
        %v4976 = vpop.f32.mrf.mxu0
        %4977 = vdwg.mxu0
        %vm4978 = vcmp.gt.f32.partialorder %v4973, 0.0
        %v4979 = vmin.f32 %v4973, 0.0
        %v4980 = vmul.f32 %v4979, %v4788
        %v4981 = vmul.f32 %v4980, 1.442695
        %v4982 = vpow.pop %v4981
        %v4983 = vsub.f32 %v4982, 1.0
        %v4984 = vmul.f32 %v4983, 0.1
        %v4985 = vsel %vm4978, %v4973, %v4984
        %v4986 = vpack.c.bf16 %v4985, %v4985
        %v4987 = vld [vmem:[%s11] sm:$0xf]
        %v4988 = vld [vmem:[%s11 + $0x4] sm:$0xf]
        %v4989 = vld [vmem:[%s11 + $0x8] sm:$0xf]
        %v4990 = vld [vmem:[%s11 + $0xc] sm:$0xf]
        %v4991 = vld [vmem:[%s11 + $0x10] sm:$0xf]
        %v4992 = vld [vmem:[%s11 + $0x14] sm:$0xf]
        %v4993 = vld [vmem:[%s11 + $0x18] sm:$0xf]
        %v4994 = vld [vmem:[%s11 + $0x1c] sm:$0xf]
        %v4995 = vld [vmem:[%s11 + $0x20] sm:$0xf]
        %v4996 = vld [vmem:[%s11 + $0x24] sm:$0xf]
        %v4997 = vld [vmem:[%s11 + $0x28] sm:$0xf]
        %v4998 = vld [vmem:[%s11 + $0x2c] sm:$0xf]
        %v4999 = vld [vmem:[%s11 + $0x30] sm:$0xf]
        %v5000 = vld [vmem:[%s11 + $0x34] sm:$0xf]
        %v5001 = vld [vmem:[%s11 + $0x38] sm:$0xf]
        %v5002 = vld [vmem:[%s11 + $0x3c] sm:$0xf]
        %v5003 = vld [vmem:[%s12] sm:$0x1]
        %v5005 = vlaneseq
        %v5006 = vshrl.u32 %v5005, 7
        %v5007 = vsub.s32 0, %v5006
        %v5008 = vrot.slane %v5003, %v5007
        %v5026 = vunpack.c.l.b16 %v4987
        %v5027 = vunpack.c.l.b16 %v4988
        %v5028 = vunpack.c.l.b16 %v4989
        %v5029 = vunpack.c.l.b16 %v4990
        %v5030 = vunpack.c.l.b16 %v4991
        %v5031 = vunpack.c.l.b16 %v4992
        %v5032 = vunpack.c.l.b16 %v4993
        %v5033 = vunpack.c.l.b16 %v4994
        %v5034 = vunpack.c.l.b16 %v4995
        %v5035 = vunpack.c.l.b16 %v4996
        %v5036 = vunpack.c.l.b16 %v4997
        %v5037 = vunpack.c.l.b16 %v4998
        %v5038 = vunpack.c.l.b16 %v4999
        %v5039 = vunpack.c.l.b16 %v5000
        %v5040 = vunpack.c.l.b16 %v5001
        %v5041 = vunpack.c.l.b16 %v5002
        %v5042 = vpack.c.b16 %v5027, %v5026
        %v5043 = vpack.c.b16 %v5029, %v5028
        %v5044 = vpack.c.b16 %v5031, %v5030
        %v5045 = vpack.c.b16 %v5033, %v5032
        %v5046 = vpack.c.b16 %v5035, %v5034
        %v5047 = vpack.c.b16 %v5037, %v5036
        %v5048 = vpack.c.b16 %v5039, %v5038
        %v5049 = vpack.c.b16 %v5041, %v5040
        %5058 = vmatprep.subr.bf16.mxu0 0
        %5059 = vmatpush1.bf16.msra.mxu0 %v5049
        %5060 = vmatprep.subr.bf16.mxu0 0
        %5061 = vmatpush1.bf16.msra.mxu0 %v5048
        %5062 = vmatprep.subr.bf16.mxu0 0
        %5063 = vmatpush1.bf16.msra.mxu0 %v5047
        %5064 = vmatprep.subr.bf16.mxu0 0
        %5065 = vmatpush1.bf16.msra.mxu0 %v5046
        %5066 = vmatprep.subr.bf16.mxu0 0
        %5067 = vmatpush1.bf16.msra.mxu0 %v5045
        %5068 = vmatprep.subr.bf16.mxu0 0
        %5069 = vmatpush1.bf16.msra.mxu0 %v5044
        %5070 = vmatprep.subr.bf16.mxu0 0
        %5071 = vmatpush1.bf16.msra.mxu0 %v5043
        %5072 = vmatprep.subr.bf16.mxu0 0
        %5073 = vmatpush1.bf16.msra.mxu0 %v5042
        %5074 = vmatprep.subr.bf16.mxu0 0
        %5075 = vmatpush2.bf16.msra.mxu0 0
        %5076 = vmatprep.subr.bf16.mxu0 0
        %5077 = vmatpush2.bf16.msra.mxu0 0
        %5078 = vmatprep.subr.bf16.mxu0 0
        %5079 = vmatpush2.bf16.msra.mxu0 0
        %5080 = vmatprep.subr.bf16.mxu0 0
        %5081 = vmatpush2.bf16.msra.mxu0 0
        %5082 = vmatprep.subr.bf16.mxu0 0
        %5083 = vmatpush2.bf16.msra.mxu0 0
        %5084 = vmatprep.subr.bf16.mxu0 0
        %5085 = vmatpush2.bf16.msra.mxu0 0
        %5086 = vmatprep.subr.bf16.mxu0 0
        %5087 = vmatpush2.bf16.msra.mxu0 0
        %5088 = vmatprep.subr.bf16.mxu0 0
        %5089 = vmatpush2.bf16.msra.mxu0 0
        %5090 = vmatprep.mubr.bf16.mxu0 0
        %5091 = vmatmul.mubr.bf16.gmra.mxu0 %v4986
        %v5092 = vpop.f32.mrf.mxu0
        %v5093 = vadd.f32 %v5008, %v5092
        %v5094 = vpop.f32.mrf.mxu0
        %v5095 = vpop.f32.mrf.mxu0
        %v5096 = vpop.f32.mrf.mxu0
        %5097 = vdwg.mxu0
        %v5098 = vld [vmem:[%s474] sm:$0xff]
        %v5099 = vmul.f32 %v5093, %v5098
        %v5100 = vsel %vm4666, %v5099, 0.0
        %5101 = vadd.xlane.f32.xlu0 %v5100
        %v5102 = vpop.xlane.xlu0 %5101
        %v5103 = vmul.f32 %v5102, 0.5
        %v5104 = vld [vmem:[%s6] sm:$0xff]
        %v5106 = vsel %vm4666, %v5104, 0
        %5108 = vmatprep.subr.mxu0 0.0
        %5109 = vmatpush1.msra.mxu0 0.0
        %5110 = vmatprep.subr.mxu0 0.0
        %5111 = vmatpush1.msra.mxu0 0.0
        %5112 = vmatprep.subr.mxu0 0.0
        %5113 = vmatpush1.msra.mxu0 0.0
        %5114 = vmatprep.subr.mxu0 0.0
        %5115 = vmatpush1.msra.mxu0 0.0
        %5116 = vmatprep.subr.mxu0 0.0
        %5117 = vmatpush1.msra.mxu0 0.0
        %5118 = vmatprep.subr.mxu0 0.0
        %5119 = vmatpush1.msra.mxu0 0.0
        %5120 = vmatprep.subr.mxu0 0.0
        %5121 = vmatpush1.msra.mxu0 0.0
        %5122 = vmatprep.subr.mxu0 0.0
        %5123 = vmatpush1.msra.mxu0 0.0
        %5124 = vmatprep.subr.mxu0 0.0
        %5125 = vmatpush1.msra.mxu0 0.0
        %5126 = vmatprep.subr.mxu0 0.0
        %5127 = vmatpush1.msra.mxu0 0.0
        %5128 = vmatprep.subr.mxu0 0.0
        %5129 = vmatpush1.msra.mxu0 0.0
        %5130 = vmatprep.subr.mxu0 0.0
        %5131 = vmatpush1.msra.mxu0 0.0
        %5132 = vmatprep.subr.mxu0 0.0
        %5133 = vmatpush1.msra.mxu0 0.0
        %5134 = vmatprep.subr.mxu0 0.0
        %5135 = vmatpush1.msra.mxu0 0.0
        %5136 = vmatprep.subr.mxu0 0.0
        %5137 = vmatpush1.msra.mxu0 0.0
        %5138 = vmatprep.subr.mxu0 0.0
        %5139 = vmatpush1.msra.mxu0 %v5103
        %5140 = vmatprep.subr.mxu0 0.0
        %5141 = vmatpush2.msra.mxu0 0.0
        %5142 = vmatprep.subr.mxu0 0.0
        %5143 = vmatpush2.msra.mxu0 0.0
        %5144 = vmatprep.subr.mxu0 0.0
        %5145 = vmatpush2.msra.mxu0 0.0
        %5146 = vmatprep.subr.mxu0 0.0
        %5147 = vmatpush2.msra.mxu0 0.0
        %5148 = vmatprep.subr.mxu0 0.0
        %5149 = vmatpush2.msra.mxu0 0.0
        %5150 = vmatprep.subr.mxu0 0.0
        %5151 = vmatpush2.msra.mxu0 0.0
        %5152 = vmatprep.subr.mxu0 0.0
        %5153 = vmatpush2.msra.mxu0 0.0
        %5154 = vmatprep.subr.mxu0 0.0
        %5155 = vmatpush2.msra.mxu0 0.0
        %5156 = vmatprep.subr.mxu0 0.0
        %5157 = vmatpush2.msra.mxu0 0.0
        %5158 = vmatprep.subr.mxu0 0.0
        %5159 = vmatpush2.msra.mxu0 0.0
        %5160 = vmatprep.subr.mxu0 0.0
        %5161 = vmatpush2.msra.mxu0 0.0
        %5162 = vmatprep.subr.mxu0 0.0
        %5163 = vmatpush2.msra.mxu0 0.0
        %5164 = vmatprep.subr.mxu0 0.0
        %5165 = vmatpush2.msra.mxu0 0.0
        %5166 = vmatprep.subr.mxu0 0.0
        %5167 = vmatpush2.msra.mxu0 0.0
        %5168 = vmatprep.subr.mxu0 0.0
        %5169 = vmatpush2.msra.mxu0 0.0
        %5170 = vmatprep.subr.mxu0 0.0
        %5171 = vmatpush2.msra.mxu0 0.0
        %5172 = vmatprep.mubr.f32.mxu0 0.0
        %5173 = vmatmul.mubr.f32.gmra.mxu0 %v5106
        %v5174 = vpop.f32.mrf.mxu0
        %v5175 = vadd.f32 0.0, %v5174
        %v5176 = vpop.f32.mrf.mxu0
        %5177 = vdwg.mxu0
        %5178 = vst [vmem:[%s460] sm:$0xff] %v5175
        %s5179 = sand.u32 %s323, 1
        %s5180 = scalar_lea.sflag [#allocation3], %s5179
        %s5181 = sand.u32 %s323, 1
        %s5182 = smul.addr %s5181, 8
        %s5183 = scalar_lea.vmem [#allocation2], %s5182
        // Predicated region
        $region73: #{tpu_custom_call.1} parent=71 // pred_check
          %p5184 = pneg %p333
        $region74: #{tpu_custom_call.1} parent=71 // pred_check_branch
          %5186 = sbr.rel (%p5184) target = $region76
        $region75: #{tpu_custom_call.1} parent=71 // pred_region
          %s5188 = ssub.s32 128, 128
          %5189 = vsyncadd %s5180, %s5188
          %s5190 = smul.addr %s27, 128
          %s5191 = scalar_lea.hbm %s13, %s5190
          %s5193 = sshll.u32 %s5183, 4
          %s5194 = int_to_ptr.vmem [resolvable:$true] %s5193
          %5196 = dma.vmem_to_hbm [thread:$0]  %s5194, 128, %s5191, %s5180
        $region76: #{tpu_custom_call.1} parent=71 // pred_fallthru
          _
      $region72: #{tpu_custom_call.1} parent=5 // pred_fallthru
        _
      %p5197 = scmp.le.s32.totalorder 2, %s22
      // Predicated region
      $region77: #{tpu_custom_call.1} parent=5 // pred_check
        %p5198 = pneg %p5197
      $region78: #{tpu_custom_call.1} parent=5 // pred_check_branch
        %5200 = sbr.rel (%p5198) target = $region80
      $region79: #{tpu_custom_call.1} parent=5 // pred_region
        %s5201 = ssub.s32 %s22, 2
        // Predicated region
        $region81: #{tpu_custom_call.1} parent=79 // pred_check
          %p5202 = pneg %p339
        $region82: #{tpu_custom_call.1} parent=79 // pred_check_branch
          %5204 = sbr.rel (%p5202) target = $region84
        $region83: #{tpu_custom_call.1} parent=79 // pred_region
          %s5205 = sand.u32 %s324, 1
          %s5206 = scalar_lea.sflag [#allocation3], %s5205
          %s5207 = sand.u32 %s324, 1
          %s5208 = smul.addr %s5207, 8
          %s5209 = scalar_lea.vmem [#allocation2], %s5208
          %5210 = dma.done %s5206, 128
        $region84: #{tpu_custom_call.1} parent=79 // pred_fallthru
          _
      $region80: #{tpu_custom_call.1} parent=5 // pred_fallthru
        _
    $region6: #{tpu_custom_call.1} parent=1 // loop_footer
      %s26 = sadd.s32 1, %s22
    $region7: #{tpu_custom_call.1} parent=1 // loop_footer_branch
      %21 = sbr.rel target = $region3
    $region8: #{tpu_custom_call.1} parent=1 // loop_exit
      _
    %5211 = vsyncpa [#allocation3], 1
    %s5212 = scalar_lea.sflag [#allocation3], 1
    %5213 = vsyncpa %s5212, 1

</llo_original>
